<compile_context>
chip_gen: v7x
topology: tpu7x:2x2x1
jax: 0.10.0
libtpu: 0.0.40
codegen_flags: <defaults>
</compile_context>

<pallas_src>
import math
import functools

import jax
import jax.numpy as jnp
from jax.experimental import pallas as pl
from jax.experimental.pallas import tpu as pltpu

NUM_GLOBAL = 10          # fixed by the module: global_query has 10 tokens
LN_EPS = 1e-5            # torch.nn.LayerNorm default

# MXU operand dtype.  bf16 is native on v5e/v6e/v7x; accumulation stays f32.
MXU_DTYPE = jnp.bfloat16
# approx=True uses the EUP vrcp slot (free next to exp); set False for parity.
RECIP_APPROX = True

_VMEM = pl.BlockSpec(memory_space=pltpu.MemorySpace.VMEM)


# ----------------------------- in-kernel helpers ------------------------------

def _dot(a, b):
    return jnp.dot(a.astype(MXU_DTYPE), b.astype(MXU_DTYPE),
                   preferred_element_type=jnp.float32)


def _dot_t(a, b):
    # a @ b.T without materializing a transpose (contract last dims of both).
    return jax.lax.dot_general(a.astype(MXU_DTYPE), b.astype(MXU_DTYPE),
                               (((1,), (1,)), ((), ())),
                               preferred_element_type=jnp.float32)


def _layernorm(x, gamma, beta, eps):
    mu = jnp.mean(x, axis=-1, keepdims=True)
    xc = x - mu
    var = jnp.mean(xc * xc, axis=-1, keepdims=True)     # biased var (torch LN)
    return xc * jax.lax.rsqrt(var + eps) * gamma + beta


# ----------------------------- token-side kernel ------------------------------

def _token_stage_kernel(
        gq_ref, pe_ref,
        sa_wqkv_ref, sa_bqkv_ref, sa_wo_ref, sa_bo_ref,
        w1_ref, b1_ref, w2_ref, b2_ref,
        xa_wkv_ref, xa_bkv_ref, rep_ref, dmask_ref,
        n1g_ref, n1b_ref, n2g_ref, n2b_ref, n3g_ref, n3b_ref,
        point_ref, kblock_ref, vblock_ref,
        *, num_heads, eps):
    f32 = jnp.float32
    gq = gq_ref[...].astype(f32)      # (Ng, C)  global query tokens
    pe = pe_ref[...].astype(f32)      # (Np, C)  point tokens
    c = gq.shape[-1]
    dh = c // num_heads

    # ---- self attention over [gq ; pe]: two row blocks, softmax over the
    # union of the key blocks (no in-kernel concat of the token axis).
    # 1/sqrt(dh) is folded into the Q columns of sa_wqkv host-side.
    wqkv = sa_wqkv_ref[...]           # (C, 3C) fused Wq|Wk|Wv
    bqkv = sa_bqkv_ref[...]           # (1, 3C)
    pg = _dot(gq, wqkv) + bqkv        # (Ng, 3C)
    pp = _dot(pe, wqkv) + bqkv        # (Np, 3C)

    wo = sa_wo_ref[...]               # (C, C)
    acc_g = jnp.zeros((gq.shape[0], c), f32)
    acc_p = jnp.zeros((pe.shape[0], c), f32)
    # Static per-head loop: only ~(10 + Np) tokens live here, so this stage is
    # negligible at any scale; the perf-critical image-side attention below is
    # loop-free (block-packed matmuls).
    for h in range(num_heads):
        q_sl = slice(h * dh, (h + 1) * dh)
        k_sl = slice(c + h * dh, c + (h + 1) * dh)
        v_sl = slice(2 * c + h * dh, 2 * c + (h + 1) * dh)
        qg, qp = pg[:, q_sl], pp[:, q_sl]
        kg, kp = pg[:, k_sl], pp[:, k_sl]
        vg, vp = pg[:, v_sl], pp[:, v_sl]

        def attend(qh):
            lg = _dot_t(qh, kg)                         # scale pre-folded
            lp = _dot_t(qh, kp)
            m = jnp.maximum(jnp.max(lg, axis=-1, keepdims=True),
                            jnp.max(lp, axis=-1, keepdims=True))
            eg = jnp.exp(lg - m)
            ep = jnp.exp(lp - m)
            denom = (jnp.sum(eg, axis=-1, keepdims=True)
                     + jnp.sum(ep, axis=-1, keepdims=True))
            inv = pl.reciprocal(denom, approx=RECIP_APPROX)
            return (_dot(eg, vg) + _dot(ep, vp)) * inv  # (nq, dh)

        wo_h = wo[q_sl, :]                              # recombine + out_proj
        acc_g = acc_g + _dot(attend(qg), wo_h)
        acc_p = acc_p + _dot(attend(qp), wo_h)

    self_g = acc_g + sa_bo_ref[...]
    self_p = acc_p + sa_bo_ref[...]

    # Reference order (this module, not canonical SAM):
    #   self_out = norm1(self_out); queries = norm2(q + self_out)
    n1g, n1b = n1g_ref[...], n1b_ref[...]
    n2g, n2b = n2g_ref[...], n2b_ref[...]
    q_g = _layernorm(gq + _layernorm(self_g, n1g, n1b, eps), n2g, n2b, eps)
    q_p = _layernorm(pe + _layernorm(self_p, n1g, n1b, eps), n2g, n2b, eps)

    # point_embed output == queries[:, 10:, :]  (post-norm2, pre-MLP, per spec)
    point_ref[...] = q_p.astype(point_ref.dtype)

    # ---- MLP (lin1 -> ReLU -> lin2) on the 10 global queries, + norm3 ----
    h1 = jnp.maximum(_dot(q_g, w1_ref[...]) + b1_ref[...], 0.0)
    q_g = _layernorm(q_g + _dot(h1, w2_ref[...]) + b2_ref[...],
                     n3g_ref[...], n3b_ref[...], eps)

    # ---- cross-attn K/V projection + block-diagonal packing ----
    # kblock/vblock: (H*Ng, Ci); row r = h*Ng + n carries key/value token n of
    # head h, nonzero only on head h's lanes.  The image kernel then computes
    # every head's logits / PV / denominators with full-width matmuls.
    ci = kblock_ref.shape[-1]
    kvx = _dot(q_g, xa_wkv_ref[...]) + xa_bkv_ref[...]   # (Ng, 2*Ci) fused K|V
    k_part = kvx[:, :ci]                                 # (Ng, Ci)
    v_part = kvx[:, ci:]                                 # (Ng, Ci)
    rep = rep_ref[...]                                   # (H*Ng, Ng) 0/1 row-replication
    dmask = dmask_ref[...]                               # (H*Ng, Ci) block-diag 0/1
    kblock_ref[...] = (_dot(rep, k_part) * dmask).astype(kblock_ref.dtype)
    vblock_ref[...] = (_dot(rep, v_part) * dmask).astype(vblock_ref.dtype)


# ----------------------------- image-side kernel ------------------------------

def _image_stage_kernel(
        img_ref, xa_wq_ref, xa_bq_ref, kblock_ref, vblock_ref, dmask_ref,
        xa_wo_ref, xa_bo_ref, n4g_ref, n4b_ref,
        keys_ref, *, eps):
    f32 = jnp.float32
    img = img_ref[...].astype(f32)                       # (T, C) image-row tile

    # Q projection (1/sqrt(dhx) folded into xa_wq host-side).
    qx = _dot(img, xa_wq_ref[...]) + xa_bq_ref[...]      # (T, Ci)

    # All heads' logits in one push against the block-diagonal key matrix.
    logits = _dot_t(qx, kblock_ref[...])                 # (T, H*Ng)
    # Shared shift across heads is valid: softmax is shift-invariant per head.
    m = jnp.max(logits, axis=-1, keepdims=True)
    e = jnp.exp(logits - m)
    # Un-normalized P@V: heads land already recombined along the Ci lanes.
    o_un = _dot(e, vblock_ref[...])                      # (T, Ci)
    # Per-head denominators, broadcast across each head's dhx lanes by the MXU.
    denom = _dot(e, dmask_ref[...])                      # (T, Ci)
    o_all = o_un * pl.reciprocal(denom, approx=RECIP_APPROX)

    # Single full-K out-projection (Ci -> C), then residual + norm4.
    attn_out = _dot(o_all, xa_wo_ref[...]) + xa_bo_ref[...]
    keys_ref[...] = _layernorm(img + attn_out, n4g_ref[...], n4b_ref[...],
                               eps).astype(keys_ref.dtype)


# ----------------------------- wrapper ----------------------------------------

def _const_block_spec(x):
    # Full-array block with a constant block index: stays VMEM-resident across
    # the grid (Pallas skips the re-fetch when the block index is unchanged).
    nd = x.ndim
    return pl.BlockSpec(x.shape, lambda i: (0,) * nd)


def _choose_img_tile(n_img, max_tile=512):
    # ~512-row tiles reach ~85% of HBM roofline while fitting v7x's VMEM;
    # v5e/v6e could take larger tiles but 512 is a safe cross-generation pick.
    for t in (512, 256, 128, 64, 32, 16, 8):
        if t <= max_tile and t <= n_img and n_img % t == 0:
            return t
    return n_img


def two_way_attention_block(params, img_embed, point_embed, img_pe, point_pe,
                            num_heads, img_tile=None):
    """Matches TwoWayAttentionBlock.forward of the reference module.  img_pe /
    point_pe are accepted but unused, exactly as in the reference forward().
    Requires batch == 1 (the torch code concatenates a (1, 10, C) parameter
    with point_embed)."""
    del img_pe, point_pe
    assert img_embed.shape[0] == 1 and point_embed.shape[0] == 1

    gq = params["global_query"][0]    # (Ng, C)
    pe = point_embed[0]               # (Np, C)
    img = img_embed[0]                # (Ni, C)
    n_img, c = img.shape
    n_pt = pe.shape[0]
    n_glob = gq.shape[0]
    ci = params["xa_wq"].shape[-1]
    dhx = ci // num_heads
    hng = num_heads * n_glob

    # Host-built (shape-only) helpers for the block-diagonal head packing.
    rep = (jnp.arange(hng)[:, None] % n_glob
           == jnp.arange(n_glob)[None, :]).astype(jnp.float32)      # (H*Ng, Ng)
    dmask = (jnp.arange(hng)[:, None] // n_glob
             == jnp.arange(ci)[None, :] // dhx).astype(jnp.float32)  # (H*Ng, Ci)

    # ---- call 1: token-side stage (tiny; single grid point) ----
    tok_kernel = functools.partial(_token_stage_kernel,
                                   num_heads=num_heads, eps=LN_EPS)
    tok_in = (gq, pe,
              params["sa_wqkv"], params["sa_bqkv"],
              params["sa_wo"], params["sa_bo"],
              params["mlp_w1"], params["mlp_b1"],
              params["mlp_w2"], params["mlp_b2"],
              params["xa_wkv"], params["xa_bkv"], rep, dmask,
              params["n1g"], params["n1b"], params["n2g"], params["n2b"],
              params["n3g"], params["n3b"])
    point_out, kblock, vblock = pl.pallas_call(
        tok_kernel,
        out_shape=(jax.ShapeDtypeStruct((n_pt, c), pe.dtype),
                   jax.ShapeDtypeStruct((hng, ci), jnp.float32),
                   jax.ShapeDtypeStruct((hng, ci), jnp.float32)),
        in_specs=[_VMEM] * len(tok_in),
        out_specs=(_VMEM, _VMEM, _VMEM),
    )(*tok_in)

    # ---- call 2: image-side stage, grid over image-row tiles (megacore) ----
    tile = img_tile if img_tile is not None else _choose_img_tile(n_img)
    assert n_img % tile == 0, "image tile must divide the number of image tokens"
    grid = (n_img // tile,)

    img_kernel = functools.partial(_image_stage_kernel, eps=LN_EPS)
    img_in = (img, params["xa_wq"], params["xa_bq"], kblock, vblock, dmask,
              params["xa_wo"], params["xa_bo"], params["n4g"], params["n4b"])
    in_specs = [pl.BlockSpec((tile, c), lambda i: (i, 0))]
    in_specs += [_const_block_spec(x) for x in img_in[1:]]

    # Explicit scoped-VMEM budget: double-buffered img/keys tiles + resident
    # constants + slack (>= the 32 MiB v6e/v7x default, capped well below v7x's
    # 64 MiB physical VMEM).
    const_bytes = sum(int(x.size) * x.dtype.itemsize for x in img_in[1:])
    tile_bytes = tile * c * img.dtype.itemsize
    vmem_limit = int(min(48 << 20,
                         max(32 << 20, 4 * tile_bytes + const_bytes + (4 << 20))))

    keys = pl.pallas_call(
        img_kernel,
        out_shape=jax.ShapeDtypeStruct((n_img, c), img.dtype),
        grid=grid,
        in_specs=in_specs,
        out_specs=pl.BlockSpec((tile, c), lambda i: (i, 0)),
        compiler_params=pltpu.CompilerParams(
            dimension_semantics=("parallel",),
            vmem_limit_bytes=vmem_limit),
    )(*img_in)

    return keys[None], point_out[None]


# ----------------------------- parameter init ----------------------------------

def _init_linear(key, in_dim, out_dim):
    k1, k2 = jax.random.split(key)
    w = jax.random.normal(k1, (in_dim, out_dim), jnp.float32) / math.sqrt(in_dim)
    b = 0.01 * jax.random.normal(k2, (1, out_dim), jnp.float32)
    return w, b


def init_params(key, embed_dim, num_heads, mlp_dim, downsample_rate):
    ks = jax.random.split(key, 11)
    # self attention (internal_dim == embed_dim)
    wq, bq = _init_linear(ks[0], embed_dim, embed_dim)
    wk, bk = _init_linear(ks[1], embed_dim, embed_dim)
    wv, bv = _init_linear(ks[2], embed_dim, embed_dim)
    sa_wo, sa_bo = _init_linear(ks[3], embed_dim, embed_dim)
    # cross attention image->token (internal_dim == embed_dim // downsample_rate)
    ci = embed_dim // downsample_rate
    xwq, xbq = _init_linear(ks[4], embed_dim, ci)
    xwk, xbk = _init_linear(ks[5], embed_dim, ci)
    xwv, xbv = _init_linear(ks[6], embed_dim, ci)
    xa_wo, xa_bo = _init_linear(ks[7], ci, embed_dim)
    # MLP (TwoWayAttentionBlock passes activation=nn.ReLU)
    w1, b1 = _init_linear(ks[8], embed_dim, mlp_dim)
    w2, b2 = _init_linear(ks[9], mlp_dim, embed_dim)

    # Fold the attention softmax scales into the Q projections (pure weight
    # preprocessing -- apply the same folding when porting torch weights).
    scale = 1.0 / math.sqrt(embed_dim // num_heads)
    scale_x = 1.0 / math.sqrt(ci // num_heads)
    wq, bq = wq * scale, bq * scale
    xwq, xbq = xwq * scale_x, xbq * scale_x

    def ln():
        return (jnp.ones((1, embed_dim), jnp.float32),
                jnp.zeros((1, embed_dim), jnp.float32))
    n1g, n1b = ln(); n2g, n2b = ln(); n3g, n3b = ln(); n4g, n4b = ln()

    return dict(
        # Q|K|V pre-fused along the output dim -> single wide MXU push in-kernel
        sa_wqkv=jnp.concatenate([wq, wk, wv], axis=1),
        sa_bqkv=jnp.concatenate([bq, bk, bv], axis=1),
        sa_wo=sa_wo, sa_bo=sa_bo,
        xa_wq=xwq, xa_bq=xbq,
        xa_wkv=jnp.concatenate([xwk, xwv], axis=1),
        xa_bkv=jnp.concatenate([xbk, xbv], axis=1),
        xa_wo=xa_wo, xa_bo=xa_bo,
        mlp_w1=w1, mlp_b1=b1, mlp_w2=w2, mlp_b2=b2,
        n1g=n1g, n1b=n1b, n2g=n2g, n2b=n2b,
        n3g=n3g, n3b=n3b, n4g=n4g, n4b=n4b,
        global_query=0.1 * jax.random.normal(
            ks[10], (1, NUM_GLOBAL, embed_dim), jnp.float32),
    )


# ----------------------------- main --------------------------------------------

if __name__ == "__main__":
    EMBED_DIM = 32
    NUM_HEADS = 4
    MLP_DIM = 64
    DOWNSAMPLE = 2
    B, N_POINT, N_IMG = 1, 8, 16

    root = jax.random.PRNGKey(0)
    kp, k1, k2, k3, k4 = jax.random.split(root, 5)

    params = init_params(kp, EMBED_DIM, NUM_HEADS, MLP_DIM, DOWNSAMPLE)
    img_embed = jax.random.normal(k1, (B, N_IMG, EMBED_DIM), jnp.float32)
    point_embed = jax.random.normal(k2, (B, N_POINT, EMBED_DIM), jnp.float32)
    img_pe = jax.random.normal(k3, (B, N_IMG, EMBED_DIM), jnp.float32)
    point_pe = jax.random.normal(k4, (B, N_POINT, EMBED_DIM), jnp.float32)

    keys_out, point_out = two_way_attention_block(
        params, img_embed, point_embed, img_pe, point_pe, NUM_HEADS,
        img_tile=8)   # 2-step grid at toy size to exercise the tiled path
    jax.block_until_ready((keys_out, point_out))

    assert keys_out.shape == (B, N_IMG, EMBED_DIM)
    assert point_out.shape == (B, N_POINT, EMBED_DIM)
    print("KERNEL_OK")
</pallas_src>

<mosaic_0001>
module attributes {stable_mosaic.version = 11 : i64} {
  func.func @_token_stage_kernel(%arg0: memref<10x32xf32, #tpu.memory_space<vmem>>, %arg1: memref<8x32xf32, #tpu.memory_space<vmem>>, %arg2: memref<32x96xf32, #tpu.memory_space<vmem>>, %arg3: memref<1x96xf32, #tpu.memory_space<vmem>>, %arg4: memref<32x32xf32, #tpu.memory_space<vmem>>, %arg5: memref<1x32xf32, #tpu.memory_space<vmem>>, %arg6: memref<32x64xf32, #tpu.memory_space<vmem>>, %arg7: memref<1x64xf32, #tpu.memory_space<vmem>>, %arg8: memref<64x32xf32, #tpu.memory_space<vmem>>, %arg9: memref<1x32xf32, #tpu.memory_space<vmem>>, %arg10: memref<32x32xf32, #tpu.memory_space<vmem>>, %arg11: memref<1x32xf32, #tpu.memory_space<vmem>>, %arg12: memref<40x10xf32, #tpu.memory_space<vmem>>, %arg13: memref<40x16xf32, #tpu.memory_space<vmem>>, %arg14: memref<1x32xf32, #tpu.memory_space<vmem>>, %arg15: memref<1x32xf32, #tpu.memory_space<vmem>>, %arg16: memref<1x32xf32, #tpu.memory_space<vmem>>, %arg17: memref<1x32xf32, #tpu.memory_space<vmem>>, %arg18: memref<1x32xf32, #tpu.memory_space<vmem>>, %arg19: memref<1x32xf32, #tpu.memory_space<vmem>>, %arg20: memref<8x32xf32, #tpu.memory_space<vmem>>, %arg21: memref<40x16xf32, #tpu.memory_space<vmem>>, %arg22: memref<40x16xf32, #tpu.memory_space<vmem>>) attributes {dimension_semantics = [], scalar_prefetch = 0 : i64, scratch_operands = 0 : i64, tpu.core_type = #tpu.core_type<tc>} {
    %c0 = arith.constant 0 : index
    %c0_0 = arith.constant 0 : index
    %0 = vector.load %arg0[%c0, %c0_0] : memref<10x32xf32, #tpu.memory_space<vmem>>, vector<10x32xf32>
    %c0_1 = arith.constant 0 : index
    %c0_2 = arith.constant 0 : index
    %1 = vector.load %arg1[%c0_1, %c0_2] : memref<8x32xf32, #tpu.memory_space<vmem>>, vector<8x32xf32>
    %c0_3 = arith.constant 0 : index
    %c0_4 = arith.constant 0 : index
    %2 = vector.load %arg2[%c0_3, %c0_4] : memref<32x96xf32, #tpu.memory_space<vmem>>, vector<32x96xf32>
    %c0_5 = arith.constant 0 : index
    %c0_6 = arith.constant 0 : index
    %3 = vector.load %arg3[%c0_5, %c0_6] : memref<1x96xf32, #tpu.memory_space<vmem>>, vector<1x96xf32>
    %4 = arith.truncf %0 : vector<10x32xf32> to vector<10x32xbf16>
    %5 = arith.truncf %2 : vector<32x96xf32> to vector<32x96xbf16>
    %cst = arith.constant dense<0.000000e+00> : vector<10x96xf32>
    %6 = tpu.matmul %4, %5, %cst {dimension_numbers = #tpu.dot_dimension_numbers<[1], [0], [0], [1], [0, 0, 1, 1], [], []>} : vector<10x32xbf16>, vector<32x96xbf16>, vector<10x96xf32> -> vector<10x96xf32>
    %7 = vector.broadcast %3 : vector<1x96xf32> to vector<10x96xf32>
    %8 = arith.addf %6, %7 : vector<10x96xf32>
    %9 = arith.truncf %1 : vector<8x32xf32> to vector<8x32xbf16>
    %10 = arith.truncf %2 : vector<32x96xf32> to vector<32x96xbf16>
    %cst_7 = arith.constant dense<0.000000e+00> : vector<8x96xf32>
    %11 = tpu.matmul %9, %10, %cst_7 {dimension_numbers = #tpu.dot_dimension_numbers<[1], [0], [0], [1], [0, 0, 1, 1], [], []>} : vector<8x32xbf16>, vector<32x96xbf16>, vector<8x96xf32> -> vector<8x96xf32>
    %12 = vector.broadcast %3 : vector<1x96xf32> to vector<8x96xf32>
    %13 = arith.addf %11, %12 : vector<8x96xf32>
    %c0_8 = arith.constant 0 : index
    %c0_9 = arith.constant 0 : index
    %14 = vector.load %arg4[%c0_8, %c0_9] : memref<32x32xf32, #tpu.memory_space<vmem>>, vector<32x32xf32>
    %cst_10 = arith.constant 0.000000e+00 : f32
    %15 = vector.broadcast %cst_10 : f32 to vector<10x32xf32>
    %cst_11 = arith.constant 0.000000e+00 : f32
    %16 = vector.broadcast %cst_11 : f32 to vector<8x32xf32>
    %17 = vector.extract_strided_slice %8 {offsets = [0, 0], sizes = [10, 8], strides = [1, 1]} : vector<10x96xf32> to vector<10x8xf32>
    %18 = vector.extract_strided_slice %13 {offsets = [0, 0], sizes = [8, 8], strides = [1, 1]} : vector<8x96xf32> to vector<8x8xf32>
    %19 = vector.extract_strided_slice %8 {offsets = [0, 32], sizes = [10, 8], strides = [1, 1]} : vector<10x96xf32> to vector<10x8xf32>
    %20 = vector.extract_strided_slice %13 {offsets = [0, 32], sizes = [8, 8], strides = [1, 1]} : vector<8x96xf32> to vector<8x8xf32>
    %21 = vector.extract_strided_slice %8 {offsets = [0, 64], sizes = [10, 8], strides = [1, 1]} : vector<10x96xf32> to vector<10x8xf32>
    %22 = vector.extract_strided_slice %13 {offsets = [0, 64], sizes = [8, 8], strides = [1, 1]} : vector<8x96xf32> to vector<8x8xf32>
    %23 = vector.extract_strided_slice %14 {offsets = [0, 0], sizes = [8, 32], strides = [1, 1]} : vector<32x32xf32> to vector<8x32xf32>
    %24 = arith.truncf %17 : vector<10x8xf32> to vector<10x8xbf16>
    %25 = arith.truncf %19 : vector<10x8xf32> to vector<10x8xbf16>
    %cst_12 = arith.constant dense<0.000000e+00> : vector<10x10xf32>
    %26 = tpu.matmul %24, %25, %cst_12 {dimension_numbers = #tpu.dot_dimension_numbers<[1], [1], [0], [0], [0, 0, 1, 0], [], []>} : vector<10x8xbf16>, vector<10x8xbf16>, vector<10x10xf32> -> vector<10x10xf32>
    %27 = arith.truncf %17 : vector<10x8xf32> to vector<10x8xbf16>
    %28 = arith.truncf %20 : vector<8x8xf32> to vector<8x8xbf16>
    %cst_13 = arith.constant dense<0.000000e+00> : vector<10x8xf32>
    %29 = tpu.matmul %27, %28, %cst_13 {dimension_numbers = #tpu.dot_dimension_numbers<[1], [1], [0], [0], [0, 0, 1, 0], [], []>} : vector<10x8xbf16>, vector<8x8xbf16>, vector<10x8xf32> -> vector<10x8xf32>
    %cst_14 = arith.constant dense<0xFF800000> : vector<10xf32>
    %30 = vector.multi_reduction <maximumf>, %26, %cst_14 [1] : vector<10x10xf32> to vector<10xf32>
    %31 = vector.shape_cast %30 : vector<10xf32> to vector<10x1xf32>
    %cst_15 = arith.constant dense<0xFF800000> : vector<10xf32>
    %32 = vector.multi_reduction <maximumf>, %29, %cst_15 [1] : vector<10x8xf32> to vector<10xf32>
    %33 = vector.shape_cast %32 : vector<10xf32> to vector<10x1xf32>
    %34 = arith.maximumf %31, %33 : vector<10x1xf32>
    %35 = vector.broadcast %34 : vector<10x1xf32> to vector<10x10xf32>
    %36 = arith.subf %26, %35 : vector<10x10xf32>
    %37 = math.exp %36 : vector<10x10xf32>
    %38 = vector.broadcast %34 : vector<10x1xf32> to vector<10x8xf32>
    %39 = arith.subf %29, %38 : vector<10x8xf32>
    %40 = math.exp %39 : vector<10x8xf32>
    %cst_16 = arith.constant dense<0.000000e+00> : vector<10xf32>
    %41 = vector.multi_reduction <add>, %37, %cst_16 [1] : vector<10x10xf32> to vector<10xf32>
    %42 = vector.shape_cast %41 : vector<10xf32> to vector<10x1xf32>
    %cst_17 = arith.constant dense<0.000000e+00> : vector<10xf32>
    %43 = vector.multi_reduction <add>, %40, %cst_17 [1] : vector<10x8xf32> to vector<10xf32>
    %44 = vector.shape_cast %43 : vector<10xf32> to vector<10x1xf32>
    %45 = arith.addf %42, %44 : vector<10x1xf32>
    %46 = tpu.reciprocal %45 {approx = true} : vector<10x1xf32> -> vector<10x1xf32>
    %47 = arith.truncf %37 : vector<10x10xf32> to vector<10x10xbf16>
    %48 = arith.truncf %21 : vector<10x8xf32> to vector<10x8xbf16>
    %cst_18 = arith.constant dense<0.000000e+00> : vector<10x8xf32>
    %49 = tpu.matmul %47, %48, %cst_18 {dimension_numbers = #tpu.dot_dimension_numbers<[1], [0], [0], [1], [0, 0, 1, 1], [], []>} : vector<10x10xbf16>, vector<10x8xbf16>, vector<10x8xf32> -> vector<10x8xf32>
    %50 = arith.truncf %40 : vector<10x8xf32> to vector<10x8xbf16>
    %51 = arith.truncf %22 : vector<8x8xf32> to vector<8x8xbf16>
    %cst_19 = arith.constant dense<0.000000e+00> : vector<10x8xf32>
    %52 = tpu.matmul %50, %51, %cst_19 {dimension_numbers = #tpu.dot_dimension_numbers<[1], [0], [0], [1], [0, 0, 1, 1], [], []>} : vector<10x8xbf16>, vector<8x8xbf16>, vector<10x8xf32> -> vector<10x8xf32>
    %53 = arith.addf %49, %52 : vector<10x8xf32>
    %54 = vector.broadcast %46 : vector<10x1xf32> to vector<10x8xf32>
    %55 = arith.mulf %53, %54 : vector<10x8xf32>
    %56 = arith.truncf %55 : vector<10x8xf32> to vector<10x8xbf16>
    %57 = arith.truncf %23 : vector<8x32xf32> to vector<8x32xbf16>
    %cst_20 = arith.constant dense<0.000000e+00> : vector<10x32xf32>
    %58 = tpu.matmul %56, %57, %cst_20 {dimension_numbers = #tpu.dot_dimension_numbers<[1], [0], [0], [1], [0, 0, 1, 1], [], []>} : vector<10x8xbf16>, vector<8x32xbf16>, vector<10x32xf32> -> vector<10x32xf32>
    %59 = arith.addf %15, %58 : vector<10x32xf32>
    %60 = arith.truncf %18 : vector<8x8xf32> to vector<8x8xbf16>
    %61 = arith.truncf %19 : vector<10x8xf32> to vector<10x8xbf16>
    %cst_21 = arith.constant dense<0.000000e+00> : vector<8x10xf32>
    %62 = tpu.matmul %60, %61, %cst_21 {dimension_numbers = #tpu.dot_dimension_numbers<[1], [1], [0], [0], [0, 0, 1, 0], [], []>} : vector<8x8xbf16>, vector<10x8xbf16>, vector<8x10xf32> -> vector<8x10xf32>
    %63 = arith.truncf %18 : vector<8x8xf32> to vector<8x8xbf16>
    %64 = arith.truncf %20 : vector<8x8xf32> to vector<8x8xbf16>
    %cst_22 = arith.constant dense<0.000000e+00> : vector<8x8xf32>
    %65 = tpu.matmul %63, %64, %cst_22 {dimension_numbers = #tpu.dot_dimension_numbers<[1], [1], [0], [0], [0, 0, 1, 0], [], []>} : vector<8x8xbf16>, vector<8x8xbf16>, vector<8x8xf32> -> vector<8x8xf32>
    %cst_23 = arith.constant dense<0xFF800000> : vector<8xf32>
    %66 = vector.multi_reduction <maximumf>, %62, %cst_23 [1] : vector<8x10xf32> to vector<8xf32>
    %67 = vector.shape_cast %66 : vector<8xf32> to vector<8x1xf32>
    %cst_24 = arith.constant dense<0xFF800000> : vector<8xf32>
    %68 = vector.multi_reduction <maximumf>, %65, %cst_24 [1] : vector<8x8xf32> to vector<8xf32>
    %69 = vector.shape_cast %68 : vector<8xf32> to vector<8x1xf32>
    %70 = arith.maximumf %67, %69 : vector<8x1xf32>
    %71 = vector.broadcast %70 : vector<8x1xf32> to vector<8x10xf32>
    %72 = arith.subf %62, %71 : vector<8x10xf32>
    %73 = math.exp %72 : vector<8x10xf32>
    %74 = vector.broadcast %70 : vector<8x1xf32> to vector<8x8xf32>
    %75 = arith.subf %65, %74 : vector<8x8xf32>
    %76 = math.exp %75 : vector<8x8xf32>
    %cst_25 = arith.constant dense<0.000000e+00> : vector<8xf32>
    %77 = vector.multi_reduction <add>, %73, %cst_25 [1] : vector<8x10xf32> to vector<8xf32>
    %78 = vector.shape_cast %77 : vector<8xf32> to vector<8x1xf32>
    %cst_26 = arith.constant dense<0.000000e+00> : vector<8xf32>
    %79 = vector.multi_reduction <add>, %76, %cst_26 [1] : vector<8x8xf32> to vector<8xf32>
    %80 = vector.shape_cast %79 : vector<8xf32> to vector<8x1xf32>
    %81 = arith.addf %78, %80 : vector<8x1xf32>
    %82 = tpu.reciprocal %81 {approx = true} : vector<8x1xf32> -> vector<8x1xf32>
    %83 = arith.truncf %73 : vector<8x10xf32> to vector<8x10xbf16>
    %84 = arith.truncf %21 : vector<10x8xf32> to vector<10x8xbf16>
    %cst_27 = arith.constant dense<0.000000e+00> : vector<8x8xf32>
    %85 = tpu.matmul %83, %84, %cst_27 {dimension_numbers = #tpu.dot_dimension_numbers<[1], [0], [0], [1], [0, 0, 1, 1], [], []>} : vector<8x10xbf16>, vector<10x8xbf16>, vector<8x8xf32> -> vector<8x8xf32>
    %86 = arith.truncf %76 : vector<8x8xf32> to vector<8x8xbf16>
    %87 = arith.truncf %22 : vector<8x8xf32> to vector<8x8xbf16>
    %cst_28 = arith.constant dense<0.000000e+00> : vector<8x8xf32>
    %88 = tpu.matmul %86, %87, %cst_28 {dimension_numbers = #tpu.dot_dimension_numbers<[1], [0], [0], [1], [0, 0, 1, 1], [], []>} : vector<8x8xbf16>, vector<8x8xbf16>, vector<8x8xf32> -> vector<8x8xf32>
    %89 = arith.addf %85, %88 : vector<8x8xf32>
    %90 = vector.broadcast %82 : vector<8x1xf32> to vector<8x8xf32>
    %91 = arith.mulf %89, %90 : vector<8x8xf32>
    %92 = arith.truncf %91 : vector<8x8xf32> to vector<8x8xbf16>
    %93 = arith.truncf %23 : vector<8x32xf32> to vector<8x32xbf16>
    %cst_29 = arith.constant dense<0.000000e+00> : vector<8x32xf32>
    %94 = tpu.matmul %92, %93, %cst_29 {dimension_numbers = #tpu.dot_dimension_numbers<[1], [0], [0], [1], [0, 0, 1, 1], [], []>} : vector<8x8xbf16>, vector<8x32xbf16>, vector<8x32xf32> -> vector<8x32xf32>
    %95 = arith.addf %16, %94 : vector<8x32xf32>
    %96 = vector.extract_strided_slice %8 {offsets = [0, 8], sizes = [10, 8], strides = [1, 1]} : vector<10x96xf32> to vector<10x8xf32>
    %97 = vector.extract_strided_slice %13 {offsets = [0, 8], sizes = [8, 8], strides = [1, 1]} : vector<8x96xf32> to vector<8x8xf32>
    %98 = vector.extract_strided_slice %8 {offsets = [0, 40], sizes = [10, 8], strides = [1, 1]} : vector<10x96xf32> to vector<10x8xf32>
    %99 = vector.extract_strided_slice %13 {offsets = [0, 40], sizes = [8, 8], strides = [1, 1]} : vector<8x96xf32> to vector<8x8xf32>
    %100 = vector.extract_strided_slice %8 {offsets = [0, 72], sizes = [10, 8], strides = [1, 1]} : vector<10x96xf32> to vector<10x8xf32>
    %101 = vector.extract_strided_slice %13 {offsets = [0, 72], sizes = [8, 8], strides = [1, 1]} : vector<8x96xf32> to vector<8x8xf32>
    %102 = vector.extract_strided_slice %14 {offsets = [8, 0], sizes = [8, 32], strides = [1, 1]} : vector<32x32xf32> to vector<8x32xf32>
    %103 = arith.truncf %96 : vector<10x8xf32> to vector<10x8xbf16>
    %104 = arith.truncf %98 : vector<10x8xf32> to vector<10x8xbf16>
    %cst_30 = arith.constant dense<0.000000e+00> : vector<10x10xf32>
    %105 = tpu.matmul %103, %104, %cst_30 {dimension_numbers = #tpu.dot_dimension_numbers<[1], [1], [0], [0], [0, 0, 1, 0], [], []>} : vector<10x8xbf16>, vector<10x8xbf16>, vector<10x10xf32> -> vector<10x10xf32>
    %106 = arith.truncf %96 : vector<10x8xf32> to vector<10x8xbf16>
    %107 = arith.truncf %99 : vector<8x8xf32> to vector<8x8xbf16>
    %cst_31 = arith.constant dense<0.000000e+00> : vector<10x8xf32>
    %108 = tpu.matmul %106, %107, %cst_31 {dimension_numbers = #tpu.dot_dimension_numbers<[1], [1], [0], [0], [0, 0, 1, 0], [], []>} : vector<10x8xbf16>, vector<8x8xbf16>, vector<10x8xf32> -> vector<10x8xf32>
    %cst_32 = arith.constant dense<0xFF800000> : vector<10xf32>
    %109 = vector.multi_reduction <maximumf>, %105, %cst_32 [1] : vector<10x10xf32> to vector<10xf32>
    %110 = vector.shape_cast %109 : vector<10xf32> to vector<10x1xf32>
    %cst_33 = arith.constant dense<0xFF800000> : vector<10xf32>
    %111 = vector.multi_reduction <maximumf>, %108, %cst_33 [1] : vector<10x8xf32> to vector<10xf32>
    %112 = vector.shape_cast %111 : vector<10xf32> to vector<10x1xf32>
    %113 = arith.maximumf %110, %112 : vector<10x1xf32>
    %114 = vector.broadcast %113 : vector<10x1xf32> to vector<10x10xf32>
    %115 = arith.subf %105, %114 : vector<10x10xf32>
    %116 = math.exp %115 : vector<10x10xf32>
    %117 = vector.broadcast %113 : vector<10x1xf32> to vector<10x8xf32>
    %118 = arith.subf %108, %117 : vector<10x8xf32>
    %119 = math.exp %118 : vector<10x8xf32>
    %cst_34 = arith.constant dense<0.000000e+00> : vector<10xf32>
    %120 = vector.multi_reduction <add>, %116, %cst_34 [1] : vector<10x10xf32> to vector<10xf32>
    %121 = vector.shape_cast %120 : vector<10xf32> to vector<10x1xf32>
    %cst_35 = arith.constant dense<0.000000e+00> : vector<10xf32>
    %122 = vector.multi_reduction <add>, %119, %cst_35 [1] : vector<10x8xf32> to vector<10xf32>
    %123 = vector.shape_cast %122 : vector<10xf32> to vector<10x1xf32>
    %124 = arith.addf %121, %123 : vector<10x1xf32>
    %125 = tpu.reciprocal %124 {approx = true} : vector<10x1xf32> -> vector<10x1xf32>
    %126 = arith.truncf %116 : vector<10x10xf32> to vector<10x10xbf16>
    %127 = arith.truncf %100 : vector<10x8xf32> to vector<10x8xbf16>
    %cst_36 = arith.constant dense<0.000000e+00> : vector<10x8xf32>
    %128 = tpu.matmul %126, %127, %cst_36 {dimension_numbers = #tpu.dot_dimension_numbers<[1], [0], [0], [1], [0, 0, 1, 1], [], []>} : vector<10x10xbf16>, vector<10x8xbf16>, vector<10x8xf32> -> vector<10x8xf32>
    %129 = arith.truncf %119 : vector<10x8xf32> to vector<10x8xbf16>
    %130 = arith.truncf %101 : vector<8x8xf32> to vector<8x8xbf16>
    %cst_37 = arith.constant dense<0.000000e+00> : vector<10x8xf32>
    %131 = tpu.matmul %129, %130, %cst_37 {dimension_numbers = #tpu.dot_dimension_numbers<[1], [0], [0], [1], [0, 0, 1, 1], [], []>} : vector<10x8xbf16>, vector<8x8xbf16>, vector<10x8xf32> -> vector<10x8xf32>
    %132 = arith.addf %128, %131 : vector<10x8xf32>
    %133 = vector.broadcast %125 : vector<10x1xf32> to vector<10x8xf32>
    %134 = arith.mulf %132, %133 : vector<10x8xf32>
    %135 = arith.truncf %134 : vector<10x8xf32> to vector<10x8xbf16>
    %136 = arith.truncf %102 : vector<8x32xf32> to vector<8x32xbf16>
    %cst_38 = arith.constant dense<0.000000e+00> : vector<10x32xf32>
    %137 = tpu.matmul %135, %136, %cst_38 {dimension_numbers = #tpu.dot_dimension_numbers<[1], [0], [0], [1], [0, 0, 1, 1], [], []>} : vector<10x8xbf16>, vector<8x32xbf16>, vector<10x32xf32> -> vector<10x32xf32>
    %138 = arith.addf %59, %137 : vector<10x32xf32>
    %139 = arith.truncf %97 : vector<8x8xf32> to vector<8x8xbf16>
    %140 = arith.truncf %98 : vector<10x8xf32> to vector<10x8xbf16>
    %cst_39 = arith.constant dense<0.000000e+00> : vector<8x10xf32>
    %141 = tpu.matmul %139, %140, %cst_39 {dimension_numbers = #tpu.dot_dimension_numbers<[1], [1], [0], [0], [0, 0, 1, 0], [], []>} : vector<8x8xbf16>, vector<10x8xbf16>, vector<8x10xf32> -> vector<8x10xf32>
    %142 = arith.truncf %97 : vector<8x8xf32> to vector<8x8xbf16>
    %143 = arith.truncf %99 : vector<8x8xf32> to vector<8x8xbf16>
    %cst_40 = arith.constant dense<0.000000e+00> : vector<8x8xf32>
    %144 = tpu.matmul %142, %143, %cst_40 {dimension_numbers = #tpu.dot_dimension_numbers<[1], [1], [0], [0], [0, 0, 1, 0], [], []>} : vector<8x8xbf16>, vector<8x8xbf16>, vector<8x8xf32> -> vector<8x8xf32>
    %cst_41 = arith.constant dense<0xFF800000> : vector<8xf32>
    %145 = vector.multi_reduction <maximumf>, %141, %cst_41 [1] : vector<8x10xf32> to vector<8xf32>
    %146 = vector.shape_cast %145 : vector<8xf32> to vector<8x1xf32>
    %cst_42 = arith.constant dense<0xFF800000> : vector<8xf32>
    %147 = vector.multi_reduction <maximumf>, %144, %cst_42 [1] : vector<8x8xf32> to vector<8xf32>
    %148 = vector.shape_cast %147 : vector<8xf32> to vector<8x1xf32>
    %149 = arith.maximumf %146, %148 : vector<8x1xf32>
    %150 = vector.broadcast %149 : vector<8x1xf32> to vector<8x10xf32>
    %151 = arith.subf %141, %150 : vector<8x10xf32>
    %152 = math.exp %151 : vector<8x10xf32>
    %153 = vector.broadcast %149 : vector<8x1xf32> to vector<8x8xf32>
    %154 = arith.subf %144, %153 : vector<8x8xf32>
    %155 = math.exp %154 : vector<8x8xf32>
    %cst_43 = arith.constant dense<0.000000e+00> : vector<8xf32>
    %156 = vector.multi_reduction <add>, %152, %cst_43 [1] : vector<8x10xf32> to vector<8xf32>
    %157 = vector.shape_cast %156 : vector<8xf32> to vector<8x1xf32>
    %cst_44 = arith.constant dense<0.000000e+00> : vector<8xf32>
    %158 = vector.multi_reduction <add>, %155, %cst_44 [1] : vector<8x8xf32> to vector<8xf32>
    %159 = vector.shape_cast %158 : vector<8xf32> to vector<8x1xf32>
    %160 = arith.addf %157, %159 : vector<8x1xf32>
    %161 = tpu.reciprocal %160 {approx = true} : vector<8x1xf32> -> vector<8x1xf32>
    %162 = arith.truncf %152 : vector<8x10xf32> to vector<8x10xbf16>
    %163 = arith.truncf %100 : vector<10x8xf32> to vector<10x8xbf16>
    %cst_45 = arith.constant dense<0.000000e+00> : vector<8x8xf32>
    %164 = tpu.matmul %162, %163, %cst_45 {dimension_numbers = #tpu.dot_dimension_numbers<[1], [0], [0], [1], [0, 0, 1, 1], [], []>} : vector<8x10xbf16>, vector<10x8xbf16>, vector<8x8xf32> -> vector<8x8xf32>
    %165 = arith.truncf %155 : vector<8x8xf32> to vector<8x8xbf16>
    %166 = arith.truncf %101 : vector<8x8xf32> to vector<8x8xbf16>
    %cst_46 = arith.constant dense<0.000000e+00> : vector<8x8xf32>
    %167 = tpu.matmul %165, %166, %cst_46 {dimension_numbers = #tpu.dot_dimension_numbers<[1], [0], [0], [1], [0, 0, 1, 1], [], []>} : vector<8x8xbf16>, vector<8x8xbf16>, vector<8x8xf32> -> vector<8x8xf32>
    %168 = arith.addf %164, %167 : vector<8x8xf32>
    %169 = vector.broadcast %161 : vector<8x1xf32> to vector<8x8xf32>
    %170 = arith.mulf %168, %169 : vector<8x8xf32>
    %171 = arith.truncf %170 : vector<8x8xf32> to vector<8x8xbf16>
    %172 = arith.truncf %102 : vector<8x32xf32> to vector<8x32xbf16>
    %cst_47 = arith.constant dense<0.000000e+00> : vector<8x32xf32>
    %173 = tpu.matmul %171, %172, %cst_47 {dimension_numbers = #tpu.dot_dimension_numbers<[1], [0], [0], [1], [0, 0, 1, 1], [], []>} : vector<8x8xbf16>, vector<8x32xbf16>, vector<8x32xf32> -> vector<8x32xf32>
    %174 = arith.addf %95, %173 : vector<8x32xf32>
    %175 = vector.extract_strided_slice %8 {offsets = [0, 16], sizes = [10, 8], strides = [1, 1]} : vector<10x96xf32> to vector<10x8xf32>
    %176 = vector.extract_strided_slice %13 {offsets = [0, 16], sizes = [8, 8], strides = [1, 1]} : vector<8x96xf32> to vector<8x8xf32>
    %177 = vector.extract_strided_slice %8 {offsets = [0, 48], sizes = [10, 8], strides = [1, 1]} : vector<10x96xf32> to vector<10x8xf32>
    %178 = vector.extract_strided_slice %13 {offsets = [0, 48], sizes = [8, 8], strides = [1, 1]} : vector<8x96xf32> to vector<8x8xf32>
    %179 = vector.extract_strided_slice %8 {offsets = [0, 80], sizes = [10, 8], strides = [1, 1]} : vector<10x96xf32> to vector<10x8xf32>
    %180 = vector.extract_strided_slice %13 {offsets = [0, 80], sizes = [8, 8], strides = [1, 1]} : vector<8x96xf32> to vector<8x8xf32>
    %181 = vector.extract_strided_slice %14 {offsets = [16, 0], sizes = [8, 32], strides = [1, 1]} : vector<32x32xf32> to vector<8x32xf32>
    %182 = arith.truncf %175 : vector<10x8xf32> to vector<10x8xbf16>
    %183 = arith.truncf %177 : vector<10x8xf32> to vector<10x8xbf16>
    %cst_48 = arith.constant dense<0.000000e+00> : vector<10x10xf32>
    %184 = tpu.matmul %182, %183, %cst_48 {dimension_numbers = #tpu.dot_dimension_numbers<[1], [1], [0], [0], [0, 0, 1, 0], [], []>} : vector<10x8xbf16>, vector<10x8xbf16>, vector<10x10xf32> -> vector<10x10xf32>
    %185 = arith.truncf %175 : vector<10x8xf32> to vector<10x8xbf16>
    %186 = arith.truncf %178 : vector<8x8xf32> to vector<8x8xbf16>
    %cst_49 = arith.constant dense<0.000000e+00> : vector<10x8xf32>
    %187 = tpu.matmul %185, %186, %cst_49 {dimension_numbers = #tpu.dot_dimension_numbers<[1], [1], [0], [0], [0, 0, 1, 0], [], []>} : vector<10x8xbf16>, vector<8x8xbf16>, vector<10x8xf32> -> vector<10x8xf32>
    %cst_50 = arith.constant dense<0xFF800000> : vector<10xf32>
    %188 = vector.multi_reduction <maximumf>, %184, %cst_50 [1] : vector<10x10xf32> to vector<10xf32>
    %189 = vector.shape_cast %188 : vector<10xf32> to vector<10x1xf32>
    %cst_51 = arith.constant dense<0xFF800000> : vector<10xf32>
    %190 = vector.multi_reduction <maximumf>, %187, %cst_51 [1] : vector<10x8xf32> to vector<10xf32>
    %191 = vector.shape_cast %190 : vector<10xf32> to vector<10x1xf32>
    %192 = arith.maximumf %189, %191 : vector<10x1xf32>
    %193 = vector.broadcast %192 : vector<10x1xf32> to vector<10x10xf32>
    %194 = arith.subf %184, %193 : vector<10x10xf32>
    %195 = math.exp %194 : vector<10x10xf32>
    %196 = vector.broadcast %192 : vector<10x1xf32> to vector<10x8xf32>
    %197 = arith.subf %187, %196 : vector<10x8xf32>
    %198 = math.exp %197 : vector<10x8xf32>
    %cst_52 = arith.constant dense<0.000000e+00> : vector<10xf32>
    %199 = vector.multi_reduction <add>, %195, %cst_52 [1] : vector<10x10xf32> to vector<10xf32>
    %200 = vector.shape_cast %199 : vector<10xf32> to vector<10x1xf32>
    %cst_53 = arith.constant dense<0.000000e+00> : vector<10xf32>
    %201 = vector.multi_reduction <add>, %198, %cst_53 [1] : vector<10x8xf32> to vector<10xf32>
    %202 = vector.shape_cast %201 : vector<10xf32> to vector<10x1xf32>
    %203 = arith.addf %200, %202 : vector<10x1xf32>
    %204 = tpu.reciprocal %203 {approx = true} : vector<10x1xf32> -> vector<10x1xf32>
    %205 = arith.truncf %195 : vector<10x10xf32> to vector<10x10xbf16>
    %206 = arith.truncf %179 : vector<10x8xf32> to vector<10x8xbf16>
    %cst_54 = arith.constant dense<0.000000e+00> : vector<10x8xf32>
    %207 = tpu.matmul %205, %206, %cst_54 {dimension_numbers = #tpu.dot_dimension_numbers<[1], [0], [0], [1], [0, 0, 1, 1], [], []>} : vector<10x10xbf16>, vector<10x8xbf16>, vector<10x8xf32> -> vector<10x8xf32>
    %208 = arith.truncf %198 : vector<10x8xf32> to vector<10x8xbf16>
    %209 = arith.truncf %180 : vector<8x8xf32> to vector<8x8xbf16>
    %cst_55 = arith.constant dense<0.000000e+00> : vector<10x8xf32>
    %210 = tpu.matmul %208, %209, %cst_55 {dimension_numbers = #tpu.dot_dimension_numbers<[1], [0], [0], [1], [0, 0, 1, 1], [], []>} : vector<10x8xbf16>, vector<8x8xbf16>, vector<10x8xf32> -> vector<10x8xf32>
    %211 = arith.addf %207, %210 : vector<10x8xf32>
    %212 = vector.broadcast %204 : vector<10x1xf32> to vector<10x8xf32>
    %213 = arith.mulf %211, %212 : vector<10x8xf32>
    %214 = arith.truncf %213 : vector<10x8xf32> to vector<10x8xbf16>
    %215 = arith.truncf %181 : vector<8x32xf32> to vector<8x32xbf16>
    %cst_56 = arith.constant dense<0.000000e+00> : vector<10x32xf32>
    %216 = tpu.matmul %214, %215, %cst_56 {dimension_numbers = #tpu.dot_dimension_numbers<[1], [0], [0], [1], [0, 0, 1, 1], [], []>} : vector<10x8xbf16>, vector<8x32xbf16>, vector<10x32xf32> -> vector<10x32xf32>
    %217 = arith.addf %138, %216 : vector<10x32xf32>
    %218 = arith.truncf %176 : vector<8x8xf32> to vector<8x8xbf16>
    %219 = arith.truncf %177 : vector<10x8xf32> to vector<10x8xbf16>
    %cst_57 = arith.constant dense<0.000000e+00> : vector<8x10xf32>
    %220 = tpu.matmul %218, %219, %cst_57 {dimension_numbers = #tpu.dot_dimension_numbers<[1], [1], [0], [0], [0, 0, 1, 0], [], []>} : vector<8x8xbf16>, vector<10x8xbf16>, vector<8x10xf32> -> vector<8x10xf32>
    %221 = arith.truncf %176 : vector<8x8xf32> to vector<8x8xbf16>
    %222 = arith.truncf %178 : vector<8x8xf32> to vector<8x8xbf16>
    %cst_58 = arith.constant dense<0.000000e+00> : vector<8x8xf32>
    %223 = tpu.matmul %221, %222, %cst_58 {dimension_numbers = #tpu.dot_dimension_numbers<[1], [1], [0], [0], [0, 0, 1, 0], [], []>} : vector<8x8xbf16>, vector<8x8xbf16>, vector<8x8xf32> -> vector<8x8xf32>
    %cst_59 = arith.constant dense<0xFF800000> : vector<8xf32>
    %224 = vector.multi_reduction <maximumf>, %220, %cst_59 [1] : vector<8x10xf32> to vector<8xf32>
    %225 = vector.shape_cast %224 : vector<8xf32> to vector<8x1xf32>
    %cst_60 = arith.constant dense<0xFF800000> : vector<8xf32>
    %226 = vector.multi_reduction <maximumf>, %223, %cst_60 [1] : vector<8x8xf32> to vector<8xf32>
    %227 = vector.shape_cast %226 : vector<8xf32> to vector<8x1xf32>
    %228 = arith.maximumf %225, %227 : vector<8x1xf32>
    %229 = vector.broadcast %228 : vector<8x1xf32> to vector<8x10xf32>
    %230 = arith.subf %220, %229 : vector<8x10xf32>
    %231 = math.exp %230 : vector<8x10xf32>
    %232 = vector.broadcast %228 : vector<8x1xf32> to vector<8x8xf32>
    %233 = arith.subf %223, %232 : vector<8x8xf32>
    %234 = math.exp %233 : vector<8x8xf32>
    %cst_61 = arith.constant dense<0.000000e+00> : vector<8xf32>
    %235 = vector.multi_reduction <add>, %231, %cst_61 [1] : vector<8x10xf32> to vector<8xf32>
    %236 = vector.shape_cast %235 : vector<8xf32> to vector<8x1xf32>
    %cst_62 = arith.constant dense<0.000000e+00> : vector<8xf32>
    %237 = vector.multi_reduction <add>, %234, %cst_62 [1] : vector<8x8xf32> to vector<8xf32>
    %238 = vector.shape_cast %237 : vector<8xf32> to vector<8x1xf32>
    %239 = arith.addf %236, %238 : vector<8x1xf32>
    %240 = tpu.reciprocal %239 {approx = true} : vector<8x1xf32> -> vector<8x1xf32>
    %241 = arith.truncf %231 : vector<8x10xf32> to vector<8x10xbf16>
    %242 = arith.truncf %179 : vector<10x8xf32> to vector<10x8xbf16>
    %cst_63 = arith.constant dense<0.000000e+00> : vector<8x8xf32>
    %243 = tpu.matmul %241, %242, %cst_63 {dimension_numbers = #tpu.dot_dimension_numbers<[1], [0], [0], [1], [0, 0, 1, 1], [], []>} : vector<8x10xbf16>, vector<10x8xbf16>, vector<8x8xf32> -> vector<8x8xf32>
    %244 = arith.truncf %234 : vector<8x8xf32> to vector<8x8xbf16>
    %245 = arith.truncf %180 : vector<8x8xf32> to vector<8x8xbf16>
    %cst_64 = arith.constant dense<0.000000e+00> : vector<8x8xf32>
    %246 = tpu.matmul %244, %245, %cst_64 {dimension_numbers = #tpu.dot_dimension_numbers<[1], [0], [0], [1], [0, 0, 1, 1], [], []>} : vector<8x8xbf16>, vector<8x8xbf16>, vector<8x8xf32> -> vector<8x8xf32>
    %247 = arith.addf %243, %246 : vector<8x8xf32>
    %248 = vector.broadcast %240 : vector<8x1xf32> to vector<8x8xf32>
    %249 = arith.mulf %247, %248 : vector<8x8xf32>
    %250 = arith.truncf %249 : vector<8x8xf32> to vector<8x8xbf16>
    %251 = arith.truncf %181 : vector<8x32xf32> to vector<8x32xbf16>
    %cst_65 = arith.constant dense<0.000000e+00> : vector<8x32xf32>
    %252 = tpu.matmul %250, %251, %cst_65 {dimension_numbers = #tpu.dot_dimension_numbers<[1], [0], [0], [1], [0, 0, 1, 1], [], []>} : vector<8x8xbf16>, vector<8x32xbf16>, vector<8x32xf32> -> vector<8x32xf32>
    %253 = arith.addf %174, %252 : vector<8x32xf32>
    %254 = vector.extract_strided_slice %8 {offsets = [0, 24], sizes = [10, 8], strides = [1, 1]} : vector<10x96xf32> to vector<10x8xf32>
    %255 = vector.extract_strided_slice %13 {offsets = [0, 24], sizes = [8, 8], strides = [1, 1]} : vector<8x96xf32> to vector<8x8xf32>
    %256 = vector.extract_strided_slice %8 {offsets = [0, 56], sizes = [10, 8], strides = [1, 1]} : vector<10x96xf32> to vector<10x8xf32>
    %257 = vector.extract_strided_slice %13 {offsets = [0, 56], sizes = [8, 8], strides = [1, 1]} : vector<8x96xf32> to vector<8x8xf32>
    %258 = vector.extract_strided_slice %8 {offsets = [0, 88], sizes = [10, 8], strides = [1, 1]} : vector<10x96xf32> to vector<10x8xf32>
    %259 = vector.extract_strided_slice %13 {offsets = [0, 88], sizes = [8, 8], strides = [1, 1]} : vector<8x96xf32> to vector<8x8xf32>
    %260 = vector.extract_strided_slice %14 {offsets = [24, 0], sizes = [8, 32], strides = [1, 1]} : vector<32x32xf32> to vector<8x32xf32>
    %261 = arith.truncf %254 : vector<10x8xf32> to vector<10x8xbf16>
    %262 = arith.truncf %256 : vector<10x8xf32> to vector<10x8xbf16>
    %cst_66 = arith.constant dense<0.000000e+00> : vector<10x10xf32>
    %263 = tpu.matmul %261, %262, %cst_66 {dimension_numbers = #tpu.dot_dimension_numbers<[1], [1], [0], [0], [0, 0, 1, 0], [], []>} : vector<10x8xbf16>, vector<10x8xbf16>, vector<10x10xf32> -> vector<10x10xf32>
    %264 = arith.truncf %254 : vector<10x8xf32> to vector<10x8xbf16>
    %265 = arith.truncf %257 : vector<8x8xf32> to vector<8x8xbf16>
    %cst_67 = arith.constant dense<0.000000e+00> : vector<10x8xf32>
    %266 = tpu.matmul %264, %265, %cst_67 {dimension_numbers = #tpu.dot_dimension_numbers<[1], [1], [0], [0], [0, 0, 1, 0], [], []>} : vector<10x8xbf16>, vector<8x8xbf16>, vector<10x8xf32> -> vector<10x8xf32>
    %cst_68 = arith.constant dense<0xFF800000> : vector<10xf32>
    %267 = vector.multi_reduction <maximumf>, %263, %cst_68 [1] : vector<10x10xf32> to vector<10xf32>
    %268 = vector.shape_cast %267 : vector<10xf32> to vector<10x1xf32>
    %cst_69 = arith.constant dense<0xFF800000> : vector<10xf32>
    %269 = vector.multi_reduction <maximumf>, %266, %cst_69 [1] : vector<10x8xf32> to vector<10xf32>
    %270 = vector.shape_cast %269 : vector<10xf32> to vector<10x1xf32>
    %271 = arith.maximumf %268, %270 : vector<10x1xf32>
    %272 = vector.broadcast %271 : vector<10x1xf32> to vector<10x10xf32>
    %273 = arith.subf %263, %272 : vector<10x10xf32>
    %274 = math.exp %273 : vector<10x10xf32>
    %275 = vector.broadcast %271 : vector<10x1xf32> to vector<10x8xf32>
    %276 = arith.subf %266, %275 : vector<10x8xf32>
    %277 = math.exp %276 : vector<10x8xf32>
    %cst_70 = arith.constant dense<0.000000e+00> : vector<10xf32>
    %278 = vector.multi_reduction <add>, %274, %cst_70 [1] : vector<10x10xf32> to vector<10xf32>
    %279 = vector.shape_cast %278 : vector<10xf32> to vector<10x1xf32>
    %cst_71 = arith.constant dense<0.000000e+00> : vector<10xf32>
    %280 = vector.multi_reduction <add>, %277, %cst_71 [1] : vector<10x8xf32> to vector<10xf32>
    %281 = vector.shape_cast %280 : vector<10xf32> to vector<10x1xf32>
    %282 = arith.addf %279, %281 : vector<10x1xf32>
    %283 = tpu.reciprocal %282 {approx = true} : vector<10x1xf32> -> vector<10x1xf32>
    %284 = arith.truncf %274 : vector<10x10xf32> to vector<10x10xbf16>
    %285 = arith.truncf %258 : vector<10x8xf32> to vector<10x8xbf16>
    %cst_72 = arith.constant dense<0.000000e+00> : vector<10x8xf32>
    %286 = tpu.matmul %284, %285, %cst_72 {dimension_numbers = #tpu.dot_dimension_numbers<[1], [0], [0], [1], [0, 0, 1, 1], [], []>} : vector<10x10xbf16>, vector<10x8xbf16>, vector<10x8xf32> -> vector<10x8xf32>
    %287 = arith.truncf %277 : vector<10x8xf32> to vector<10x8xbf16>
    %288 = arith.truncf %259 : vector<8x8xf32> to vector<8x8xbf16>
    %cst_73 = arith.constant dense<0.000000e+00> : vector<10x8xf32>
    %289 = tpu.matmul %287, %288, %cst_73 {dimension_numbers = #tpu.dot_dimension_numbers<[1], [0], [0], [1], [0, 0, 1, 1], [], []>} : vector<10x8xbf16>, vector<8x8xbf16>, vector<10x8xf32> -> vector<10x8xf32>
    %290 = arith.addf %286, %289 : vector<10x8xf32>
    %291 = vector.broadcast %283 : vector<10x1xf32> to vector<10x8xf32>
    %292 = arith.mulf %290, %291 : vector<10x8xf32>
    %293 = arith.truncf %292 : vector<10x8xf32> to vector<10x8xbf16>
    %294 = arith.truncf %260 : vector<8x32xf32> to vector<8x32xbf16>
    %cst_74 = arith.constant dense<0.000000e+00> : vector<10x32xf32>
    %295 = tpu.matmul %293, %294, %cst_74 {dimension_numbers = #tpu.dot_dimension_numbers<[1], [0], [0], [1], [0, 0, 1, 1], [], []>} : vector<10x8xbf16>, vector<8x32xbf16>, vector<10x32xf32> -> vector<10x32xf32>
    %296 = arith.addf %217, %295 : vector<10x32xf32>
    %297 = arith.truncf %255 : vector<8x8xf32> to vector<8x8xbf16>
    %298 = arith.truncf %256 : vector<10x8xf32> to vector<10x8xbf16>
    %cst_75 = arith.constant dense<0.000000e+00> : vector<8x10xf32>
    %299 = tpu.matmul %297, %298, %cst_75 {dimension_numbers = #tpu.dot_dimension_numbers<[1], [1], [0], [0], [0, 0, 1, 0], [], []>} : vector<8x8xbf16>, vector<10x8xbf16>, vector<8x10xf32> -> vector<8x10xf32>
    %300 = arith.truncf %255 : vector<8x8xf32> to vector<8x8xbf16>
    %301 = arith.truncf %257 : vector<8x8xf32> to vector<8x8xbf16>
    %cst_76 = arith.constant dense<0.000000e+00> : vector<8x8xf32>
    %302 = tpu.matmul %300, %301, %cst_76 {dimension_numbers = #tpu.dot_dimension_numbers<[1], [1], [0], [0], [0, 0, 1, 0], [], []>} : vector<8x8xbf16>, vector<8x8xbf16>, vector<8x8xf32> -> vector<8x8xf32>
    %cst_77 = arith.constant dense<0xFF800000> : vector<8xf32>
    %303 = vector.multi_reduction <maximumf>, %299, %cst_77 [1] : vector<8x10xf32> to vector<8xf32>
    %304 = vector.shape_cast %303 : vector<8xf32> to vector<8x1xf32>
    %cst_78 = arith.constant dense<0xFF800000> : vector<8xf32>
    %305 = vector.multi_reduction <maximumf>, %302, %cst_78 [1] : vector<8x8xf32> to vector<8xf32>
    %306 = vector.shape_cast %305 : vector<8xf32> to vector<8x1xf32>
    %307 = arith.maximumf %304, %306 : vector<8x1xf32>
    %308 = vector.broadcast %307 : vector<8x1xf32> to vector<8x10xf32>
    %309 = arith.subf %299, %308 : vector<8x10xf32>
    %310 = math.exp %309 : vector<8x10xf32>
    %311 = vector.broadcast %307 : vector<8x1xf32> to vector<8x8xf32>
    %312 = arith.subf %302, %311 : vector<8x8xf32>
    %313 = math.exp %312 : vector<8x8xf32>
    %cst_79 = arith.constant dense<0.000000e+00> : vector<8xf32>
    %314 = vector.multi_reduction <add>, %310, %cst_79 [1] : vector<8x10xf32> to vector<8xf32>
    %315 = vector.shape_cast %314 : vector<8xf32> to vector<8x1xf32>
    %cst_80 = arith.constant dense<0.000000e+00> : vector<8xf32>
    %316 = vector.multi_reduction <add>, %313, %cst_80 [1] : vector<8x8xf32> to vector<8xf32>
    %317 = vector.shape_cast %316 : vector<8xf32> to vector<8x1xf32>
    %318 = arith.addf %315, %317 : vector<8x1xf32>
    %319 = tpu.reciprocal %318 {approx = true} : vector<8x1xf32> -> vector<8x1xf32>
    %320 = arith.truncf %310 : vector<8x10xf32> to vector<8x10xbf16>
    %321 = arith.truncf %258 : vector<10x8xf32> to vector<10x8xbf16>
    %cst_81 = arith.constant dense<0.000000e+00> : vector<8x8xf32>
    %322 = tpu.matmul %320, %321, %cst_81 {dimension_numbers = #tpu.dot_dimension_numbers<[1], [0], [0], [1], [0, 0, 1, 1], [], []>} : vector<8x10xbf16>, vector<10x8xbf16>, vector<8x8xf32> -> vector<8x8xf32>
    %323 = arith.truncf %313 : vector<8x8xf32> to vector<8x8xbf16>
    %324 = arith.truncf %259 : vector<8x8xf32> to vector<8x8xbf16>
    %cst_82 = arith.constant dense<0.000000e+00> : vector<8x8xf32>
    %325 = tpu.matmul %323, %324, %cst_82 {dimension_numbers = #tpu.dot_dimension_numbers<[1], [0], [0], [1], [0, 0, 1, 1], [], []>} : vector<8x8xbf16>, vector<8x8xbf16>, vector<8x8xf32> -> vector<8x8xf32>
    %326 = arith.addf %322, %325 : vector<8x8xf32>
    %327 = vector.broadcast %319 : vector<8x1xf32> to vector<8x8xf32>
    %328 = arith.mulf %326, %327 : vector<8x8xf32>
    %329 = arith.truncf %328 : vector<8x8xf32> to vector<8x8xbf16>
    %330 = arith.truncf %260 : vector<8x32xf32> to vector<8x32xbf16>
    %cst_83 = arith.constant dense<0.000000e+00> : vector<8x32xf32>
    %331 = tpu.matmul %329, %330, %cst_83 {dimension_numbers = #tpu.dot_dimension_numbers<[1], [0], [0], [1], [0, 0, 1, 1], [], []>} : vector<8x8xbf16>, vector<8x32xbf16>, vector<8x32xf32> -> vector<8x32xf32>
    %332 = arith.addf %253, %331 : vector<8x32xf32>
    %c0_84 = arith.constant 0 : index
    %c0_85 = arith.constant 0 : index
    %333 = vector.load %arg5[%c0_84, %c0_85] : memref<1x32xf32, #tpu.memory_space<vmem>>, vector<1x32xf32>
    %334 = vector.broadcast %333 : vector<1x32xf32> to vector<10x32xf32>
    %335 = arith.addf %296, %334 : vector<10x32xf32>
    %c0_86 = arith.constant 0 : index
    %c0_87 = arith.constant 0 : index
    %336 = vector.load %arg5[%c0_86, %c0_87] : memref<1x32xf32, #tpu.memory_space<vmem>>, vector<1x32xf32>
    %337 = vector.broadcast %336 : vector<1x32xf32> to vector<8x32xf32>
    %338 = arith.addf %332, %337 : vector<8x32xf32>
    %c0_88 = arith.constant 0 : index
    %c0_89 = arith.constant 0 : index
    %339 = vector.load %arg14[%c0_88, %c0_89] : memref<1x32xf32, #tpu.memory_space<vmem>>, vector<1x32xf32>
    %c0_90 = arith.constant 0 : index
    %c0_91 = arith.constant 0 : index
    %340 = vector.load %arg15[%c0_90, %c0_91] : memref<1x32xf32, #tpu.memory_space<vmem>>, vector<1x32xf32>
    %c0_92 = arith.constant 0 : index
    %c0_93 = arith.constant 0 : index
    %341 = vector.load %arg16[%c0_92, %c0_93] : memref<1x32xf32, #tpu.memory_space<vmem>>, vector<1x32xf32>
    %c0_94 = arith.constant 0 : index
    %c0_95 = arith.constant 0 : index
    %342 = vector.load %arg17[%c0_94, %c0_95] : memref<1x32xf32, #tpu.memory_space<vmem>>, vector<1x32xf32>
    %cst_96 = arith.constant dense<0.000000e+00> : vector<10xf32>
    %343 = vector.multi_reduction <add>, %335, %cst_96 [1] : vector<10x32xf32> to vector<10xf32>
    %344 = vector.shape_cast %343 : vector<10xf32> to vector<10x1xf32>
    %cst_97 = arith.constant 3.200000e+01 : f32
    %345 = vector.broadcast %cst_97 : f32 to vector<10x1xf32>
    %346 = arith.divf %344, %345 : vector<10x1xf32>
    %347 = vector.broadcast %346 : vector<10x1xf32> to vector<10x32xf32>
    %348 = arith.subf %335, %347 : vector<10x32xf32>
    %349 = arith.mulf %348, %348 : vector<10x32xf32>
    %cst_98 = arith.constant dense<0.000000e+00> : vector<10xf32>
    %350 = vector.multi_reduction <add>, %349, %cst_98 [1] : vector<10x32xf32> to vector<10xf32>
    %351 = vector.shape_cast %350 : vector<10xf32> to vector<10x1xf32>
    %cst_99 = arith.constant 3.200000e+01 : f32
    %352 = vector.broadcast %cst_99 : f32 to vector<10x1xf32>
    %353 = arith.divf %351, %352 : vector<10x1xf32>
    %cst_100 = arith.constant 9.99999974E-6 : f32
    %354 = vector.broadcast %cst_100 : f32 to vector<10x1xf32>
    %355 = arith.addf %353, %354 : vector<10x1xf32>
    %356 = math.rsqrt %355 : vector<10x1xf32>
    %357 = vector.broadcast %356 : vector<10x1xf32> to vector<10x32xf32>
    %358 = arith.mulf %348, %357 : vector<10x32xf32>
    %359 = vector.broadcast %339 : vector<1x32xf32> to vector<10x32xf32>
    %360 = arith.mulf %358, %359 : vector<10x32xf32>
    %361 = vector.broadcast %340 : vector<1x32xf32> to vector<10x32xf32>
    %362 = arith.addf %360, %361 : vector<10x32xf32>
    %363 = arith.addf %0, %362 : vector<10x32xf32>
    %cst_101 = arith.constant dense<0.000000e+00> : vector<10xf32>
    %364 = vector.multi_reduction <add>, %363, %cst_101 [1] : vector<10x32xf32> to vector<10xf32>
    %365 = vector.shape_cast %364 : vector<10xf32> to vector<10x1xf32>
    %cst_102 = arith.constant 3.200000e+01 : f32
    %366 = vector.broadcast %cst_102 : f32 to vector<10x1xf32>
    %367 = arith.divf %365, %366 : vector<10x1xf32>
    %368 = vector.broadcast %367 : vector<10x1xf32> to vector<10x32xf32>
    %369 = arith.subf %363, %368 : vector<10x32xf32>
    %370 = arith.mulf %369, %369 : vector<10x32xf32>
    %cst_103 = arith.constant dense<0.000000e+00> : vector<10xf32>
    %371 = vector.multi_reduction <add>, %370, %cst_103 [1] : vector<10x32xf32> to vector<10xf32>
    %372 = vector.shape_cast %371 : vector<10xf32> to vector<10x1xf32>
    %cst_104 = arith.constant 3.200000e+01 : f32
    %373 = vector.broadcast %cst_104 : f32 to vector<10x1xf32>
    %374 = arith.divf %372, %373 : vector<10x1xf32>
    %cst_105 = arith.constant 9.99999974E-6 : f32
    %375 = vector.broadcast %cst_105 : f32 to vector<10x1xf32>
    %376 = arith.addf %374, %375 : vector<10x1xf32>
    %377 = math.rsqrt %376 : vector<10x1xf32>
    %378 = vector.broadcast %377 : vector<10x1xf32> to vector<10x32xf32>
    %379 = arith.mulf %369, %378 : vector<10x32xf32>
    %380 = vector.broadcast %341 : vector<1x32xf32> to vector<10x32xf32>
    %381 = arith.mulf %379, %380 : vector<10x32xf32>
    %382 = vector.broadcast %342 : vector<1x32xf32> to vector<10x32xf32>
    %383 = arith.addf %381, %382 : vector<10x32xf32>
    %cst_106 = arith.constant dense<0.000000e+00> : vector<8xf32>
    %384 = vector.multi_reduction <add>, %338, %cst_106 [1] : vector<8x32xf32> to vector<8xf32>
    %385 = vector.shape_cast %384 : vector<8xf32> to vector<8x1xf32>
    %cst_107 = arith.constant 3.200000e+01 : f32
    %386 = vector.broadcast %cst_107 : f32 to vector<8x1xf32>
    %387 = arith.divf %385, %386 : vector<8x1xf32>
    %388 = vector.broadcast %387 : vector<8x1xf32> to vector<8x32xf32>
    %389 = arith.subf %338, %388 : vector<8x32xf32>
    %390 = arith.mulf %389, %389 : vector<8x32xf32>
    %cst_108 = arith.constant dense<0.000000e+00> : vector<8xf32>
    %391 = vector.multi_reduction <add>, %390, %cst_108 [1] : vector<8x32xf32> to vector<8xf32>
    %392 = vector.shape_cast %391 : vector<8xf32> to vector<8x1xf32>
    %cst_109 = arith.constant 3.200000e+01 : f32
    %393 = vector.broadcast %cst_109 : f32 to vector<8x1xf32>
    %394 = arith.divf %392, %393 : vector<8x1xf32>
    %cst_110 = arith.constant 9.99999974E-6 : f32
    %395 = vector.broadcast %cst_110 : f32 to vector<8x1xf32>
    %396 = arith.addf %394, %395 : vector<8x1xf32>
    %397 = math.rsqrt %396 : vector<8x1xf32>
    %398 = vector.broadcast %397 : vector<8x1xf32> to vector<8x32xf32>
    %399 = arith.mulf %389, %398 : vector<8x32xf32>
    %400 = vector.broadcast %339 : vector<1x32xf32> to vector<8x32xf32>
    %401 = arith.mulf %399, %400 : vector<8x32xf32>
    %402 = vector.broadcast %340 : vector<1x32xf32> to vector<8x32xf32>
    %403 = arith.addf %401, %402 : vector<8x32xf32>
    %404 = arith.addf %1, %403 : vector<8x32xf32>
    %cst_111 = arith.constant dense<0.000000e+00> : vector<8xf32>
    %405 = vector.multi_reduction <add>, %404, %cst_111 [1] : vector<8x32xf32> to vector<8xf32>
    %406 = vector.shape_cast %405 : vector<8xf32> to vector<8x1xf32>
    %cst_112 = arith.constant 3.200000e+01 : f32
    %407 = vector.broadcast %cst_112 : f32 to vector<8x1xf32>
    %408 = arith.divf %406, %407 : vector<8x1xf32>
    %409 = vector.broadcast %408 : vector<8x1xf32> to vector<8x32xf32>
    %410 = arith.subf %404, %409 : vector<8x32xf32>
    %411 = arith.mulf %410, %410 : vector<8x32xf32>
    %cst_113 = arith.constant dense<0.000000e+00> : vector<8xf32>
    %412 = vector.multi_reduction <add>, %411, %cst_113 [1] : vector<8x32xf32> to vector<8xf32>
    %413 = vector.shape_cast %412 : vector<8xf32> to vector<8x1xf32>
    %cst_114 = arith.constant 3.200000e+01 : f32
    %414 = vector.broadcast %cst_114 : f32 to vector<8x1xf32>
    %415 = arith.divf %413, %414 : vector<8x1xf32>
    %cst_115 = arith.constant 9.99999974E-6 : f32
    %416 = vector.broadcast %cst_115 : f32 to vector<8x1xf32>
    %417 = arith.addf %415, %416 : vector<8x1xf32>
    %418 = math.rsqrt %417 : vector<8x1xf32>
    %419 = vector.broadcast %418 : vector<8x1xf32> to vector<8x32xf32>
    %420 = arith.mulf %410, %419 : vector<8x32xf32>
    %421 = vector.broadcast %341 : vector<1x32xf32> to vector<8x32xf32>
    %422 = arith.mulf %420, %421 : vector<8x32xf32>
    %423 = vector.broadcast %342 : vector<1x32xf32> to vector<8x32xf32>
    %424 = arith.addf %422, %423 : vector<8x32xf32>
    %c0_116 = arith.constant 0 : index
    %c0_117 = arith.constant 0 : index
    %425 = vector.load %arg20[%c0_116, %c0_117] : memref<8x32xf32, #tpu.memory_space<vmem>>, vector<8x32xf32>
    tpu.vector_store %arg20[%c0_116, %c0_117], %424 {strides = array<i32>} : memref<8x32xf32, #tpu.memory_space<vmem>>, vector<8x32xf32>,
    %c0_118 = arith.constant 0 : index
    %c0_119 = arith.constant 0 : index
    %426 = vector.load %arg6[%c0_118, %c0_119] : memref<32x64xf32, #tpu.memory_space<vmem>>, vector<32x64xf32>
    %427 = arith.truncf %383 : vector<10x32xf32> to vector<10x32xbf16>
    %428 = arith.truncf %426 : vector<32x64xf32> to vector<32x64xbf16>
    %cst_120 = arith.constant dense<0.000000e+00> : vector<10x64xf32>
    %429 = tpu.matmul %427, %428, %cst_120 {dimension_numbers = #tpu.dot_dimension_numbers<[1], [0], [0], [1], [0, 0, 1, 1], [], []>} : vector<10x32xbf16>, vector<32x64xbf16>, vector<10x64xf32> -> vector<10x64xf32>
    %c0_121 = arith.constant 0 : index
    %c0_122 = arith.constant 0 : index
    %430 = vector.load %arg7[%c0_121, %c0_122] : memref<1x64xf32, #tpu.memory_space<vmem>>, vector<1x64xf32>
    %431 = vector.broadcast %430 : vector<1x64xf32> to vector<10x64xf32>
    %432 = arith.addf %429, %431 : vector<10x64xf32>
    %cst_123 = arith.constant 0.000000e+00 : f32
    %433 = vector.broadcast %cst_123 : f32 to vector<10x64xf32>
    %434 = arith.maximumf %432, %433 : vector<10x64xf32>
    %c0_124 = arith.constant 0 : index
    %c0_125 = arith.constant 0 : index
    %435 = vector.load %arg8[%c0_124, %c0_125] : memref<64x32xf32, #tpu.memory_space<vmem>>, vector<64x32xf32>
    %436 = arith.truncf %434 : vector<10x64xf32> to vector<10x64xbf16>
    %437 = arith.truncf %435 : vector<64x32xf32> to vector<64x32xbf16>
    %cst_126 = arith.constant dense<0.000000e+00> : vector<10x32xf32>
    %438 = tpu.matmul %436, %437, %cst_126 {dimension_numbers = #tpu.dot_dimension_numbers<[1], [0], [0], [1], [0, 0, 1, 1], [], []>} : vector<10x64xbf16>, vector<64x32xbf16>, vector<10x32xf32> -> vector<10x32xf32>
    %439 = arith.addf %383, %438 : vector<10x32xf32>
    %c0_127 = arith.constant 0 : index
    %c0_128 = arith.constant 0 : index
    %440 = vector.load %arg9[%c0_127, %c0_128] : memref<1x32xf32, #tpu.memory_space<vmem>>, vector<1x32xf32>
    %441 = vector.broadcast %440 : vector<1x32xf32> to vector<10x32xf32>
    %442 = arith.addf %439, %441 : vector<10x32xf32>
    %c0_129 = arith.constant 0 : index
    %c0_130 = arith.constant 0 : index
    %443 = vector.load %arg18[%c0_129, %c0_130] : memref<1x32xf32, #tpu.memory_space<vmem>>, vector<1x32xf32>
    %c0_131 = arith.constant 0 : index
    %c0_132 = arith.constant 0 : index
    %444 = vector.load %arg19[%c0_131, %c0_132] : memref<1x32xf32, #tpu.memory_space<vmem>>, vector<1x32xf32>
    %cst_133 = arith.constant dense<0.000000e+00> : vector<10xf32>
    %445 = vector.multi_reduction <add>, %442, %cst_133 [1] : vector<10x32xf32> to vector<10xf32>
    %446 = vector.shape_cast %445 : vector<10xf32> to vector<10x1xf32>
    %cst_134 = arith.constant 3.200000e+01 : f32
    %447 = vector.broadcast %cst_134 : f32 to vector<10x1xf32>
    %448 = arith.divf %446, %447 : vector<10x1xf32>
    %449 = vector.broadcast %448 : vector<10x1xf32> to vector<10x32xf32>
    %450 = arith.subf %442, %449 : vector<10x32xf32>
    %451 = arith.mulf %450, %450 : vector<10x32xf32>
    %cst_135 = arith.constant dense<0.000000e+00> : vector<10xf32>
    %452 = vector.multi_reduction <add>, %451, %cst_135 [1] : vector<10x32xf32> to vector<10xf32>
    %453 = vector.shape_cast %452 : vector<10xf32> to vector<10x1xf32>
    %cst_136 = arith.constant 3.200000e+01 : f32
    %454 = vector.broadcast %cst_136 : f32 to vector<10x1xf32>
    %455 = arith.divf %453, %454 : vector<10x1xf32>
    %cst_137 = arith.constant 9.99999974E-6 : f32
    %456 = vector.broadcast %cst_137 : f32 to vector<10x1xf32>
    %457 = arith.addf %455, %456 : vector<10x1xf32>
    %458 = math.rsqrt %457 : vector<10x1xf32>
    %459 = vector.broadcast %458 : vector<10x1xf32> to vector<10x32xf32>
    %460 = arith.mulf %450, %459 : vector<10x32xf32>
    %461 = vector.broadcast %443 : vector<1x32xf32> to vector<10x32xf32>
    %462 = arith.mulf %460, %461 : vector<10x32xf32>
    %463 = vector.broadcast %444 : vector<1x32xf32> to vector<10x32xf32>
    %464 = arith.addf %462, %463 : vector<10x32xf32>
    %c0_138 = arith.constant 0 : index
    %c0_139 = arith.constant 0 : index
    %465 = vector.load %arg10[%c0_138, %c0_139] : memref<32x32xf32, #tpu.memory_space<vmem>>, vector<32x32xf32>
    %466 = arith.truncf %464 : vector<10x32xf32> to vector<10x32xbf16>
    %467 = arith.truncf %465 : vector<32x32xf32> to vector<32x32xbf16>
    %cst_140 = arith.constant dense<0.000000e+00> : vector<10x32xf32>
    %468 = tpu.matmul %466, %467, %cst_140 {dimension_numbers = #tpu.dot_dimension_numbers<[1], [0], [0], [1], [0, 0, 1, 1], [], []>} : vector<10x32xbf16>, vector<32x32xbf16>, vector<10x32xf32> -> vector<10x32xf32>
    %c0_141 = arith.constant 0 : index
    %c0_142 = arith.constant 0 : index
    %469 = vector.load %arg11[%c0_141, %c0_142] : memref<1x32xf32, #tpu.memory_space<vmem>>, vector<1x32xf32>
    %470 = vector.broadcast %469 : vector<1x32xf32> to vector<10x32xf32>
    %471 = arith.addf %468, %470 : vector<10x32xf32>
    %472 = vector.extract_strided_slice %471 {offsets = [0, 0], sizes = [10, 16], strides = [1, 1]} : vector<10x32xf32> to vector<10x16xf32>
    %473 = vector.extract_strided_slice %471 {offsets = [0, 16], sizes = [10, 16], strides = [1, 1]} : vector<10x32xf32> to vector<10x16xf32>
    %c0_143 = arith.constant 0 : index
    %c0_144 = arith.constant 0 : index
    %474 = vector.load %arg12[%c0_143, %c0_144] : memref<40x10xf32, #tpu.memory_space<vmem>>, vector<40x10xf32>
    %c0_145 = arith.constant 0 : index
    %c0_146 = arith.constant 0 : index
    %475 = vector.load %arg13[%c0_145, %c0_146] : memref<40x16xf32, #tpu.memory_space<vmem>>, vector<40x16xf32>
    %476 = arith.truncf %474 : vector<40x10xf32> to vector<40x10xbf16>
    %477 = arith.truncf %472 : vector<10x16xf32> to vector<10x16xbf16>
    %cst_147 = arith.constant dense<0.000000e+00> : vector<40x16xf32>
    %478 = tpu.matmul %476, %477, %cst_147 {dimension_numbers = #tpu.dot_dimension_numbers<[1], [0], [0], [1], [0, 0, 1, 1], [], []>} : vector<40x10xbf16>, vector<10x16xbf16>, vector<40x16xf32> -> vector<40x16xf32>
    %479 = arith.mulf %478, %475 : vector<40x16xf32>
    %c0_148 = arith.constant 0 : index
    %c0_149 = arith.constant 0 : index
    %480 = vector.load %arg21[%c0_148, %c0_149] : memref<40x16xf32, #tpu.memory_space<vmem>>, vector<40x16xf32>
    tpu.vector_store %arg21[%c0_148, %c0_149], %479 {strides = array<i32>} : memref<40x16xf32, #tpu.memory_space<vmem>>, vector<40x16xf32>,
    %481 = arith.truncf %474 : vector<40x10xf32> to vector<40x10xbf16>
    %482 = arith.truncf %473 : vector<10x16xf32> to vector<10x16xbf16>
    %cst_150 = arith.constant dense<0.000000e+00> : vector<40x16xf32>
    %483 = tpu.matmul %481, %482, %cst_150 {dimension_numbers = #tpu.dot_dimension_numbers<[1], [0], [0], [1], [0, 0, 1, 1], [], []>} : vector<40x10xbf16>, vector<10x16xbf16>, vector<40x16xf32> -> vector<40x16xf32>
    %484 = arith.mulf %483, %475 : vector<40x16xf32>
    %c0_151 = arith.constant 0 : index
    %c0_152 = arith.constant 0 : index
    %485 = vector.load %arg22[%c0_151, %c0_152] : memref<40x16xf32, #tpu.memory_space<vmem>>, vector<40x16xf32>
    tpu.vector_store %arg22[%c0_151, %c0_152], %484 {strides = array<i32>} : memref<40x16xf32, #tpu.memory_space<vmem>>, vector<40x16xf32>,
    return
  }
}

</mosaic_0001>

<llo_original>
// kernel: tpu_custom_call.1
$region0: #{tpu_custom_call.1}
  #allocation0 [shape = 'u32[]', space=smem, size = 0x4, offset = 0x4, fixed_abs, tag = 'smem constant byte address 0x4 - core index']
  #allocation1 [shape = 'u32[144,128]{1,0:T(1,128)}', space=vmem, size = 0x12000, scoped, tag = 'internal scratch']
  %s0 = inlined_call_operand.vmem [shape: f32[10,32], index: 0, kind: input, shape index: {}]
  %s1 = inlined_call_operand.vmem [shape: f32[8,32], index: 1, kind: input, shape index: {}]
  %s2 = inlined_call_operand.vmem [shape: f32[32,96], index: 2, kind: input, shape index: {}]
  %s3 = inlined_call_operand.vmem [shape: f32[1,96], index: 3, kind: input, shape index: {}]
  %s4 = inlined_call_operand.vmem [shape: f32[32,32], index: 4, kind: input, shape index: {}]
  %s5 = inlined_call_operand.vmem [shape: f32[1,32], index: 5, kind: input, shape index: {}]
  %s6 = inlined_call_operand.vmem [shape: f32[32,64], index: 6, kind: input, shape index: {}]
  %s7 = inlined_call_operand.vmem [shape: f32[1,64], index: 7, kind: input, shape index: {}]
  %s8 = inlined_call_operand.vmem [shape: f32[64,32], index: 8, kind: input, shape index: {}]
  %s9 = inlined_call_operand.vmem [shape: f32[1,32], index: 9, kind: input, shape index: {}]
  %s10 = inlined_call_operand.vmem [shape: f32[32,32], index: 10, kind: input, shape index: {}]
  %s11 = inlined_call_operand.vmem [shape: f32[1,32], index: 11, kind: input, shape index: {}]
  %s12 = inlined_call_operand.vmem [shape: f32[40,10], index: 12, kind: input, shape index: {}]
  %s13 = inlined_call_operand.vmem [shape: f32[40,16], index: 13, kind: input, shape index: {}]
  %s14 = inlined_call_operand.vmem [shape: f32[1,32], index: 14, kind: input, shape index: {}]
  %s15 = inlined_call_operand.vmem [shape: f32[1,32], index: 15, kind: input, shape index: {}]
  %s16 = inlined_call_operand.vmem [shape: f32[1,32], index: 16, kind: input, shape index: {}]
  %s17 = inlined_call_operand.vmem [shape: f32[1,32], index: 17, kind: input, shape index: {}]
  %s18 = inlined_call_operand.vmem [shape: f32[1,32], index: 18, kind: input, shape index: {}]
  %s19 = inlined_call_operand.vmem [shape: f32[1,32], index: 19, kind: input, shape index: {}]
  %s20 = inlined_call_operand.hbm [shape: f32[8,32], index: 20, kind: output, shape index: {0}]
  %s21 = inlined_call_operand.vmem [shape: f32[40,16], index: 21, kind: output, shape index: {1}]
  %s22 = inlined_call_operand.vmem [shape: f32[40,16], index: 22, kind: output, shape index: {2}]
  %23 = xla_tuple %s20, %s21, %s22
  %s24 = sld [smem:[#allocation0]]
  $region106: #{tpu_custom_call.1} parent=0
    _
  %s26 = ssub.s32 1, %s24
  %s27 = scalar_select 0, %s26, %s24
  $region1: #{tpu_custom_call.1} parent=0
    #allocation2 [shape = 'u8[4096]{0}', space=vmem, size = 0x1000, scoped, tag = 'output window, operand 0, single buffered']
    #allocation3 [shape = 's32[1]{0}', space=sflag, size = 0x4, scoped, tag = 'scoped memory for tpu_custom_call.1']
    %28 = vsyncpa [#allocation3], 0
    // Predicated region
    $region2: #{tpu_custom_call.1} parent=1 // pred_check
      _
    $region3: #{tpu_custom_call.1} parent=1 // pred_check_branch
      %30 = sbr.rel (0) target = $region5
    $region4: #{tpu_custom_call.1} parent=1 // pred_region
      _
    $region5: #{tpu_custom_call.1} parent=1 // pred_fallthru
      _
    // Predicated region
    $region6: #{tpu_custom_call.1} parent=1 // pred_check
      _
    $region7: #{tpu_custom_call.1} parent=1 // pred_check_branch
      %32 = sbr.rel (0) target = $region9
    $region8: #{tpu_custom_call.1} parent=1 // pred_region
      _
    $region9: #{tpu_custom_call.1} parent=1 // pred_fallthru
      _
    // Predicated region
    $region10: #{tpu_custom_call.1} parent=1 // pred_check
      _
    $region11: #{tpu_custom_call.1} parent=1 // pred_check_branch
      %34 = sbr.rel (0) target = $region13
    $region12: #{tpu_custom_call.1} parent=1 // pred_region
      _
    $region13: #{tpu_custom_call.1} parent=1 // pred_fallthru
      _
    // Predicated region
    $region14: #{tpu_custom_call.1} parent=1 // pred_check
      _
    $region15: #{tpu_custom_call.1} parent=1 // pred_check_branch
      %36 = sbr.rel (0) target = $region17
    $region16: #{tpu_custom_call.1} parent=1 // pred_region
      _
    $region17: #{tpu_custom_call.1} parent=1 // pred_fallthru
      _
    // Predicated region
    $region18: #{tpu_custom_call.1} parent=1 // pred_check
      _
    $region19: #{tpu_custom_call.1} parent=1 // pred_check_branch
      %38 = sbr.rel (0) target = $region21
    $region20: #{tpu_custom_call.1} parent=1 // pred_region
      _
    $region21: #{tpu_custom_call.1} parent=1 // pred_fallthru
      _
    // Predicated region
    $region22: #{tpu_custom_call.1} parent=1 // pred_check
      _
    $region23: #{tpu_custom_call.1} parent=1 // pred_check_branch
      %40 = sbr.rel (0) target = $region25
    $region24: #{tpu_custom_call.1} parent=1 // pred_region
      _
    $region25: #{tpu_custom_call.1} parent=1 // pred_fallthru
      _
    // Predicated region
    $region26: #{tpu_custom_call.1} parent=1 // pred_check
      _
    $region27: #{tpu_custom_call.1} parent=1 // pred_check_branch
      %42 = sbr.rel (0) target = $region29
    $region28: #{tpu_custom_call.1} parent=1 // pred_region
      _
    $region29: #{tpu_custom_call.1} parent=1 // pred_fallthru
      _
    // Predicated region
    $region30: #{tpu_custom_call.1} parent=1 // pred_check
      _
    $region31: #{tpu_custom_call.1} parent=1 // pred_check_branch
      %44 = sbr.rel (0) target = $region33
    $region32: #{tpu_custom_call.1} parent=1 // pred_region
      _
    $region33: #{tpu_custom_call.1} parent=1 // pred_fallthru
      _
    // Predicated region
    $region34: #{tpu_custom_call.1} parent=1 // pred_check
      _
    $region35: #{tpu_custom_call.1} parent=1 // pred_check_branch
      %46 = sbr.rel (0) target = $region37
    $region36: #{tpu_custom_call.1} parent=1 // pred_region
      _
    $region37: #{tpu_custom_call.1} parent=1 // pred_fallthru
      _
    // Predicated region
    $region38: #{tpu_custom_call.1} parent=1 // pred_check
      _
    $region39: #{tpu_custom_call.1} parent=1 // pred_check_branch
      %48 = sbr.rel (0) target = $region41
    $region40: #{tpu_custom_call.1} parent=1 // pred_region
      _
    $region41: #{tpu_custom_call.1} parent=1 // pred_fallthru
      _
    // Predicated region
    $region42: #{tpu_custom_call.1} parent=1 // pred_check
      _
    $region43: #{tpu_custom_call.1} parent=1 // pred_check_branch
      %50 = sbr.rel (0) target = $region45
    $region44: #{tpu_custom_call.1} parent=1 // pred_region
      _
    $region45: #{tpu_custom_call.1} parent=1 // pred_fallthru
      _
    // Predicated region
    $region46: #{tpu_custom_call.1} parent=1 // pred_check
      _
    $region47: #{tpu_custom_call.1} parent=1 // pred_check_branch
      %52 = sbr.rel (0) target = $region49
    $region48: #{tpu_custom_call.1} parent=1 // pred_region
      _
    $region49: #{tpu_custom_call.1} parent=1 // pred_fallthru
      _
    // Predicated region
    $region50: #{tpu_custom_call.1} parent=1 // pred_check
      _
    $region51: #{tpu_custom_call.1} parent=1 // pred_check_branch
      %54 = sbr.rel (0) target = $region53
    $region52: #{tpu_custom_call.1} parent=1 // pred_region
      _
    $region53: #{tpu_custom_call.1} parent=1 // pred_fallthru
      _
    // Predicated region
    $region54: #{tpu_custom_call.1} parent=1 // pred_check
      _
    $region55: #{tpu_custom_call.1} parent=1 // pred_check_branch
      %56 = sbr.rel (0) target = $region57
    $region56: #{tpu_custom_call.1} parent=1 // pred_region
      _
    $region57: #{tpu_custom_call.1} parent=1 // pred_fallthru
      _
    // Predicated region
    $region58: #{tpu_custom_call.1} parent=1 // pred_check
      _
    $region59: #{tpu_custom_call.1} parent=1 // pred_check_branch
      %58 = sbr.rel (0) target = $region61
    $region60: #{tpu_custom_call.1} parent=1 // pred_region
      _
    $region61: #{tpu_custom_call.1} parent=1 // pred_fallthru
      _
    // Predicated region
    $region62: #{tpu_custom_call.1} parent=1 // pred_check
      _
    $region63: #{tpu_custom_call.1} parent=1 // pred_check_branch
      %60 = sbr.rel (0) target = $region65
    $region64: #{tpu_custom_call.1} parent=1 // pred_region
      _
    $region65: #{tpu_custom_call.1} parent=1 // pred_fallthru
      _
    // Predicated region
    $region66: #{tpu_custom_call.1} parent=1 // pred_check
      _
    $region67: #{tpu_custom_call.1} parent=1 // pred_check_branch
      %62 = sbr.rel (0) target = $region69
    $region68: #{tpu_custom_call.1} parent=1 // pred_region
      _
    $region69: #{tpu_custom_call.1} parent=1 // pred_fallthru
      _
    // Predicated region
    $region70: #{tpu_custom_call.1} parent=1 // pred_check
      _
    $region71: #{tpu_custom_call.1} parent=1 // pred_check_branch
      %64 = sbr.rel (0) target = $region73
    $region72: #{tpu_custom_call.1} parent=1 // pred_region
      _
    $region73: #{tpu_custom_call.1} parent=1 // pred_fallthru
      _
    // Predicated region
    $region74: #{tpu_custom_call.1} parent=1 // pred_check
      _
    $region75: #{tpu_custom_call.1} parent=1 // pred_check_branch
      %66 = sbr.rel (0) target = $region77
    $region76: #{tpu_custom_call.1} parent=1 // pred_region
      _
    $region77: #{tpu_custom_call.1} parent=1 // pred_fallthru
      _
    // Predicated region
    $region78: #{tpu_custom_call.1} parent=1 // pred_check
      _
    $region79: #{tpu_custom_call.1} parent=1 // pred_check_branch
      %68 = sbr.rel (0) target = $region81
    $region80: #{tpu_custom_call.1} parent=1 // pred_region
      _
    $region81: #{tpu_custom_call.1} parent=1 // pred_fallthru
      _
    %v70 = vld [vmem:[%s0] sm:$0xff]
    %v71 = vld [vmem:[%s0 + $0x8] sm:$0x3]
    %v72 = vld [vmem:[%s1] sm:$0xff]
    %v73 = vld [vmem:[%s2] sm:$0xff]
    %v74 = vld [vmem:[%s2 + $0x8] sm:$0xff]
    %v75 = vld [vmem:[%s2 + $0x10] sm:$0xff]
    %v76 = vld [vmem:[%s2 + $0x18] sm:$0xff]
    %v77 = vld [vmem:[%s3] sm:$0x1]
    %v78 = vpack.c.bf16 %v71, %v70
    %v79 = vpack.c.bf16 %v74, %v73
    %v80 = vpack.c.bf16 %v76, %v75
    %v82 = vlaneseq
    %v83 = vshrl.u32 %v82, 7
    %v84 = vsub.s32 0, %v83
    %v85 = vrot.slane %v77, %v84
    %vm87 = vcmask 261120
    %v89 = vsel %vm87, %v78, 0
    %91 = vmatprep.subr.bf16.mxu0 0
    %92 = vmatpush1.bf16.msra.mxu0 %v79
    %93 = vmatprep.subr.bf16.mxu0 0
    %94 = vmatpush1.bf16.msra.mxu0 %v80
    %95 = vmatprep.subr.bf16.mxu0 0
    %96 = vmatpush1.bf16.msra.mxu0 0
    %97 = vmatprep.subr.bf16.mxu0 0
    %98 = vmatpush1.bf16.msra.mxu0 0
    %99 = vmatprep.subr.bf16.mxu0 0
    %100 = vmatpush1.bf16.msra.mxu0 0
    %101 = vmatprep.subr.bf16.mxu0 0
    %102 = vmatpush1.bf16.msra.mxu0 0
    %103 = vmatprep.subr.bf16.mxu0 0
    %104 = vmatpush1.bf16.msra.mxu0 0
    %105 = vmatprep.subr.bf16.mxu0 0
    %106 = vmatpush1.bf16.msra.mxu0 0
    %107 = vmatprep.subr.bf16.mxu0 0
    %108 = vmatpush1.bf16.msra.mxu0 0
    %109 = vmatprep.subr.bf16.mxu0 0
    %110 = vmatpush1.bf16.msra.mxu0 0
    %111 = vmatprep.subr.bf16.mxu0 0
    %112 = vmatpush1.bf16.msra.mxu0 0
    %113 = vmatprep.subr.bf16.mxu0 0
    %114 = vmatpush1.bf16.msra.mxu0 0
    %115 = vmatprep.subr.bf16.mxu0 0
    %116 = vmatpush1.bf16.msra.mxu0 0
    %117 = vmatprep.subr.bf16.mxu0 0
    %118 = vmatpush1.bf16.msra.mxu0 0
    %119 = vmatprep.subr.bf16.mxu0 0
    %120 = vmatpush1.bf16.msra.mxu0 0
    %121 = vmatprep.subr.bf16.mxu0 0
    %122 = vmatpush1.bf16.msra.mxu0 0
    %123 = vmatprep.mubr.bf16.mxu0 0
    %124 = vmatmul.mubr.bf16.gmra.mrb[0].mxu0 %v89
    %v125 = vpop.f32.mrb[0].mxu0
    %v126 = vadd.f32 %v85, %v125
    %v127 = vpop.f32.mrb[0].mxu0
    %v128 = vpop.f32.mrb[0].mxu0
    %v129 = vadd.f32 %v85, %v128
    %v130 = vpop.f32.mrb[0].mxu0
    %131 = vdwg.mxu0
    %v132 = vpack.c.bf16 %v72, %v72
    %v134 = vsel %vm87, %v132, 0
    %136 = vmatprep.subr.bf16.mxu0 0
    %137 = vmatpush1.bf16.msra.mxu0 %v79
    %138 = vmatprep.subr.bf16.mxu0 0
    %139 = vmatpush1.bf16.msra.mxu0 %v80
    %140 = vmatprep.subr.bf16.mxu0 0
    %141 = vmatpush1.bf16.msra.mxu0 0
    %142 = vmatprep.subr.bf16.mxu0 0
    %143 = vmatpush1.bf16.msra.mxu0 0
    %144 = vmatprep.subr.bf16.mxu0 0
    %145 = vmatpush1.bf16.msra.mxu0 0
    %146 = vmatprep.subr.bf16.mxu0 0
    %147 = vmatpush1.bf16.msra.mxu0 0
    %148 = vmatprep.subr.bf16.mxu0 0
    %149 = vmatpush1.bf16.msra.mxu0 0
    %150 = vmatprep.subr.bf16.mxu0 0
    %151 = vmatpush1.bf16.msra.mxu0 0
    %152 = vmatprep.subr.bf16.mxu0 0
    %153 = vmatpush1.bf16.msra.mxu0 0
    %154 = vmatprep.subr.bf16.mxu0 0
    %155 = vmatpush1.bf16.msra.mxu0 0
    %156 = vmatprep.subr.bf16.mxu0 0
    %157 = vmatpush1.bf16.msra.mxu0 0
    %158 = vmatprep.subr.bf16.mxu0 0
    %159 = vmatpush1.bf16.msra.mxu0 0
    %160 = vmatprep.subr.bf16.mxu0 0
    %161 = vmatpush1.bf16.msra.mxu0 0
    %162 = vmatprep.subr.bf16.mxu0 0
    %163 = vmatpush1.bf16.msra.mxu0 0
    %164 = vmatprep.subr.bf16.mxu0 0
    %165 = vmatpush1.bf16.msra.mxu0 0
    %166 = vmatprep.subr.bf16.mxu0 0
    %167 = vmatpush1.bf16.msra.mxu0 0
    %168 = vmatprep.mubr.bf16.mxu0 0
    %169 = vmatmul.mubr.bf16.gmra.mrb[0].mxu0 %v134
    %v170 = vpop.f32.mrb[0].mxu0
    %v171 = vadd.f32 %v85, %v170
    %v172 = vpop.f32.mrb[0].mxu0
    %v173 = vpop.f32.mrb[0].mxu0
    %v174 = vpop.f32.mrb[0].mxu0
    %175 = vdwg.mxu0
    %v176 = vld [vmem:[%s4] sm:$0xff]
    %v177 = vld [vmem:[%s4 + $0x8] sm:$0xff]
    %v178 = vld [vmem:[%s4 + $0x10] sm:$0xff]
    %v179 = vld [vmem:[%s4 + $0x18] sm:$0xff]
    %v180 = vpack.c.bf16 %v129, %v126
    %182 = vrot.lane.b32.xlu0 %v180, 96
    %v183 = vpop.permute.xlu0 %182
    %vm184 = vcmask 64512
    %v186 = vsel %vm184, %v180, 0
    %v189 = vsel %vm184, %v183, 0
    %191 = vmatprep.subr.bf16.mxu0 0
    %192 = vmatpush1.bf16.xpose.msra.mxu0 %v189
    %193 = vmatprep.subr.bf16.mxu0 0
    %194 = vmatpush1.bf16.xpose.msra.mxu0 0
    %195 = vmatprep.subr.bf16.mxu0 0
    %196 = vmatpush1.bf16.xpose.msra.mxu0 0
    %197 = vmatprep.subr.bf16.mxu0 0
    %198 = vmatpush1.bf16.xpose.msra.mxu0 0
    %199 = vmatprep.subr.bf16.mxu0 0
    %200 = vmatpush1.bf16.xpose.msra.mxu0 0
    %201 = vmatprep.subr.bf16.mxu0 0
    %202 = vmatpush1.bf16.xpose.msra.mxu0 0
    %203 = vmatprep.subr.bf16.mxu0 0
    %204 = vmatpush1.bf16.xpose.msra.mxu0 0
    %205 = vmatprep.subr.bf16.mxu0 0
    %206 = vmatpush1.bf16.xpose.msra.mxu0 0
    %207 = vmatprep.subr.bf16.mxu0 0
    %208 = vmatpush1.bf16.xpose.msra.mxu0 0
    %209 = vmatprep.subr.bf16.mxu0 0
    %210 = vmatpush1.bf16.xpose.msra.mxu0 0
    %211 = vmatprep.subr.bf16.mxu0 0
    %212 = vmatpush1.bf16.xpose.msra.mxu0 0
    %213 = vmatprep.subr.bf16.mxu0 0
    %214 = vmatpush1.bf16.xpose.msra.mxu0 0
    %215 = vmatprep.subr.bf16.mxu0 0
    %216 = vmatpush1.bf16.xpose.msra.mxu0 0
    %217 = vmatprep.subr.bf16.mxu0 0
    %218 = vmatpush1.bf16.xpose.msra.mxu0 0
    %219 = vmatprep.subr.bf16.mxu0 0
    %220 = vmatpush1.bf16.xpose.msra.mxu0 0
    %221 = vmatprep.subr.bf16.mxu0 0
    %222 = vmatpush1.bf16.xpose.msra.mxu0 0
    %223 = vmatprep.mubr.bf16.mxu0 0
    %224 = vmatmul.mubr.bf16.gmra.mrb[0].mxu0 %v186
    %v225 = vpop.f32.mrb[0].mxu0
    %v226 = vadd.f32 0.0, %v225
    %v227 = vpop.f32.mrb[0].mxu0
    %v228 = vpop.f32.mrb[0].mxu0
    %v229 = vadd.f32 0.0, %v228
    %v230 = vpop.f32.mrb[0].mxu0
    %231 = vdwg.mxu0
    %v232 = vpack.c.bf16 %v171, %v171
    %234 = vrot.lane.b32.xlu0 %v232, 96
    %v235 = vpop.permute.xlu0 %234
    %v237 = vsel %vm184, %v235, 0
    %239 = vmatprep.subr.bf16.mxu0 0
    %240 = vmatpush1.bf16.xpose.msra.mxu0 %v237
    %241 = vmatprep.subr.bf16.mxu0 0
    %242 = vmatpush1.bf16.xpose.msra.mxu0 0
    %243 = vmatprep.subr.bf16.mxu0 0
    %244 = vmatpush1.bf16.xpose.msra.mxu0 0
    %245 = vmatprep.subr.bf16.mxu0 0
    %246 = vmatpush1.bf16.xpose.msra.mxu0 0
    %247 = vmatprep.subr.bf16.mxu0 0
    %248 = vmatpush1.bf16.xpose.msra.mxu0 0
    %249 = vmatprep.subr.bf16.mxu0 0
    %250 = vmatpush1.bf16.xpose.msra.mxu0 0
    %251 = vmatprep.subr.bf16.mxu0 0
    %252 = vmatpush1.bf16.xpose.msra.mxu0 0
    %253 = vmatprep.subr.bf16.mxu0 0
    %254 = vmatpush1.bf16.xpose.msra.mxu0 0
    %255 = vmatprep.subr.bf16.mxu0 0
    %256 = vmatpush1.bf16.xpose.msra.mxu0 0
    %257 = vmatprep.subr.bf16.mxu0 0
    %258 = vmatpush1.bf16.xpose.msra.mxu0 0
    %259 = vmatprep.subr.bf16.mxu0 0
    %260 = vmatpush1.bf16.xpose.msra.mxu0 0
    %261 = vmatprep.subr.bf16.mxu0 0
    %262 = vmatpush1.bf16.xpose.msra.mxu0 0
    %263 = vmatprep.subr.bf16.mxu0 0
    %264 = vmatpush1.bf16.xpose.msra.mxu0 0
    %265 = vmatprep.subr.bf16.mxu0 0
    %266 = vmatpush1.bf16.xpose.msra.mxu0 0
    %267 = vmatprep.subr.bf16.mxu0 0
    %268 = vmatpush1.bf16.xpose.msra.mxu0 0
    %269 = vmatprep.subr.bf16.mxu0 0
    %270 = vmatpush1.bf16.xpose.msra.mxu0 0
    %271 = vmatprep.mubr.bf16.mxu0 0
    %272 = vmatmul.mubr.bf16.gmra.mrb[0].mxu0 %v186
    %v273 = vpop.f32.mrb[0].mxu0
    %v274 = vadd.f32 0.0, %v273
    %v275 = vpop.f32.mrb[0].mxu0
    %v276 = vpop.f32.mrb[0].mxu0
    %v277 = vadd.f32 0.0, %v276
    %v278 = vpop.f32.mrb[0].mxu0
    %279 = vdwg.mxu0
    %vm280 = vcmask 80896
    %v281 = vsel %vm280, %v226, -inf
    %282 = vmax.xlane.f32.xlu0 %v281
    %v283 = vpop.xlane.xlu0 %282
    %vm284 = vcmask 74752
    %v285 = vsel %vm284, %v229, -inf
    %286 = vmax.xlane.f32.xlu0 %v285
    %v287 = vpop.xlane.xlu0 %286
    %v288 = vsel %vm184, %v274, -inf
    %289 = vmax.xlane.f32.xlu0 %v288
    %v290 = vpop.xlane.xlu0 %289
    %vm291 = vcmask 58368
    %v292 = vsel %vm291, %v277, -inf
    %293 = vmax.xlane.f32.xlu0 %v292
    %v294 = vpop.xlane.xlu0 %293
    %v295 = vmax.f32 %v283, %v290
    %v296 = vmax.f32 %v287, %v294
    %v297 = vsub.f32 %v226, %v295
    %v298 = vsub.f32 %v229, %v296
    %v299 = vmul.f32 %v297, 1.442695
    %v300 = vpow.pop %v299
    %v301 = vmul.f32 %v298, 1.442695
    %v302 = vpow.pop %v301
    %v303 = vsub.f32 %v274, %v295
    %v304 = vsub.f32 %v277, %v296
    %v305 = vmul.f32 %v303, 1.442695
    %v306 = vpow.pop %v305
    %v307 = vmul.f32 %v304, 1.442695
    %v308 = vpow.pop %v307
    %v309 = vsel %vm280, %v300, 0.0
    %310 = vadd.xlane.f32.xlu0 %v309
    %v311 = vpop.xlane.xlu0 %310
    %v312 = vsel %vm284, %v302, 0.0
    %313 = vadd.xlane.f32.xlu0 %v312
    %v314 = vpop.xlane.xlu0 %313
    %v315 = vsel %vm184, %v306, 0.0
    %316 = vadd.xlane.f32.xlu0 %v315
    %v317 = vpop.xlane.xlu0 %316
    %v318 = vsel %vm291, %v308, 0.0
    %319 = vadd.xlane.f32.xlu0 %v318
    %v320 = vpop.xlane.xlu0 %319
    %v321 = vadd.f32 %v311, %v317
    %v322 = vadd.f32 %v314, %v320
    %v323 = vrcp.pop %v321
    %v324 = vrcp.pop %v322
    %v325 = vpack.c.bf16 %v302, %v300
    %v326 = vpack.c.bf16 %v308, %v306
    %327 = vrot.lane.b32.xlu0 %v232, 64
    %v328 = vpop.permute.xlu0 %327
    %v330 = vsel %vm184, %v326, 0
    %vm332 = vcmask 1043456
    %v334 = vsel %vm332, %v328, 0
    %336 = vmatprep.subr.bf16.mxu0 0
    %337 = vmatpush1.bf16.msra.mxu0 %v334
    %338 = vmatprep.subr.bf16.mxu0 0
    %339 = vmatpush1.bf16.msra.mxu0 0
    %340 = vmatprep.subr.bf16.mxu0 0
    %341 = vmatpush1.bf16.msra.mxu0 0
    %342 = vmatprep.subr.bf16.mxu0 0
    %343 = vmatpush1.bf16.msra.mxu0 0
    %344 = vmatprep.subr.bf16.mxu0 0
    %345 = vmatpush1.bf16.msra.mxu0 0
    %346 = vmatprep.subr.bf16.mxu0 0
    %347 = vmatpush1.bf16.msra.mxu0 0
    %348 = vmatprep.subr.bf16.mxu0 0
    %349 = vmatpush1.bf16.msra.mxu0 0
    %350 = vmatprep.subr.bf16.mxu0 0
    %351 = vmatpush1.bf16.msra.mxu0 0
    %352 = vmatprep.subr.bf16.mxu0 0
    %353 = vmatpush1.bf16.msra.mxu0 0
    %354 = vmatprep.subr.bf16.mxu0 0
    %355 = vmatpush1.bf16.msra.mxu0 0
    %356 = vmatprep.subr.bf16.mxu0 0
    %357 = vmatpush1.bf16.msra.mxu0 0
    %358 = vmatprep.subr.bf16.mxu0 0
    %359 = vmatpush1.bf16.msra.mxu0 0
    %360 = vmatprep.subr.bf16.mxu0 0
    %361 = vmatpush1.bf16.msra.mxu0 0
    %362 = vmatprep.subr.bf16.mxu0 0
    %363 = vmatpush1.bf16.msra.mxu0 0
    %364 = vmatprep.subr.bf16.mxu0 0
    %365 = vmatpush1.bf16.msra.mxu0 0
    %366 = vmatprep.subr.bf16.mxu0 0
    %367 = vmatpush1.bf16.msra.mxu0 0
    %368 = vmatprep.mubr.bf16.mxu0 0
    %369 = vmatmul.mubr.bf16.gmra.mrb[0].mxu0 %v330
    %v370 = vpop.f32.mrb[0].mxu0
    %v371 = vadd.f32 0.0, %v370
    %v372 = vpop.f32.mrb[0].mxu0
    %v373 = vpop.f32.mrb[0].mxu0
    %v374 = vadd.f32 0.0, %v373
    %v375 = vpop.f32.mrb[0].mxu0
    %376 = vdwg.mxu0
    %377 = vrot.lane.b32.xlu0 %v180, 64
    %v378 = vpop.permute.xlu0 %377
    %v380 = vsel %vm280, %v325, 0
    %vm382 = vcmask 1044480
    %v384 = vsel %vm382, %v378, 0
    %386 = vmatprep.subr.bf16.mxu0 0
    %387 = vmatpush1.bf16.msra.mxu0 %v384
    %388 = vmatprep.subr.bf16.mxu0 0
    %389 = vmatpush1.bf16.msra.mxu0 0
    %390 = vmatprep.subr.bf16.mxu0 0
    %391 = vmatpush1.bf16.msra.mxu0 0
    %392 = vmatprep.subr.bf16.mxu0 0
    %393 = vmatpush1.bf16.msra.mxu0 0
    %394 = vmatprep.subr.bf16.mxu0 0
    %395 = vmatpush1.bf16.msra.mxu0 0
    %396 = vmatprep.subr.bf16.mxu0 0
    %397 = vmatpush1.bf16.msra.mxu0 0
    %398 = vmatprep.subr.bf16.mxu0 0
    %399 = vmatpush1.bf16.msra.mxu0 0
    %400 = vmatprep.subr.bf16.mxu0 0
    %401 = vmatpush1.bf16.msra.mxu0 0
    %402 = vmatprep.subr.bf16.mxu0 0
    %403 = vmatpush1.bf16.msra.mxu0 0
    %404 = vmatprep.subr.bf16.mxu0 0
    %405 = vmatpush1.bf16.msra.mxu0 0
    %406 = vmatprep.subr.bf16.mxu0 0
    %407 = vmatpush1.bf16.msra.mxu0 0
    %408 = vmatprep.subr.bf16.mxu0 0
    %409 = vmatpush1.bf16.msra.mxu0 0
    %410 = vmatprep.subr.bf16.mxu0 0
    %411 = vmatpush1.bf16.msra.mxu0 0
    %412 = vmatprep.subr.bf16.mxu0 0
    %413 = vmatpush1.bf16.msra.mxu0 0
    %414 = vmatprep.subr.bf16.mxu0 0
    %415 = vmatpush1.bf16.msra.mxu0 0
    %416 = vmatprep.subr.bf16.mxu0 0
    %417 = vmatpush1.bf16.msra.mxu0 0
    %418 = vmatprep.mubr.bf16.mxu0 0
    %419 = vmatmul.mubr.bf16.gmra.mrb[0].mxu0 %v380
    %v420 = vpop.f32.mrb[0].mxu0
    %v421 = vadd.f32 %v371, %v420
    %v422 = vpop.f32.mrb[0].mxu0
    %v423 = vpop.f32.mrb[0].mxu0
    %v424 = vadd.f32 %v374, %v423
    %v425 = vpop.f32.mrb[0].mxu0
    %426 = vdwg.mxu0
    %v427 = vmul.f32 %v421, %v323
    %v428 = vmul.f32 %v424, %v324
    %v429 = vpack.c.bf16 %v428, %v427
    %v430 = vpack.c.bf16 %v176, %v176
    %v432 = vsel %vm184, %v232, 0
    %434 = vmatprep.subr.bf16.mxu0 0
    %435 = vmatpush1.bf16.xpose.msra.mxu0 %v189
    %436 = vmatprep.subr.bf16.mxu0 0
    %437 = vmatpush1.bf16.xpose.msra.mxu0 0
    %438 = vmatprep.subr.bf16.mxu0 0
    %439 = vmatpush1.bf16.xpose.msra.mxu0 0
    %440 = vmatprep.subr.bf16.mxu0 0
    %441 = vmatpush1.bf16.xpose.msra.mxu0 0
    %442 = vmatprep.subr.bf16.mxu0 0
    %443 = vmatpush1.bf16.xpose.msra.mxu0 0
    %444 = vmatprep.subr.bf16.mxu0 0
    %445 = vmatpush1.bf16.xpose.msra.mxu0 0
    %446 = vmatprep.subr.bf16.mxu0 0
    %447 = vmatpush1.bf16.xpose.msra.mxu0 0
    %448 = vmatprep.subr.bf16.mxu0 0
    %449 = vmatpush1.bf16.xpose.msra.mxu0 0
    %450 = vmatprep.subr.bf16.mxu0 0
    %451 = vmatpush1.bf16.xpose.msra.mxu0 0
    %452 = vmatprep.subr.bf16.mxu0 0
    %453 = vmatpush1.bf16.xpose.msra.mxu0 0
    %454 = vmatprep.subr.bf16.mxu0 0
    %455 = vmatpush1.bf16.xpose.msra.mxu0 0
    %456 = vmatprep.subr.bf16.mxu0 0
    %457 = vmatpush1.bf16.xpose.msra.mxu0 0
    %458 = vmatprep.subr.bf16.mxu0 0
    %459 = vmatpush1.bf16.xpose.msra.mxu0 0
    %460 = vmatprep.subr.bf16.mxu0 0
    %461 = vmatpush1.bf16.xpose.msra.mxu0 0
    %462 = vmatprep.subr.bf16.mxu0 0
    %463 = vmatpush1.bf16.xpose.msra.mxu0 0
    %464 = vmatprep.subr.bf16.mxu0 0
    %465 = vmatpush1.bf16.xpose.msra.mxu0 0
    %466 = vmatprep.mubr.bf16.mxu0 0
    %467 = vmatmul.mubr.bf16.gmra.mrb[0].mxu0 %v432
    %v468 = vpop.f32.mrb[0].mxu0
    %v469 = vadd.f32 0.0, %v468
    %v470 = vpop.f32.mrb[0].mxu0
    %v471 = vpop.f32.mrb[0].mxu0
    %v472 = vpop.f32.mrb[0].mxu0
    %473 = vdwg.mxu0
    %474 = vmatprep.subr.bf16.mxu0 0
    %475 = vmatpush1.bf16.xpose.msra.mxu0 %v237
    %476 = vmatprep.subr.bf16.mxu0 0
    %477 = vmatpush1.bf16.xpose.msra.mxu0 0
    %478 = vmatprep.subr.bf16.mxu0 0
    %479 = vmatpush1.bf16.xpose.msra.mxu0 0
    %480 = vmatprep.subr.bf16.mxu0 0
    %481 = vmatpush1.bf16.xpose.msra.mxu0 0
    %482 = vmatprep.subr.bf16.mxu0 0
    %483 = vmatpush1.bf16.xpose.msra.mxu0 0
    %484 = vmatprep.subr.bf16.mxu0 0
    %485 = vmatpush1.bf16.xpose.msra.mxu0 0
    %486 = vmatprep.subr.bf16.mxu0 0
    %487 = vmatpush1.bf16.xpose.msra.mxu0 0
    %488 = vmatprep.subr.bf16.mxu0 0
    %489 = vmatpush1.bf16.xpose.msra.mxu0 0
    %490 = vmatprep.subr.bf16.mxu0 0
    %491 = vmatpush1.bf16.xpose.msra.mxu0 0
    %492 = vmatprep.subr.bf16.mxu0 0
    %493 = vmatpush1.bf16.xpose.msra.mxu0 0
    %494 = vmatprep.subr.bf16.mxu0 0
    %495 = vmatpush1.bf16.xpose.msra.mxu0 0
    %496 = vmatprep.subr.bf16.mxu0 0
    %497 = vmatpush1.bf16.xpose.msra.mxu0 0
    %498 = vmatprep.subr.bf16.mxu0 0
    %499 = vmatpush1.bf16.xpose.msra.mxu0 0
    %500 = vmatprep.subr.bf16.mxu0 0
    %501 = vmatpush1.bf16.xpose.msra.mxu0 0
    %502 = vmatprep.subr.bf16.mxu0 0
    %503 = vmatpush1.bf16.xpose.msra.mxu0 0
    %504 = vmatprep.subr.bf16.mxu0 0
    %505 = vmatpush1.bf16.xpose.msra.mxu0 0
    %506 = vmatprep.mubr.bf16.mxu0 0
    %507 = vmatmul.mubr.bf16.gmra.mrb[0].mxu0 %v432
    %v508 = vpop.f32.mrb[0].mxu0
    %v509 = vadd.f32 0.0, %v508
    %v510 = vpop.f32.mrb[0].mxu0
    %v511 = vpop.f32.mrb[0].mxu0
    %v512 = vpop.f32.mrb[0].mxu0
    %513 = vdwg.mxu0
    %v514 = vsel %vm280, %v469, -inf
    %515 = vmax.xlane.f32.xlu0 %v514
    %v516 = vpop.xlane.xlu0 %515
    %v517 = vsel %vm184, %v509, -inf
    %518 = vmax.xlane.f32.xlu0 %v517
    %v519 = vpop.xlane.xlu0 %518
    %v520 = vmax.f32 %v516, %v519
    %v521 = vsub.f32 %v469, %v520
    %v522 = vmul.f32 %v521, 1.442695
    %v523 = vpow.pop %v522
    %v524 = vsub.f32 %v509, %v520
    %v525 = vmul.f32 %v524, 1.442695
    %v526 = vpow.pop %v525
    %v527 = vsel %vm280, %v523, 0.0
    %528 = vadd.xlane.f32.xlu0 %v527
    %v529 = vpop.xlane.xlu0 %528
    %v530 = vsel %vm184, %v526, 0.0
    %531 = vadd.xlane.f32.xlu0 %v530
    %v532 = vpop.xlane.xlu0 %531
    %v533 = vadd.f32 %v529, %v532
    %v534 = vrcp.pop %v533
    %v535 = vpack.c.bf16 %v523, %v523
    %v536 = vpack.c.bf16 %v526, %v526
    %v538 = vsel %vm184, %v536, 0
    %540 = vmatprep.subr.bf16.mxu0 0
    %541 = vmatpush1.bf16.msra.mxu0 %v334
    %542 = vmatprep.subr.bf16.mxu0 0
    %543 = vmatpush1.bf16.msra.mxu0 0
    %544 = vmatprep.subr.bf16.mxu0 0
    %545 = vmatpush1.bf16.msra.mxu0 0
    %546 = vmatprep.subr.bf16.mxu0 0
    %547 = vmatpush1.bf16.msra.mxu0 0
    %548 = vmatprep.subr.bf16.mxu0 0
    %549 = vmatpush1.bf16.msra.mxu0 0
    %550 = vmatprep.subr.bf16.mxu0 0
    %551 = vmatpush1.bf16.msra.mxu0 0
    %552 = vmatprep.subr.bf16.mxu0 0
    %553 = vmatpush1.bf16.msra.mxu0 0
    %554 = vmatprep.subr.bf16.mxu0 0
    %555 = vmatpush1.bf16.msra.mxu0 0
    %556 = vmatprep.subr.bf16.mxu0 0
    %557 = vmatpush1.bf16.msra.mxu0 0
    %558 = vmatprep.subr.bf16.mxu0 0
    %559 = vmatpush1.bf16.msra.mxu0 0
    %560 = vmatprep.subr.bf16.mxu0 0
    %561 = vmatpush1.bf16.msra.mxu0 0
    %562 = vmatprep.subr.bf16.mxu0 0
    %563 = vmatpush1.bf16.msra.mxu0 0
    %564 = vmatprep.subr.bf16.mxu0 0
    %565 = vmatpush1.bf16.msra.mxu0 0
    %566 = vmatprep.subr.bf16.mxu0 0
    %567 = vmatpush1.bf16.msra.mxu0 0
    %568 = vmatprep.subr.bf16.mxu0 0
    %569 = vmatpush1.bf16.msra.mxu0 0
    %570 = vmatprep.subr.bf16.mxu0 0
    %571 = vmatpush1.bf16.msra.mxu0 0
    %572 = vmatprep.mubr.bf16.mxu0 0
    %573 = vmatmul.mubr.bf16.gmra.mrb[0].mxu0 %v538
    %v574 = vpop.f32.mrb[0].mxu0
    %v575 = vadd.f32 0.0, %v574
    %v576 = vpop.f32.mrb[0].mxu0
    %v577 = vpop.f32.mrb[0].mxu0
    %v578 = vpop.f32.mrb[0].mxu0
    %579 = vdwg.mxu0
    %v581 = vsel %vm280, %v535, 0
    %583 = vmatprep.subr.bf16.mxu0 0
    %584 = vmatpush1.bf16.msra.mxu0 %v384
    %585 = vmatprep.subr.bf16.mxu0 0
    %586 = vmatpush1.bf16.msra.mxu0 0
    %587 = vmatprep.subr.bf16.mxu0 0
    %588 = vmatpush1.bf16.msra.mxu0 0
    %589 = vmatprep.subr.bf16.mxu0 0
    %590 = vmatpush1.bf16.msra.mxu0 0
    %591 = vmatprep.subr.bf16.mxu0 0
    %592 = vmatpush1.bf16.msra.mxu0 0
    %593 = vmatprep.subr.bf16.mxu0 0
    %594 = vmatpush1.bf16.msra.mxu0 0
    %595 = vmatprep.subr.bf16.mxu0 0
    %596 = vmatpush1.bf16.msra.mxu0 0
    %597 = vmatprep.subr.bf16.mxu0 0
    %598 = vmatpush1.bf16.msra.mxu0 0
    %599 = vmatprep.subr.bf16.mxu0 0
    %600 = vmatpush1.bf16.msra.mxu0 0
    %601 = vmatprep.subr.bf16.mxu0 0
    %602 = vmatpush1.bf16.msra.mxu0 0
    %603 = vmatprep.subr.bf16.mxu0 0
    %604 = vmatpush1.bf16.msra.mxu0 0
    %605 = vmatprep.subr.bf16.mxu0 0
    %606 = vmatpush1.bf16.msra.mxu0 0
    %607 = vmatprep.subr.bf16.mxu0 0
    %608 = vmatpush1.bf16.msra.mxu0 0
    %609 = vmatprep.subr.bf16.mxu0 0
    %610 = vmatpush1.bf16.msra.mxu0 0
    %611 = vmatprep.subr.bf16.mxu0 0
    %612 = vmatpush1.bf16.msra.mxu0 0
    %613 = vmatprep.subr.bf16.mxu0 0
    %614 = vmatpush1.bf16.msra.mxu0 0
    %615 = vmatprep.mubr.bf16.mxu0 0
    %616 = vmatmul.mubr.bf16.gmra.mrb[0].mxu0 %v581
    %v617 = vpop.f32.mrb[0].mxu0
    %v618 = vadd.f32 %v575, %v617
    %v619 = vpop.f32.mrb[0].mxu0
    %v620 = vpop.f32.mrb[0].mxu0
    %v621 = vpop.f32.mrb[0].mxu0
    %622 = vdwg.mxu0
    %v623 = vmul.f32 %v618, %v534
    %v624 = vpack.c.bf16 %v623, %v623
    %625 = vrot.lane.b32.xlu0 %v180, 120
    %v626 = vpop.permute.xlu0 %625
    %627 = vrot.lane.b32.xlu0 %v180, 88
    %v628 = vpop.permute.xlu0 %627
    %v630 = vsel %vm184, %v626, 0
    %v633 = vsel %vm184, %v628, 0
    %635 = vmatprep.subr.bf16.mxu0 0
    %636 = vmatpush1.bf16.xpose.msra.mxu0 %v633
    %637 = vmatprep.subr.bf16.mxu0 0
    %638 = vmatpush1.bf16.xpose.msra.mxu0 0
    %639 = vmatprep.subr.bf16.mxu0 0
    %640 = vmatpush1.bf16.xpose.msra.mxu0 0
    %641 = vmatprep.subr.bf16.mxu0 0
    %642 = vmatpush1.bf16.xpose.msra.mxu0 0
    %643 = vmatprep.subr.bf16.mxu0 0
    %644 = vmatpush1.bf16.xpose.msra.mxu0 0
    %645 = vmatprep.subr.bf16.mxu0 0
    %646 = vmatpush1.bf16.xpose.msra.mxu0 0
    %647 = vmatprep.subr.bf16.mxu0 0
    %648 = vmatpush1.bf16.xpose.msra.mxu0 0
    %649 = vmatprep.subr.bf16.mxu0 0
    %650 = vmatpush1.bf16.xpose.msra.mxu0 0
    %651 = vmatprep.subr.bf16.mxu0 0
    %652 = vmatpush1.bf16.xpose.msra.mxu0 0
    %653 = vmatprep.subr.bf16.mxu0 0
    %654 = vmatpush1.bf16.xpose.msra.mxu0 0
    %655 = vmatprep.subr.bf16.mxu0 0
    %656 = vmatpush1.bf16.xpose.msra.mxu0 0
    %657 = vmatprep.subr.bf16.mxu0 0
    %658 = vmatpush1.bf16.xpose.msra.mxu0 0
    %659 = vmatprep.subr.bf16.mxu0 0
    %660 = vmatpush1.bf16.xpose.msra.mxu0 0
    %661 = vmatprep.subr.bf16.mxu0 0
    %662 = vmatpush1.bf16.xpose.msra.mxu0 0
    %663 = vmatprep.subr.bf16.mxu0 0
    %664 = vmatpush1.bf16.xpose.msra.mxu0 0
    %665 = vmatprep.subr.bf16.mxu0 0
    %666 = vmatpush1.bf16.xpose.msra.mxu0 0
    %667 = vmatprep.mubr.bf16.mxu0 0
    %668 = vmatmul.mubr.bf16.gmra.mrb[0].mxu0 %v630
    %v669 = vpop.f32.mrb[0].mxu0
    %v670 = vadd.f32 0.0, %v669
    %v671 = vpop.f32.mrb[0].mxu0
    %v672 = vpop.f32.mrb[0].mxu0
    %v673 = vadd.f32 0.0, %v672
    %v674 = vpop.f32.mrb[0].mxu0
    %675 = vdwg.mxu0
    %676 = vrot.lane.b32.xlu0 %v232, 88
    %v677 = vpop.permute.xlu0 %676
    %v679 = vsel %vm184, %v677, 0
    %681 = vmatprep.subr.bf16.mxu0 0
    %682 = vmatpush1.bf16.xpose.msra.mxu0 %v679
    %683 = vmatprep.subr.bf16.mxu0 0
    %684 = vmatpush1.bf16.xpose.msra.mxu0 0
    %685 = vmatprep.subr.bf16.mxu0 0
    %686 = vmatpush1.bf16.xpose.msra.mxu0 0
    %687 = vmatprep.subr.bf16.mxu0 0
    %688 = vmatpush1.bf16.xpose.msra.mxu0 0
    %689 = vmatprep.subr.bf16.mxu0 0
    %690 = vmatpush1.bf16.xpose.msra.mxu0 0
    %691 = vmatprep.subr.bf16.mxu0 0
    %692 = vmatpush1.bf16.xpose.msra.mxu0 0
    %693 = vmatprep.subr.bf16.mxu0 0
    %694 = vmatpush1.bf16.xpose.msra.mxu0 0
    %695 = vmatprep.subr.bf16.mxu0 0
    %696 = vmatpush1.bf16.xpose.msra.mxu0 0
    %697 = vmatprep.subr.bf16.mxu0 0
    %698 = vmatpush1.bf16.xpose.msra.mxu0 0
    %699 = vmatprep.subr.bf16.mxu0 0
    %700 = vmatpush1.bf16.xpose.msra.mxu0 0
    %701 = vmatprep.subr.bf16.mxu0 0
    %702 = vmatpush1.bf16.xpose.msra.mxu0 0
    %703 = vmatprep.subr.bf16.mxu0 0
    %704 = vmatpush1.bf16.xpose.msra.mxu0 0
    %705 = vmatprep.subr.bf16.mxu0 0
    %706 = vmatpush1.bf16.xpose.msra.mxu0 0
    %707 = vmatprep.subr.bf16.mxu0 0
    %708 = vmatpush1.bf16.xpose.msra.mxu0 0
    %709 = vmatprep.subr.bf16.mxu0 0
    %710 = vmatpush1.bf16.xpose.msra.mxu0 0
    %711 = vmatprep.subr.bf16.mxu0 0
    %712 = vmatpush1.bf16.xpose.msra.mxu0 0
    %713 = vmatprep.mubr.bf16.mxu0 0
    %714 = vmatmul.mubr.bf16.gmra.mrb[0].mxu0 %v630
    %v715 = vpop.f32.mrb[0].mxu0
    %v716 = vadd.f32 0.0, %v715
    %v717 = vpop.f32.mrb[0].mxu0
    %v718 = vpop.f32.mrb[0].mxu0
    %v719 = vadd.f32 0.0, %v718
    %v720 = vpop.f32.mrb[0].mxu0
    %721 = vdwg.mxu0
    %v722 = vsel %vm280, %v670, -inf
    %723 = vmax.xlane.f32.xlu0 %v722
    %v724 = vpop.xlane.xlu0 %723
    %v725 = vsel %vm284, %v673, -inf
    %726 = vmax.xlane.f32.xlu0 %v725
    %v727 = vpop.xlane.xlu0 %726
    %v728 = vsel %vm184, %v716, -inf
    %729 = vmax.xlane.f32.xlu0 %v728
    %v730 = vpop.xlane.xlu0 %729
    %v731 = vsel %vm291, %v719, -inf
    %732 = vmax.xlane.f32.xlu0 %v731
    %v733 = vpop.xlane.xlu0 %732
    %v734 = vmax.f32 %v724, %v730
    %v735 = vmax.f32 %v727, %v733
    %v736 = vsub.f32 %v670, %v734
    %v737 = vsub.f32 %v673, %v735
    %v738 = vmul.f32 %v736, 1.442695
    %v739 = vpow.pop %v738
    %v740 = vmul.f32 %v737, 1.442695
    %v741 = vpow.pop %v740
    %v742 = vsub.f32 %v716, %v734
    %v743 = vsub.f32 %v719, %v735
    %v744 = vmul.f32 %v742, 1.442695
    %v745 = vpow.pop %v744
    %v746 = vmul.f32 %v743, 1.442695
    %v747 = vpow.pop %v746
    %v748 = vsel %vm280, %v739, 0.0
    %749 = vadd.xlane.f32.xlu0 %v748
    %v750 = vpop.xlane.xlu0 %749
    %v751 = vsel %vm284, %v741, 0.0
    %752 = vadd.xlane.f32.xlu0 %v751
    %v753 = vpop.xlane.xlu0 %752
    %v754 = vsel %vm184, %v745, 0.0
    %755 = vadd.xlane.f32.xlu0 %v754
    %v756 = vpop.xlane.xlu0 %755
    %v757 = vsel %vm291, %v747, 0.0
    %758 = vadd.xlane.f32.xlu0 %v757
    %v759 = vpop.xlane.xlu0 %758
    %v760 = vadd.f32 %v750, %v756
    %v761 = vadd.f32 %v753, %v759
    %v762 = vrcp.pop %v760
    %v763 = vrcp.pop %v761
    %v764 = vpack.c.bf16 %v741, %v739
    %v765 = vpack.c.bf16 %v747, %v745
    %766 = vrot.lane.b32.xlu0 %v232, 56
    %v767 = vpop.permute.xlu0 %766
    %v769 = vsel %vm184, %v765, 0
    %v772 = vsel %vm332, %v767, 0
    %774 = vmatprep.subr.bf16.mxu0 0
    %775 = vmatpush1.bf16.msra.mxu0 %v772
    %776 = vmatprep.subr.bf16.mxu0 0
    %777 = vmatpush1.bf16.msra.mxu0 0
    %778 = vmatprep.subr.bf16.mxu0 0
    %779 = vmatpush1.bf16.msra.mxu0 0
    %780 = vmatprep.subr.bf16.mxu0 0
    %781 = vmatpush1.bf16.msra.mxu0 0
    %782 = vmatprep.subr.bf16.mxu0 0
    %783 = vmatpush1.bf16.msra.mxu0 0
    %784 = vmatprep.subr.bf16.mxu0 0
    %785 = vmatpush1.bf16.msra.mxu0 0
    %786 = vmatprep.subr.bf16.mxu0 0
    %787 = vmatpush1.bf16.msra.mxu0 0
    %788 = vmatprep.subr.bf16.mxu0 0
    %789 = vmatpush1.bf16.msra.mxu0 0
    %790 = vmatprep.subr.bf16.mxu0 0
    %791 = vmatpush1.bf16.msra.mxu0 0
    %792 = vmatprep.subr.bf16.mxu0 0
    %793 = vmatpush1.bf16.msra.mxu0 0
    %794 = vmatprep.subr.bf16.mxu0 0
    %795 = vmatpush1.bf16.msra.mxu0 0
    %796 = vmatprep.subr.bf16.mxu0 0
    %797 = vmatpush1.bf16.msra.mxu0 0
    %798 = vmatprep.subr.bf16.mxu0 0
    %799 = vmatpush1.bf16.msra.mxu0 0
    %800 = vmatprep.subr.bf16.mxu0 0
    %801 = vmatpush1.bf16.msra.mxu0 0
    %802 = vmatprep.subr.bf16.mxu0 0
    %803 = vmatpush1.bf16.msra.mxu0 0
    %804 = vmatprep.subr.bf16.mxu0 0
    %805 = vmatpush1.bf16.msra.mxu0 0
    %806 = vmatprep.mubr.bf16.mxu0 0
    %807 = vmatmul.mubr.bf16.gmra.mrb[0].mxu0 %v769
    %v808 = vpop.f32.mrb[0].mxu0
    %v809 = vadd.f32 0.0, %v808
    %v810 = vpop.f32.mrb[0].mxu0
    %v811 = vpop.f32.mrb[0].mxu0
    %v812 = vadd.f32 0.0, %v811
    %v813 = vpop.f32.mrb[0].mxu0
    %814 = vdwg.mxu0
    %815 = vrot.lane.b32.xlu0 %v180, 56
    %v816 = vpop.permute.xlu0 %815
    %v818 = vsel %vm280, %v764, 0
    %v821 = vsel %vm382, %v816, 0
    %823 = vmatprep.subr.bf16.mxu0 0
    %824 = vmatpush1.bf16.msra.mxu0 %v821
    %825 = vmatprep.subr.bf16.mxu0 0
    %826 = vmatpush1.bf16.msra.mxu0 0
    %827 = vmatprep.subr.bf16.mxu0 0
    %828 = vmatpush1.bf16.msra.mxu0 0
    %829 = vmatprep.subr.bf16.mxu0 0
    %830 = vmatpush1.bf16.msra.mxu0 0
    %831 = vmatprep.subr.bf16.mxu0 0
    %832 = vmatpush1.bf16.msra.mxu0 0
    %833 = vmatprep.subr.bf16.mxu0 0
    %834 = vmatpush1.bf16.msra.mxu0 0
    %835 = vmatprep.subr.bf16.mxu0 0
    %836 = vmatpush1.bf16.msra.mxu0 0
    %837 = vmatprep.subr.bf16.mxu0 0
    %838 = vmatpush1.bf16.msra.mxu0 0
    %839 = vmatprep.subr.bf16.mxu0 0
    %840 = vmatpush1.bf16.msra.mxu0 0
    %841 = vmatprep.subr.bf16.mxu0 0
    %842 = vmatpush1.bf16.msra.mxu0 0
    %843 = vmatprep.subr.bf16.mxu0 0
    %844 = vmatpush1.bf16.msra.mxu0 0
    %845 = vmatprep.subr.bf16.mxu0 0
    %846 = vmatpush1.bf16.msra.mxu0 0
    %847 = vmatprep.subr.bf16.mxu0 0
    %848 = vmatpush1.bf16.msra.mxu0 0
    %849 = vmatprep.subr.bf16.mxu0 0
    %850 = vmatpush1.bf16.msra.mxu0 0
    %851 = vmatprep.subr.bf16.mxu0 0
    %852 = vmatpush1.bf16.msra.mxu0 0
    %853 = vmatprep.subr.bf16.mxu0 0
    %854 = vmatpush1.bf16.msra.mxu0 0
    %855 = vmatprep.mubr.bf16.mxu0 0
    %856 = vmatmul.mubr.bf16.gmra.mrb[0].mxu0 %v818
    %v857 = vpop.f32.mrb[0].mxu0
    %v858 = vadd.f32 %v809, %v857
    %v859 = vpop.f32.mrb[0].mxu0
    %v860 = vpop.f32.mrb[0].mxu0
    %v861 = vadd.f32 %v812, %v860
    %v862 = vpop.f32.mrb[0].mxu0
    %863 = vdwg.mxu0
    %v864 = vmul.f32 %v858, %v762
    %v865 = vmul.f32 %v861, %v763
    %v866 = vpack.c.bf16 %v865, %v864
    %v867 = vpack.c.bf16 %v177, %v177
    %v869 = vsel %vm184, %v866, 0
    %v872 = vsel %vm332, %v867, 0
    %874 = vmatprep.subr.bf16.mxu0 0
    %875 = vmatpush1.bf16.msra.mxu0 %v872
    %876 = vmatprep.subr.bf16.mxu0 0
    %877 = vmatpush1.bf16.msra.mxu0 0
    %878 = vmatprep.subr.bf16.mxu0 0
    %879 = vmatpush1.bf16.msra.mxu0 0
    %880 = vmatprep.subr.bf16.mxu0 0
    %881 = vmatpush1.bf16.msra.mxu0 0
    %882 = vmatprep.subr.bf16.mxu0 0
    %883 = vmatpush1.bf16.msra.mxu0 0
    %884 = vmatprep.subr.bf16.mxu0 0
    %885 = vmatpush1.bf16.msra.mxu0 0
    %886 = vmatprep.subr.bf16.mxu0 0
    %887 = vmatpush1.bf16.msra.mxu0 0
    %888 = vmatprep.subr.bf16.mxu0 0
    %889 = vmatpush1.bf16.msra.mxu0 0
    %890 = vmatprep.subr.bf16.mxu0 0
    %891 = vmatpush1.bf16.msra.mxu0 0
    %892 = vmatprep.subr.bf16.mxu0 0
    %893 = vmatpush1.bf16.msra.mxu0 0
    %894 = vmatprep.subr.bf16.mxu0 0
    %895 = vmatpush1.bf16.msra.mxu0 0
    %896 = vmatprep.subr.bf16.mxu0 0
    %897 = vmatpush1.bf16.msra.mxu0 0
    %898 = vmatprep.subr.bf16.mxu0 0
    %899 = vmatpush1.bf16.msra.mxu0 0
    %900 = vmatprep.subr.bf16.mxu0 0
    %901 = vmatpush1.bf16.msra.mxu0 0
    %902 = vmatprep.subr.bf16.mxu0 0
    %903 = vmatpush1.bf16.msra.mxu0 0
    %904 = vmatprep.subr.bf16.mxu0 0
    %905 = vmatpush1.bf16.msra.mxu0 0
    %906 = vmatprep.mubr.bf16.mxu0 0
    %907 = vmatmul.mubr.bf16.gmra.mrb[0].mxu0 %v869
    %v908 = vpop.f32.mrb[0].mxu0
    %v909 = vadd.f32 0.0, %v908
    %v910 = vpop.f32.mrb[0].mxu0
    %v911 = vpop.f32.mrb[0].mxu0
    %v912 = vadd.f32 0.0, %v911
    %v913 = vpop.f32.mrb[0].mxu0
    %914 = vdwg.mxu0
    %v916 = vsel %vm184, %v429, 0
    %v919 = vsel %vm332, %v430, 0
    %921 = vmatprep.subr.bf16.mxu0 0
    %922 = vmatpush1.bf16.msra.mxu0 %v919
    %923 = vmatprep.subr.bf16.mxu0 0
    %924 = vmatpush1.bf16.msra.mxu0 0
    %925 = vmatprep.subr.bf16.mxu0 0
    %926 = vmatpush1.bf16.msra.mxu0 0
    %927 = vmatprep.subr.bf16.mxu0 0
    %928 = vmatpush1.bf16.msra.mxu0 0
    %929 = vmatprep.subr.bf16.mxu0 0
    %930 = vmatpush1.bf16.msra.mxu0 0
    %931 = vmatprep.subr.bf16.mxu0 0
    %932 = vmatpush1.bf16.msra.mxu0 0
    %933 = vmatprep.subr.bf16.mxu0 0
    %934 = vmatpush1.bf16.msra.mxu0 0
    %935 = vmatprep.subr.bf16.mxu0 0
    %936 = vmatpush1.bf16.msra.mxu0 0
    %937 = vmatprep.subr.bf16.mxu0 0
    %938 = vmatpush1.bf16.msra.mxu0 0
    %939 = vmatprep.subr.bf16.mxu0 0
    %940 = vmatpush1.bf16.msra.mxu0 0
    %941 = vmatprep.subr.bf16.mxu0 0
    %942 = vmatpush1.bf16.msra.mxu0 0
    %943 = vmatprep.subr.bf16.mxu0 0
    %944 = vmatpush1.bf16.msra.mxu0 0
    %945 = vmatprep.subr.bf16.mxu0 0
    %946 = vmatpush1.bf16.msra.mxu0 0
    %947 = vmatprep.subr.bf16.mxu0 0
    %948 = vmatpush1.bf16.msra.mxu0 0
    %949 = vmatprep.subr.bf16.mxu0 0
    %950 = vmatpush1.bf16.msra.mxu0 0
    %951 = vmatprep.subr.bf16.mxu0 0
    %952 = vmatpush1.bf16.msra.mxu0 0
    %953 = vmatprep.mubr.bf16.mxu0 0
    %954 = vmatmul.mubr.bf16.gmra.mrb[0].mxu0 %v916
    %v955 = vpop.f32.mrb[0].mxu0
    %v956 = vadd.f32 %v909, %v955
    %v957 = vpop.f32.mrb[0].mxu0
    %v958 = vpop.f32.mrb[0].mxu0
    %v959 = vadd.f32 %v912, %v958
    %v960 = vpop.f32.mrb[0].mxu0
    %961 = vdwg.mxu0
    %962 = vrot.lane.b32.xlu0 %v232, 120
    %v963 = vpop.permute.xlu0 %962
    %v965 = vsel %vm184, %v963, 0
    %967 = vmatprep.subr.bf16.mxu0 0
    %968 = vmatpush1.bf16.xpose.msra.mxu0 %v633
    %969 = vmatprep.subr.bf16.mxu0 0
    %970 = vmatpush1.bf16.xpose.msra.mxu0 0
    %971 = vmatprep.subr.bf16.mxu0 0
    %972 = vmatpush1.bf16.xpose.msra.mxu0 0
    %973 = vmatprep.subr.bf16.mxu0 0
    %974 = vmatpush1.bf16.xpose.msra.mxu0 0
    %975 = vmatprep.subr.bf16.mxu0 0
    %976 = vmatpush1.bf16.xpose.msra.mxu0 0
    %977 = vmatprep.subr.bf16.mxu0 0
    %978 = vmatpush1.bf16.xpose.msra.mxu0 0
    %979 = vmatprep.subr.bf16.mxu0 0
    %980 = vmatpush1.bf16.xpose.msra.mxu0 0
    %981 = vmatprep.subr.bf16.mxu0 0
    %982 = vmatpush1.bf16.xpose.msra.mxu0 0
    %983 = vmatprep.subr.bf16.mxu0 0
    %984 = vmatpush1.bf16.xpose.msra.mxu0 0
    %985 = vmatprep.subr.bf16.mxu0 0
    %986 = vmatpush1.bf16.xpose.msra.mxu0 0
    %987 = vmatprep.subr.bf16.mxu0 0
    %988 = vmatpush1.bf16.xpose.msra.mxu0 0
    %989 = vmatprep.subr.bf16.mxu0 0
    %990 = vmatpush1.bf16.xpose.msra.mxu0 0
    %991 = vmatprep.subr.bf16.mxu0 0
    %992 = vmatpush1.bf16.xpose.msra.mxu0 0
    %993 = vmatprep.subr.bf16.mxu0 0
    %994 = vmatpush1.bf16.xpose.msra.mxu0 0
    %995 = vmatprep.subr.bf16.mxu0 0
    %996 = vmatpush1.bf16.xpose.msra.mxu0 0
    %997 = vmatprep.subr.bf16.mxu0 0
    %998 = vmatpush1.bf16.xpose.msra.mxu0 0
    %999 = vmatprep.mubr.bf16.mxu0 0
    %1000 = vmatmul.mubr.bf16.gmra.mrb[0].mxu0 %v965
    %v1001 = vpop.f32.mrb[0].mxu0
    %v1002 = vadd.f32 0.0, %v1001
    %v1003 = vpop.f32.mrb[0].mxu0
    %v1004 = vpop.f32.mrb[0].mxu0
    %v1005 = vpop.f32.mrb[0].mxu0
    %1006 = vdwg.mxu0
    %1007 = vmatprep.subr.bf16.mxu0 0
    %1008 = vmatpush1.bf16.xpose.msra.mxu0 %v679
    %1009 = vmatprep.subr.bf16.mxu0 0
    %1010 = vmatpush1.bf16.xpose.msra.mxu0 0
    %1011 = vmatprep.subr.bf16.mxu0 0
    %1012 = vmatpush1.bf16.xpose.msra.mxu0 0
    %1013 = vmatprep.subr.bf16.mxu0 0
    %1014 = vmatpush1.bf16.xpose.msra.mxu0 0
    %1015 = vmatprep.subr.bf16.mxu0 0
    %1016 = vmatpush1.bf16.xpose.msra.mxu0 0
    %1017 = vmatprep.subr.bf16.mxu0 0
    %1018 = vmatpush1.bf16.xpose.msra.mxu0 0
    %1019 = vmatprep.subr.bf16.mxu0 0
    %1020 = vmatpush1.bf16.xpose.msra.mxu0 0
    %1021 = vmatprep.subr.bf16.mxu0 0
    %1022 = vmatpush1.bf16.xpose.msra.mxu0 0
    %1023 = vmatprep.subr.bf16.mxu0 0
    %1024 = vmatpush1.bf16.xpose.msra.mxu0 0
    %1025 = vmatprep.subr.bf16.mxu0 0
    %1026 = vmatpush1.bf16.xpose.msra.mxu0 0
    %1027 = vmatprep.subr.bf16.mxu0 0
    %1028 = vmatpush1.bf16.xpose.msra.mxu0 0
    %1029 = vmatprep.subr.bf16.mxu0 0
    %1030 = vmatpush1.bf16.xpose.msra.mxu0 0
    %1031 = vmatprep.subr.bf16.mxu0 0
    %1032 = vmatpush1.bf16.xpose.msra.mxu0 0
    %1033 = vmatprep.subr.bf16.mxu0 0
    %1034 = vmatpush1.bf16.xpose.msra.mxu0 0
    %1035 = vmatprep.subr.bf16.mxu0 0
    %1036 = vmatpush1.bf16.xpose.msra.mxu0 0
    %1037 = vmatprep.subr.bf16.mxu0 0
    %1038 = vmatpush1.bf16.xpose.msra.mxu0 0
    %1039 = vmatprep.mubr.bf16.mxu0 0
    %1040 = vmatmul.mubr.bf16.gmra.mrb[0].mxu0 %v965
    %v1041 = vpop.f32.mrb[0].mxu0
    %v1042 = vadd.f32 0.0, %v1041
    %v1043 = vpop.f32.mrb[0].mxu0
    %v1044 = vpop.f32.mrb[0].mxu0
    %v1045 = vpop.f32.mrb[0].mxu0
    %1046 = vdwg.mxu0
    %v1047 = vsel %vm280, %v1002, -inf
    %1048 = vmax.xlane.f32.xlu0 %v1047
    %v1049 = vpop.xlane.xlu0 %1048
    %v1050 = vsel %vm184, %v1042, -inf
    %1051 = vmax.xlane.f32.xlu0 %v1050
    %v1052 = vpop.xlane.xlu0 %1051
    %v1053 = vmax.f32 %v1049, %v1052
    %v1054 = vsub.f32 %v1002, %v1053
    %v1055 = vmul.f32 %v1054, 1.442695
    %v1056 = vpow.pop %v1055
    %v1057 = vsub.f32 %v1042, %v1053
    %v1058 = vmul.f32 %v1057, 1.442695
    %v1059 = vpow.pop %v1058
    %v1060 = vsel %vm280, %v1056, 0.0
    %1061 = vadd.xlane.f32.xlu0 %v1060
    %v1062 = vpop.xlane.xlu0 %1061
    %v1063 = vsel %vm184, %v1059, 0.0
    %1064 = vadd.xlane.f32.xlu0 %v1063
    %v1065 = vpop.xlane.xlu0 %1064
    %v1066 = vadd.f32 %v1062, %v1065
    %v1067 = vrcp.pop %v1066
    %v1068 = vpack.c.bf16 %v1056, %v1056
    %v1069 = vpack.c.bf16 %v1059, %v1059
    %v1071 = vsel %vm184, %v1069, 0
    %1073 = vmatprep.subr.bf16.mxu0 0
    %1074 = vmatpush1.bf16.msra.mxu0 %v772
    %1075 = vmatprep.subr.bf16.mxu0 0
    %1076 = vmatpush1.bf16.msra.mxu0 0
    %1077 = vmatprep.subr.bf16.mxu0 0
    %1078 = vmatpush1.bf16.msra.mxu0 0
    %1079 = vmatprep.subr.bf16.mxu0 0
    %1080 = vmatpush1.bf16.msra.mxu0 0
    %1081 = vmatprep.subr.bf16.mxu0 0
    %1082 = vmatpush1.bf16.msra.mxu0 0
    %1083 = vmatprep.subr.bf16.mxu0 0
    %1084 = vmatpush1.bf16.msra.mxu0 0
    %1085 = vmatprep.subr.bf16.mxu0 0
    %1086 = vmatpush1.bf16.msra.mxu0 0
    %1087 = vmatprep.subr.bf16.mxu0 0
    %1088 = vmatpush1.bf16.msra.mxu0 0
    %1089 = vmatprep.subr.bf16.mxu0 0
    %1090 = vmatpush1.bf16.msra.mxu0 0
    %1091 = vmatprep.subr.bf16.mxu0 0
    %1092 = vmatpush1.bf16.msra.mxu0 0
    %1093 = vmatprep.subr.bf16.mxu0 0
    %1094 = vmatpush1.bf16.msra.mxu0 0
    %1095 = vmatprep.subr.bf16.mxu0 0
    %1096 = vmatpush1.bf16.msra.mxu0 0
    %1097 = vmatprep.subr.bf16.mxu0 0
    %1098 = vmatpush1.bf16.msra.mxu0 0
    %1099 = vmatprep.subr.bf16.mxu0 0
    %1100 = vmatpush1.bf16.msra.mxu0 0
    %1101 = vmatprep.subr.bf16.mxu0 0
    %1102 = vmatpush1.bf16.msra.mxu0 0
    %1103 = vmatprep.subr.bf16.mxu0 0
    %1104 = vmatpush1.bf16.msra.mxu0 0
    %1105 = vmatprep.mubr.bf16.mxu0 0
    %1106 = vmatmul.mubr.bf16.gmra.mrb[0].mxu0 %v1071
    %v1107 = vpop.f32.mrb[0].mxu0
    %v1108 = vadd.f32 0.0, %v1107
    %v1109 = vpop.f32.mrb[0].mxu0
    %v1110 = vpop.f32.mrb[0].mxu0
    %v1111 = vpop.f32.mrb[0].mxu0
    %1112 = vdwg.mxu0
    %v1114 = vsel %vm280, %v1068, 0
    %1116 = vmatprep.subr.bf16.mxu0 0
    %1117 = vmatpush1.bf16.msra.mxu0 %v821
    %1118 = vmatprep.subr.bf16.mxu0 0
    %1119 = vmatpush1.bf16.msra.mxu0 0
    %1120 = vmatprep.subr.bf16.mxu0 0
    %1121 = vmatpush1.bf16.msra.mxu0 0
    %1122 = vmatprep.subr.bf16.mxu0 0
    %1123 = vmatpush1.bf16.msra.mxu0 0
    %1124 = vmatprep.subr.bf16.mxu0 0
    %1125 = vmatpush1.bf16.msra.mxu0 0
    %1126 = vmatprep.subr.bf16.mxu0 0
    %1127 = vmatpush1.bf16.msra.mxu0 0
    %1128 = vmatprep.subr.bf16.mxu0 0
    %1129 = vmatpush1.bf16.msra.mxu0 0
    %1130 = vmatprep.subr.bf16.mxu0 0
    %1131 = vmatpush1.bf16.msra.mxu0 0
    %1132 = vmatprep.subr.bf16.mxu0 0
    %1133 = vmatpush1.bf16.msra.mxu0 0
    %1134 = vmatprep.subr.bf16.mxu0 0
    %1135 = vmatpush1.bf16.msra.mxu0 0
    %1136 = vmatprep.subr.bf16.mxu0 0
    %1137 = vmatpush1.bf16.msra.mxu0 0
    %1138 = vmatprep.subr.bf16.mxu0 0
    %1139 = vmatpush1.bf16.msra.mxu0 0
    %1140 = vmatprep.subr.bf16.mxu0 0
    %1141 = vmatpush1.bf16.msra.mxu0 0
    %1142 = vmatprep.subr.bf16.mxu0 0
    %1143 = vmatpush1.bf16.msra.mxu0 0
    %1144 = vmatprep.subr.bf16.mxu0 0
    %1145 = vmatpush1.bf16.msra.mxu0 0
    %1146 = vmatprep.subr.bf16.mxu0 0
    %1147 = vmatpush1.bf16.msra.mxu0 0
    %1148 = vmatprep.mubr.bf16.mxu0 0
    %1149 = vmatmul.mubr.bf16.gmra.mrb[0].mxu0 %v1114
    %v1150 = vpop.f32.mrb[0].mxu0
    %v1151 = vadd.f32 %v1108, %v1150
    %v1152 = vpop.f32.mrb[0].mxu0
    %v1153 = vpop.f32.mrb[0].mxu0
    %v1154 = vpop.f32.mrb[0].mxu0
    %1155 = vdwg.mxu0
    %v1156 = vmul.f32 %v1151, %v1067
    %v1157 = vpack.c.bf16 %v1156, %v1156
    %v1159 = vsel %vm184, %v1157, 0
    %1161 = vmatprep.subr.bf16.mxu0 0
    %1162 = vmatpush1.bf16.msra.mxu0 %v872
    %1163 = vmatprep.subr.bf16.mxu0 0
    %1164 = vmatpush1.bf16.msra.mxu0 0
    %1165 = vmatprep.subr.bf16.mxu0 0
    %1166 = vmatpush1.bf16.msra.mxu0 0
    %1167 = vmatprep.subr.bf16.mxu0 0
    %1168 = vmatpush1.bf16.msra.mxu0 0
    %1169 = vmatprep.subr.bf16.mxu0 0
    %1170 = vmatpush1.bf16.msra.mxu0 0
    %1171 = vmatprep.subr.bf16.mxu0 0
    %1172 = vmatpush1.bf16.msra.mxu0 0
    %1173 = vmatprep.subr.bf16.mxu0 0
    %1174 = vmatpush1.bf16.msra.mxu0 0
    %1175 = vmatprep.subr.bf16.mxu0 0
    %1176 = vmatpush1.bf16.msra.mxu0 0
    %1177 = vmatprep.subr.bf16.mxu0 0
    %1178 = vmatpush1.bf16.msra.mxu0 0
    %1179 = vmatprep.subr.bf16.mxu0 0
    %1180 = vmatpush1.bf16.msra.mxu0 0
    %1181 = vmatprep.subr.bf16.mxu0 0
    %1182 = vmatpush1.bf16.msra.mxu0 0
    %1183 = vmatprep.subr.bf16.mxu0 0
    %1184 = vmatpush1.bf16.msra.mxu0 0
    %1185 = vmatprep.subr.bf16.mxu0 0
    %1186 = vmatpush1.bf16.msra.mxu0 0
    %1187 = vmatprep.subr.bf16.mxu0 0
    %1188 = vmatpush1.bf16.msra.mxu0 0
    %1189 = vmatprep.subr.bf16.mxu0 0
    %1190 = vmatpush1.bf16.msra.mxu0 0
    %1191 = vmatprep.subr.bf16.mxu0 0
    %1192 = vmatpush1.bf16.msra.mxu0 0
    %1193 = vmatprep.mubr.bf16.mxu0 0
    %1194 = vmatmul.mubr.bf16.gmra.mrb[0].mxu0 %v1159
    %v1195 = vpop.f32.mrb[0].mxu0
    %v1196 = vadd.f32 0.0, %v1195
    %v1197 = vpop.f32.mrb[0].mxu0
    %v1198 = vpop.f32.mrb[0].mxu0
    %v1199 = vpop.f32.mrb[0].mxu0
    %1200 = vdwg.mxu0
    %v1202 = vsel %vm184, %v624, 0
    %1204 = vmatprep.subr.bf16.mxu0 0
    %1205 = vmatpush1.bf16.msra.mxu0 %v919
    %1206 = vmatprep.subr.bf16.mxu0 0
    %1207 = vmatpush1.bf16.msra.mxu0 0
    %1208 = vmatprep.subr.bf16.mxu0 0
    %1209 = vmatpush1.bf16.msra.mxu0 0
    %1210 = vmatprep.subr.bf16.mxu0 0
    %1211 = vmatpush1.bf16.msra.mxu0 0
    %1212 = vmatprep.subr.bf16.mxu0 0
    %1213 = vmatpush1.bf16.msra.mxu0 0
    %1214 = vmatprep.subr.bf16.mxu0 0
    %1215 = vmatpush1.bf16.msra.mxu0 0
    %1216 = vmatprep.subr.bf16.mxu0 0
    %1217 = vmatpush1.bf16.msra.mxu0 0
    %1218 = vmatprep.subr.bf16.mxu0 0
    %1219 = vmatpush1.bf16.msra.mxu0 0
    %1220 = vmatprep.subr.bf16.mxu0 0
    %1221 = vmatpush1.bf16.msra.mxu0 0
    %1222 = vmatprep.subr.bf16.mxu0 0
    %1223 = vmatpush1.bf16.msra.mxu0 0
    %1224 = vmatprep.subr.bf16.mxu0 0
    %1225 = vmatpush1.bf16.msra.mxu0 0
    %1226 = vmatprep.subr.bf16.mxu0 0
    %1227 = vmatpush1.bf16.msra.mxu0 0
    %1228 = vmatprep.subr.bf16.mxu0 0
    %1229 = vmatpush1.bf16.msra.mxu0 0
    %1230 = vmatprep.subr.bf16.mxu0 0
    %1231 = vmatpush1.bf16.msra.mxu0 0
    %1232 = vmatprep.subr.bf16.mxu0 0
    %1233 = vmatpush1.bf16.msra.mxu0 0
    %1234 = vmatprep.subr.bf16.mxu0 0
    %1235 = vmatpush1.bf16.msra.mxu0 0
    %1236 = vmatprep.mubr.bf16.mxu0 0
    %1237 = vmatmul.mubr.bf16.gmra.mrb[0].mxu0 %v1202
    %v1238 = vpop.f32.mrb[0].mxu0
    %v1239 = vadd.f32 %v1196, %v1238
    %v1240 = vpop.f32.mrb[0].mxu0
    %v1241 = vpop.f32.mrb[0].mxu0
    %v1242 = vpop.f32.mrb[0].mxu0
    %1243 = vdwg.mxu0
    %1244 = vrot.lane.b32.xlu0 %v180, 112
    %v1245 = vpop.permute.xlu0 %1244
    %1246 = vrot.lane.b32.xlu0 %v180, 80
    %v1247 = vpop.permute.xlu0 %1246
    %v1249 = vsel %vm184, %v1245, 0
    %v1252 = vsel %vm184, %v1247, 0
    %1254 = vmatprep.subr.bf16.mxu0 0
    %1255 = vmatpush1.bf16.xpose.msra.mxu0 %v1252
    %1256 = vmatprep.subr.bf16.mxu0 0
    %1257 = vmatpush1.bf16.xpose.msra.mxu0 0
    %1258 = vmatprep.subr.bf16.mxu0 0
    %1259 = vmatpush1.bf16.xpose.msra.mxu0 0
    %1260 = vmatprep.subr.bf16.mxu0 0
    %1261 = vmatpush1.bf16.xpose.msra.mxu0 0
    %1262 = vmatprep.subr.bf16.mxu0 0
    %1263 = vmatpush1.bf16.xpose.msra.mxu0 0
    %1264 = vmatprep.subr.bf16.mxu0 0
    %1265 = vmatpush1.bf16.xpose.msra.mxu0 0
    %1266 = vmatprep.subr.bf16.mxu0 0
    %1267 = vmatpush1.bf16.xpose.msra.mxu0 0
    %1268 = vmatprep.subr.bf16.mxu0 0
    %1269 = vmatpush1.bf16.xpose.msra.mxu0 0
    %1270 = vmatprep.subr.bf16.mxu0 0
    %1271 = vmatpush1.bf16.xpose.msra.mxu0 0
    %1272 = vmatprep.subr.bf16.mxu0 0
    %1273 = vmatpush1.bf16.xpose.msra.mxu0 0
    %1274 = vmatprep.subr.bf16.mxu0 0
    %1275 = vmatpush1.bf16.xpose.msra.mxu0 0
    %1276 = vmatprep.subr.bf16.mxu0 0
    %1277 = vmatpush1.bf16.xpose.msra.mxu0 0
    %1278 = vmatprep.subr.bf16.mxu0 0
    %1279 = vmatpush1.bf16.xpose.msra.mxu0 0
    %1280 = vmatprep.subr.bf16.mxu0 0
    %1281 = vmatpush1.bf16.xpose.msra.mxu0 0
    %1282 = vmatprep.subr.bf16.mxu0 0
    %1283 = vmatpush1.bf16.xpose.msra.mxu0 0
    %1284 = vmatprep.subr.bf16.mxu0 0
    %1285 = vmatpush1.bf16.xpose.msra.mxu0 0
    %1286 = vmatprep.mubr.bf16.mxu0 0
    %1287 = vmatmul.mubr.bf16.gmra.mrb[0].mxu0 %v1249
    %v1288 = vpop.f32.mrb[0].mxu0
    %v1289 = vadd.f32 0.0, %v1288
    %v1290 = vpop.f32.mrb[0].mxu0
    %v1291 = vpop.f32.mrb[0].mxu0
    %v1292 = vadd.f32 0.0, %v1291
    %v1293 = vpop.f32.mrb[0].mxu0
    %1294 = vdwg.mxu0
    %1295 = vrot.lane.b32.xlu0 %v232, 80
    %v1296 = vpop.permute.xlu0 %1295
    %v1298 = vsel %vm184, %v1296, 0
    %1300 = vmatprep.subr.bf16.mxu0 0
    %1301 = vmatpush1.bf16.xpose.msra.mxu0 %v1298
    %1302 = vmatprep.subr.bf16.mxu0 0
    %1303 = vmatpush1.bf16.xpose.msra.mxu0 0
    %1304 = vmatprep.subr.bf16.mxu0 0
    %1305 = vmatpush1.bf16.xpose.msra.mxu0 0
    %1306 = vmatprep.subr.bf16.mxu0 0
    %1307 = vmatpush1.bf16.xpose.msra.mxu0 0
    %1308 = vmatprep.subr.bf16.mxu0 0
    %1309 = vmatpush1.bf16.xpose.msra.mxu0 0
    %1310 = vmatprep.subr.bf16.mxu0 0
    %1311 = vmatpush1.bf16.xpose.msra.mxu0 0
    %1312 = vmatprep.subr.bf16.mxu0 0
    %1313 = vmatpush1.bf16.xpose.msra.mxu0 0
    %1314 = vmatprep.subr.bf16.mxu0 0
    %1315 = vmatpush1.bf16.xpose.msra.mxu0 0
    %1316 = vmatprep.subr.bf16.mxu0 0
    %1317 = vmatpush1.bf16.xpose.msra.mxu0 0
    %1318 = vmatprep.subr.bf16.mxu0 0
    %1319 = vmatpush1.bf16.xpose.msra.mxu0 0
    %1320 = vmatprep.subr.bf16.mxu0 0
    %1321 = vmatpush1.bf16.xpose.msra.mxu0 0
    %1322 = vmatprep.subr.bf16.mxu0 0
    %1323 = vmatpush1.bf16.xpose.msra.mxu0 0
    %1324 = vmatprep.subr.bf16.mxu0 0
    %1325 = vmatpush1.bf16.xpose.msra.mxu0 0
    %1326 = vmatprep.subr.bf16.mxu0 0
    %1327 = vmatpush1.bf16.xpose.msra.mxu0 0
    %1328 = vmatprep.subr.bf16.mxu0 0
    %1329 = vmatpush1.bf16.xpose.msra.mxu0 0
    %1330 = vmatprep.subr.bf16.mxu0 0
    %1331 = vmatpush1.bf16.xpose.msra.mxu0 0
    %1332 = vmatprep.mubr.bf16.mxu0 0
    %1333 = vmatmul.mubr.bf16.gmra.mrb[0].mxu0 %v1249
    %v1334 = vpop.f32.mrb[0].mxu0
    %v1335 = vadd.f32 0.0, %v1334
    %v1336 = vpop.f32.mrb[0].mxu0
    %v1337 = vpop.f32.mrb[0].mxu0
    %v1338 = vadd.f32 0.0, %v1337
    %v1339 = vpop.f32.mrb[0].mxu0
    %1340 = vdwg.mxu0
    %v1341 = vsel %vm280, %v1289, -inf
    %1342 = vmax.xlane.f32.xlu0 %v1341
    %v1343 = vpop.xlane.xlu0 %1342
    %v1344 = vsel %vm284, %v1292, -inf
    %1345 = vmax.xlane.f32.xlu0 %v1344
    %v1346 = vpop.xlane.xlu0 %1345
    %v1347 = vsel %vm184, %v1335, -inf
    %1348 = vmax.xlane.f32.xlu0 %v1347
    %v1349 = vpop.xlane.xlu0 %1348
    %v1350 = vsel %vm291, %v1338, -inf
    %1351 = vmax.xlane.f32.xlu0 %v1350
    %v1352 = vpop.xlane.xlu0 %1351
    %v1353 = vmax.f32 %v1343, %v1349
    %v1354 = vmax.f32 %v1346, %v1352
    %v1355 = vsub.f32 %v1289, %v1353
    %v1356 = vsub.f32 %v1292, %v1354
    %v1357 = vmul.f32 %v1355, 1.442695
    %v1358 = vpow.pop %v1357
    %v1359 = vmul.f32 %v1356, 1.442695
    %v1360 = vpow.pop %v1359
    %v1361 = vsub.f32 %v1335, %v1353
    %v1362 = vsub.f32 %v1338, %v1354
    %v1363 = vmul.f32 %v1361, 1.442695
    %v1364 = vpow.pop %v1363
    %v1365 = vmul.f32 %v1362, 1.442695
    %v1366 = vpow.pop %v1365
    %v1367 = vsel %vm280, %v1358, 0.0
    %1368 = vadd.xlane.f32.xlu0 %v1367
    %v1369 = vpop.xlane.xlu0 %1368
    %v1370 = vsel %vm284, %v1360, 0.0
    %1371 = vadd.xlane.f32.xlu0 %v1370
    %v1372 = vpop.xlane.xlu0 %1371
    %v1373 = vsel %vm184, %v1364, 0.0
    %1374 = vadd.xlane.f32.xlu0 %v1373
    %v1375 = vpop.xlane.xlu0 %1374
    %v1376 = vsel %vm291, %v1366, 0.0
    %1377 = vadd.xlane.f32.xlu0 %v1376
    %v1378 = vpop.xlane.xlu0 %1377
    %v1379 = vadd.f32 %v1369, %v1375
    %v1380 = vadd.f32 %v1372, %v1378
    %v1381 = vrcp.pop %v1379
    %v1382 = vrcp.pop %v1380
    %v1383 = vpack.c.bf16 %v1360, %v1358
    %v1384 = vpack.c.bf16 %v1366, %v1364
    %1385 = vrot.lane.b32.xlu0 %v232, 48
    %v1386 = vpop.permute.xlu0 %1385
    %v1388 = vsel %vm184, %v1384, 0
    %v1391 = vsel %vm332, %v1386, 0
    %1393 = vmatprep.subr.bf16.mxu0 0
    %1394 = vmatpush1.bf16.msra.mxu0 %v1391
    %1395 = vmatprep.subr.bf16.mxu0 0
    %1396 = vmatpush1.bf16.msra.mxu0 0
    %1397 = vmatprep.subr.bf16.mxu0 0
    %1398 = vmatpush1.bf16.msra.mxu0 0
    %1399 = vmatprep.subr.bf16.mxu0 0
    %1400 = vmatpush1.bf16.msra.mxu0 0
    %1401 = vmatprep.subr.bf16.mxu0 0
    %1402 = vmatpush1.bf16.msra.mxu0 0
    %1403 = vmatprep.subr.bf16.mxu0 0
    %1404 = vmatpush1.bf16.msra.mxu0 0
    %1405 = vmatprep.subr.bf16.mxu0 0
    %1406 = vmatpush1.bf16.msra.mxu0 0
    %1407 = vmatprep.subr.bf16.mxu0 0
    %1408 = vmatpush1.bf16.msra.mxu0 0
    %1409 = vmatprep.subr.bf16.mxu0 0
    %1410 = vmatpush1.bf16.msra.mxu0 0
    %1411 = vmatprep.subr.bf16.mxu0 0
    %1412 = vmatpush1.bf16.msra.mxu0 0
    %1413 = vmatprep.subr.bf16.mxu0 0
    %1414 = vmatpush1.bf16.msra.mxu0 0
    %1415 = vmatprep.subr.bf16.mxu0 0
    %1416 = vmatpush1.bf16.msra.mxu0 0
    %1417 = vmatprep.subr.bf16.mxu0 0
    %1418 = vmatpush1.bf16.msra.mxu0 0
    %1419 = vmatprep.subr.bf16.mxu0 0
    %1420 = vmatpush1.bf16.msra.mxu0 0
    %1421 = vmatprep.subr.bf16.mxu0 0
    %1422 = vmatpush1.bf16.msra.mxu0 0
    %1423 = vmatprep.subr.bf16.mxu0 0
    %1424 = vmatpush1.bf16.msra.mxu0 0
    %1425 = vmatprep.mubr.bf16.mxu0 0
    %1426 = vmatmul.mubr.bf16.gmra.mrb[0].mxu0 %v1388
    %v1427 = vpop.f32.mrb[0].mxu0
    %v1428 = vadd.f32 0.0, %v1427
    %v1429 = vpop.f32.mrb[0].mxu0
    %v1430 = vpop.f32.mrb[0].mxu0
    %v1431 = vadd.f32 0.0, %v1430
    %v1432 = vpop.f32.mrb[0].mxu0
    %1433 = vdwg.mxu0
    %1434 = vrot.lane.b32.xlu0 %v180, 48
    %v1435 = vpop.permute.xlu0 %1434
    %v1437 = vsel %vm280, %v1383, 0
    %v1440 = vsel %vm382, %v1435, 0
    %1442 = vmatprep.subr.bf16.mxu0 0
    %1443 = vmatpush1.bf16.msra.mxu0 %v1440
    %1444 = vmatprep.subr.bf16.mxu0 0
    %1445 = vmatpush1.bf16.msra.mxu0 0
    %1446 = vmatprep.subr.bf16.mxu0 0
    %1447 = vmatpush1.bf16.msra.mxu0 0
    %1448 = vmatprep.subr.bf16.mxu0 0
    %1449 = vmatpush1.bf16.msra.mxu0 0
    %1450 = vmatprep.subr.bf16.mxu0 0
    %1451 = vmatpush1.bf16.msra.mxu0 0
    %1452 = vmatprep.subr.bf16.mxu0 0
    %1453 = vmatpush1.bf16.msra.mxu0 0
    %1454 = vmatprep.subr.bf16.mxu0 0
    %1455 = vmatpush1.bf16.msra.mxu0 0
    %1456 = vmatprep.subr.bf16.mxu0 0
    %1457 = vmatpush1.bf16.msra.mxu0 0
    %1458 = vmatprep.subr.bf16.mxu0 0
    %1459 = vmatpush1.bf16.msra.mxu0 0
    %1460 = vmatprep.subr.bf16.mxu0 0
    %1461 = vmatpush1.bf16.msra.mxu0 0
    %1462 = vmatprep.subr.bf16.mxu0 0
    %1463 = vmatpush1.bf16.msra.mxu0 0
    %1464 = vmatprep.subr.bf16.mxu0 0
    %1465 = vmatpush1.bf16.msra.mxu0 0
    %1466 = vmatprep.subr.bf16.mxu0 0
    %1467 = vmatpush1.bf16.msra.mxu0 0
    %1468 = vmatprep.subr.bf16.mxu0 0
    %1469 = vmatpush1.bf16.msra.mxu0 0
    %1470 = vmatprep.subr.bf16.mxu0 0
    %1471 = vmatpush1.bf16.msra.mxu0 0
    %1472 = vmatprep.subr.bf16.mxu0 0
    %1473 = vmatpush1.bf16.msra.mxu0 0
    %1474 = vmatprep.mubr.bf16.mxu0 0
    %1475 = vmatmul.mubr.bf16.gmra.mrb[0].mxu0 %v1437
    %v1476 = vpop.f32.mrb[0].mxu0
    %v1477 = vadd.f32 %v1428, %v1476
    %v1478 = vpop.f32.mrb[0].mxu0
    %v1479 = vpop.f32.mrb[0].mxu0
    %v1480 = vadd.f32 %v1431, %v1479
    %v1481 = vpop.f32.mrb[0].mxu0
    %1482 = vdwg.mxu0
    %v1483 = vmul.f32 %v1477, %v1381
    %v1484 = vmul.f32 %v1480, %v1382
    %v1485 = vpack.c.bf16 %v1484, %v1483
    %v1486 = vpack.c.bf16 %v178, %v178
    %v1488 = vsel %vm184, %v1485, 0
    %v1491 = vsel %vm332, %v1486, 0
    %1493 = vmatprep.subr.bf16.mxu0 0
    %1494 = vmatpush1.bf16.msra.mxu0 %v1491
    %1495 = vmatprep.subr.bf16.mxu0 0
    %1496 = vmatpush1.bf16.msra.mxu0 0
    %1497 = vmatprep.subr.bf16.mxu0 0
    %1498 = vmatpush1.bf16.msra.mxu0 0
    %1499 = vmatprep.subr.bf16.mxu0 0
    %1500 = vmatpush1.bf16.msra.mxu0 0
    %1501 = vmatprep.subr.bf16.mxu0 0
    %1502 = vmatpush1.bf16.msra.mxu0 0
    %1503 = vmatprep.subr.bf16.mxu0 0
    %1504 = vmatpush1.bf16.msra.mxu0 0
    %1505 = vmatprep.subr.bf16.mxu0 0
    %1506 = vmatpush1.bf16.msra.mxu0 0
    %1507 = vmatprep.subr.bf16.mxu0 0
    %1508 = vmatpush1.bf16.msra.mxu0 0
    %1509 = vmatprep.subr.bf16.mxu0 0
    %1510 = vmatpush1.bf16.msra.mxu0 0
    %1511 = vmatprep.subr.bf16.mxu0 0
    %1512 = vmatpush1.bf16.msra.mxu0 0
    %1513 = vmatprep.subr.bf16.mxu0 0
    %1514 = vmatpush1.bf16.msra.mxu0 0
    %1515 = vmatprep.subr.bf16.mxu0 0
    %1516 = vmatpush1.bf16.msra.mxu0 0
    %1517 = vmatprep.subr.bf16.mxu0 0
    %1518 = vmatpush1.bf16.msra.mxu0 0
    %1519 = vmatprep.subr.bf16.mxu0 0
    %1520 = vmatpush1.bf16.msra.mxu0 0
    %1521 = vmatprep.subr.bf16.mxu0 0
    %1522 = vmatpush1.bf16.msra.mxu0 0
    %1523 = vmatprep.subr.bf16.mxu0 0
    %1524 = vmatpush1.bf16.msra.mxu0 0
    %1525 = vmatprep.mubr.bf16.mxu0 0
    %1526 = vmatmul.mubr.bf16.gmra.mrb[0].mxu0 %v1488
    %v1527 = vpop.f32.mrb[0].mxu0
    %v1528 = vadd.f32 0.0, %v1527
    %v1529 = vpop.f32.mrb[0].mxu0
    %v1530 = vpop.f32.mrb[0].mxu0
    %v1531 = vadd.f32 0.0, %v1530
    %v1532 = vpop.f32.mrb[0].mxu0
    %1533 = vdwg.mxu0
    %v1534 = vadd.f32 %v956, %v1528
    %v1535 = vadd.f32 %v959, %v1531
    %1536 = vrot.lane.b32.xlu0 %v232, 112
    %v1537 = vpop.permute.xlu0 %1536
    %v1539 = vsel %vm184, %v1537, 0
    %1541 = vmatprep.subr.bf16.mxu0 0
    %1542 = vmatpush1.bf16.xpose.msra.mxu0 %v1252
    %1543 = vmatprep.subr.bf16.mxu0 0
    %1544 = vmatpush1.bf16.xpose.msra.mxu0 0
    %1545 = vmatprep.subr.bf16.mxu0 0
    %1546 = vmatpush1.bf16.xpose.msra.mxu0 0
    %1547 = vmatprep.subr.bf16.mxu0 0
    %1548 = vmatpush1.bf16.xpose.msra.mxu0 0
    %1549 = vmatprep.subr.bf16.mxu0 0
    %1550 = vmatpush1.bf16.xpose.msra.mxu0 0
    %1551 = vmatprep.subr.bf16.mxu0 0
    %1552 = vmatpush1.bf16.xpose.msra.mxu0 0
    %1553 = vmatprep.subr.bf16.mxu0 0
    %1554 = vmatpush1.bf16.xpose.msra.mxu0 0
    %1555 = vmatprep.subr.bf16.mxu0 0
    %1556 = vmatpush1.bf16.xpose.msra.mxu0 0
    %1557 = vmatprep.subr.bf16.mxu0 0
    %1558 = vmatpush1.bf16.xpose.msra.mxu0 0
    %1559 = vmatprep.subr.bf16.mxu0 0
    %1560 = vmatpush1.bf16.xpose.msra.mxu0 0
    %1561 = vmatprep.subr.bf16.mxu0 0
    %1562 = vmatpush1.bf16.xpose.msra.mxu0 0
    %1563 = vmatprep.subr.bf16.mxu0 0
    %1564 = vmatpush1.bf16.xpose.msra.mxu0 0
    %1565 = vmatprep.subr.bf16.mxu0 0
    %1566 = vmatpush1.bf16.xpose.msra.mxu0 0
    %1567 = vmatprep.subr.bf16.mxu0 0
    %1568 = vmatpush1.bf16.xpose.msra.mxu0 0
    %1569 = vmatprep.subr.bf16.mxu0 0
    %1570 = vmatpush1.bf16.xpose.msra.mxu0 0
    %1571 = vmatprep.subr.bf16.mxu0 0
    %1572 = vmatpush1.bf16.xpose.msra.mxu0 0
    %1573 = vmatprep.mubr.bf16.mxu0 0
    %1574 = vmatmul.mubr.bf16.gmra.mrb[0].mxu0 %v1539
    %v1575 = vpop.f32.mrb[0].mxu0
    %v1576 = vadd.f32 0.0, %v1575
    %v1577 = vpop.f32.mrb[0].mxu0
    %v1578 = vpop.f32.mrb[0].mxu0
    %v1579 = vpop.f32.mrb[0].mxu0
    %1580 = vdwg.mxu0
    %1581 = vmatprep.subr.bf16.mxu0 0
    %1582 = vmatpush1.bf16.xpose.msra.mxu0 %v1298
    %1583 = vmatprep.subr.bf16.mxu0 0
    %1584 = vmatpush1.bf16.xpose.msra.mxu0 0
    %1585 = vmatprep.subr.bf16.mxu0 0
    %1586 = vmatpush1.bf16.xpose.msra.mxu0 0
    %1587 = vmatprep.subr.bf16.mxu0 0
    %1588 = vmatpush1.bf16.xpose.msra.mxu0 0
    %1589 = vmatprep.subr.bf16.mxu0 0
    %1590 = vmatpush1.bf16.xpose.msra.mxu0 0
    %1591 = vmatprep.subr.bf16.mxu0 0
    %1592 = vmatpush1.bf16.xpose.msra.mxu0 0
    %1593 = vmatprep.subr.bf16.mxu0 0
    %1594 = vmatpush1.bf16.xpose.msra.mxu0 0
    %1595 = vmatprep.subr.bf16.mxu0 0
    %1596 = vmatpush1.bf16.xpose.msra.mxu0 0
    %1597 = vmatprep.subr.bf16.mxu0 0
    %1598 = vmatpush1.bf16.xpose.msra.mxu0 0
    %1599 = vmatprep.subr.bf16.mxu0 0
    %1600 = vmatpush1.bf16.xpose.msra.mxu0 0
    %1601 = vmatprep.subr.bf16.mxu0 0
    %1602 = vmatpush1.bf16.xpose.msra.mxu0 0
    %1603 = vmatprep.subr.bf16.mxu0 0
    %1604 = vmatpush1.bf16.xpose.msra.mxu0 0
    %1605 = vmatprep.subr.bf16.mxu0 0
    %1606 = vmatpush1.bf16.xpose.msra.mxu0 0
    %1607 = vmatprep.subr.bf16.mxu0 0
    %1608 = vmatpush1.bf16.xpose.msra.mxu0 0
    %1609 = vmatprep.subr.bf16.mxu0 0
    %1610 = vmatpush1.bf16.xpose.msra.mxu0 0
    %1611 = vmatprep.subr.bf16.mxu0 0
    %1612 = vmatpush1.bf16.xpose.msra.mxu0 0
    %1613 = vmatprep.mubr.bf16.mxu0 0
    %1614 = vmatmul.mubr.bf16.gmra.mrb[0].mxu0 %v1539
    %v1615 = vpop.f32.mrb[0].mxu0
    %v1616 = vadd.f32 0.0, %v1615
    %v1617 = vpop.f32.mrb[0].mxu0
    %v1618 = vpop.f32.mrb[0].mxu0
    %v1619 = vpop.f32.mrb[0].mxu0
    %1620 = vdwg.mxu0
    %v1621 = vsel %vm280, %v1576, -inf
    %1622 = vmax.xlane.f32.xlu0 %v1621
    %v1623 = vpop.xlane.xlu0 %1622
    %v1624 = vsel %vm184, %v1616, -inf
    %1625 = vmax.xlane.f32.xlu0 %v1624
    %v1626 = vpop.xlane.xlu0 %1625
    %v1627 = vmax.f32 %v1623, %v1626
    %v1628 = vsub.f32 %v1576, %v1627
    %v1629 = vmul.f32 %v1628, 1.442695
    %v1630 = vpow.pop %v1629
    %v1631 = vsub.f32 %v1616, %v1627
    %v1632 = vmul.f32 %v1631, 1.442695
    %v1633 = vpow.pop %v1632
    %v1634 = vsel %vm280, %v1630, 0.0
    %1635 = vadd.xlane.f32.xlu0 %v1634
    %v1636 = vpop.xlane.xlu0 %1635
    %v1637 = vsel %vm184, %v1633, 0.0
    %1638 = vadd.xlane.f32.xlu0 %v1637
    %v1639 = vpop.xlane.xlu0 %1638
    %v1640 = vadd.f32 %v1636, %v1639
    %v1641 = vrcp.pop %v1640
    %v1642 = vpack.c.bf16 %v1630, %v1630
    %v1643 = vpack.c.bf16 %v1633, %v1633
    %v1645 = vsel %vm184, %v1643, 0
    %1647 = vmatprep.subr.bf16.mxu0 0
    %1648 = vmatpush1.bf16.msra.mxu0 %v1391
    %1649 = vmatprep.subr.bf16.mxu0 0
    %1650 = vmatpush1.bf16.msra.mxu0 0
    %1651 = vmatprep.subr.bf16.mxu0 0
    %1652 = vmatpush1.bf16.msra.mxu0 0
    %1653 = vmatprep.subr.bf16.mxu0 0
    %1654 = vmatpush1.bf16.msra.mxu0 0
    %1655 = vmatprep.subr.bf16.mxu0 0
    %1656 = vmatpush1.bf16.msra.mxu0 0
    %1657 = vmatprep.subr.bf16.mxu0 0
    %1658 = vmatpush1.bf16.msra.mxu0 0
    %1659 = vmatprep.subr.bf16.mxu0 0
    %1660 = vmatpush1.bf16.msra.mxu0 0
    %1661 = vmatprep.subr.bf16.mxu0 0
    %1662 = vmatpush1.bf16.msra.mxu0 0
    %1663 = vmatprep.subr.bf16.mxu0 0
    %1664 = vmatpush1.bf16.msra.mxu0 0
    %1665 = vmatprep.subr.bf16.mxu0 0
    %1666 = vmatpush1.bf16.msra.mxu0 0
    %1667 = vmatprep.subr.bf16.mxu0 0
    %1668 = vmatpush1.bf16.msra.mxu0 0
    %1669 = vmatprep.subr.bf16.mxu0 0
    %1670 = vmatpush1.bf16.msra.mxu0 0
    %1671 = vmatprep.subr.bf16.mxu0 0
    %1672 = vmatpush1.bf16.msra.mxu0 0
    %1673 = vmatprep.subr.bf16.mxu0 0
    %1674 = vmatpush1.bf16.msra.mxu0 0
    %1675 = vmatprep.subr.bf16.mxu0 0
    %1676 = vmatpush1.bf16.msra.mxu0 0
    %1677 = vmatprep.subr.bf16.mxu0 0
    %1678 = vmatpush1.bf16.msra.mxu0 0
    %1679 = vmatprep.mubr.bf16.mxu0 0
    %1680 = vmatmul.mubr.bf16.gmra.mrb[0].mxu0 %v1645
    %v1681 = vpop.f32.mrb[0].mxu0
    %v1682 = vadd.f32 0.0, %v1681
    %v1683 = vpop.f32.mrb[0].mxu0
    %v1684 = vpop.f32.mrb[0].mxu0
    %v1685 = vpop.f32.mrb[0].mxu0
    %1686 = vdwg.mxu0
    %v1688 = vsel %vm280, %v1642, 0
    %1690 = vmatprep.subr.bf16.mxu0 0
    %1691 = vmatpush1.bf16.msra.mxu0 %v1440
    %1692 = vmatprep.subr.bf16.mxu0 0
    %1693 = vmatpush1.bf16.msra.mxu0 0
    %1694 = vmatprep.subr.bf16.mxu0 0
    %1695 = vmatpush1.bf16.msra.mxu0 0
    %1696 = vmatprep.subr.bf16.mxu0 0
    %1697 = vmatpush1.bf16.msra.mxu0 0
    %1698 = vmatprep.subr.bf16.mxu0 0
    %1699 = vmatpush1.bf16.msra.mxu0 0
    %1700 = vmatprep.subr.bf16.mxu0 0
    %1701 = vmatpush1.bf16.msra.mxu0 0
    %1702 = vmatprep.subr.bf16.mxu0 0
    %1703 = vmatpush1.bf16.msra.mxu0 0
    %1704 = vmatprep.subr.bf16.mxu0 0
    %1705 = vmatpush1.bf16.msra.mxu0 0
    %1706 = vmatprep.subr.bf16.mxu0 0
    %1707 = vmatpush1.bf16.msra.mxu0 0
    %1708 = vmatprep.subr.bf16.mxu0 0
    %1709 = vmatpush1.bf16.msra.mxu0 0
    %1710 = vmatprep.subr.bf16.mxu0 0
    %1711 = vmatpush1.bf16.msra.mxu0 0
    %1712 = vmatprep.subr.bf16.mxu0 0
    %1713 = vmatpush1.bf16.msra.mxu0 0
    %1714 = vmatprep.subr.bf16.mxu0 0
    %1715 = vmatpush1.bf16.msra.mxu0 0
    %1716 = vmatprep.subr.bf16.mxu0 0
    %1717 = vmatpush1.bf16.msra.mxu0 0
    %1718 = vmatprep.subr.bf16.mxu0 0
    %1719 = vmatpush1.bf16.msra.mxu0 0
    %1720 = vmatprep.subr.bf16.mxu0 0
    %1721 = vmatpush1.bf16.msra.mxu0 0
    %1722 = vmatprep.mubr.bf16.mxu0 0
    %1723 = vmatmul.mubr.bf16.gmra.mrb[0].mxu0 %v1688
    %v1724 = vpop.f32.mrb[0].mxu0
    %v1725 = vadd.f32 %v1682, %v1724
    %v1726 = vpop.f32.mrb[0].mxu0
    %v1727 = vpop.f32.mrb[0].mxu0
    %v1728 = vpop.f32.mrb[0].mxu0
    %1729 = vdwg.mxu0
    %v1730 = vmul.f32 %v1725, %v1641
    %v1731 = vpack.c.bf16 %v1730, %v1730
    %v1733 = vsel %vm184, %v1731, 0
    %1735 = vmatprep.subr.bf16.mxu0 0
    %1736 = vmatpush1.bf16.msra.mxu0 %v1491
    %1737 = vmatprep.subr.bf16.mxu0 0
    %1738 = vmatpush1.bf16.msra.mxu0 0
    %1739 = vmatprep.subr.bf16.mxu0 0
    %1740 = vmatpush1.bf16.msra.mxu0 0
    %1741 = vmatprep.subr.bf16.mxu0 0
    %1742 = vmatpush1.bf16.msra.mxu0 0
    %1743 = vmatprep.subr.bf16.mxu0 0
    %1744 = vmatpush1.bf16.msra.mxu0 0
    %1745 = vmatprep.subr.bf16.mxu0 0
    %1746 = vmatpush1.bf16.msra.mxu0 0
    %1747 = vmatprep.subr.bf16.mxu0 0
    %1748 = vmatpush1.bf16.msra.mxu0 0
    %1749 = vmatprep.subr.bf16.mxu0 0
    %1750 = vmatpush1.bf16.msra.mxu0 0
    %1751 = vmatprep.subr.bf16.mxu0 0
    %1752 = vmatpush1.bf16.msra.mxu0 0
    %1753 = vmatprep.subr.bf16.mxu0 0
    %1754 = vmatpush1.bf16.msra.mxu0 0
    %1755 = vmatprep.subr.bf16.mxu0 0
    %1756 = vmatpush1.bf16.msra.mxu0 0
    %1757 = vmatprep.subr.bf16.mxu0 0
    %1758 = vmatpush1.bf16.msra.mxu0 0
    %1759 = vmatprep.subr.bf16.mxu0 0
    %1760 = vmatpush1.bf16.msra.mxu0 0
    %1761 = vmatprep.subr.bf16.mxu0 0
    %1762 = vmatpush1.bf16.msra.mxu0 0
    %1763 = vmatprep.subr.bf16.mxu0 0
    %1764 = vmatpush1.bf16.msra.mxu0 0
    %1765 = vmatprep.subr.bf16.mxu0 0
    %1766 = vmatpush1.bf16.msra.mxu0 0
    %1767 = vmatprep.mubr.bf16.mxu0 0
    %1768 = vmatmul.mubr.bf16.gmra.mrb[0].mxu0 %v1733
    %v1769 = vpop.f32.mrb[0].mxu0
    %v1770 = vadd.f32 0.0, %v1769
    %v1771 = vpop.f32.mrb[0].mxu0
    %v1772 = vpop.f32.mrb[0].mxu0
    %v1773 = vpop.f32.mrb[0].mxu0
    %1774 = vdwg.mxu0
    %v1775 = vadd.f32 %v1239, %v1770
    %1776 = vrot.lane.b32.xlu0 %v180, 104
    %v1777 = vpop.permute.xlu0 %1776
    %1778 = vrot.lane.b32.xlu0 %v180, 72
    %v1779 = vpop.permute.xlu0 %1778
    %v1781 = vsel %vm184, %v1777, 0
    %v1784 = vsel %vm184, %v1779, 0
    %1786 = vmatprep.subr.bf16.mxu0 0
    %1787 = vmatpush1.bf16.xpose.msra.mxu0 %v1784
    %1788 = vmatprep.subr.bf16.mxu0 0
    %1789 = vmatpush1.bf16.xpose.msra.mxu0 0
    %1790 = vmatprep.subr.bf16.mxu0 0
    %1791 = vmatpush1.bf16.xpose.msra.mxu0 0
    %1792 = vmatprep.subr.bf16.mxu0 0
    %1793 = vmatpush1.bf16.xpose.msra.mxu0 0
    %1794 = vmatprep.subr.bf16.mxu0 0
    %1795 = vmatpush1.bf16.xpose.msra.mxu0 0
    %1796 = vmatprep.subr.bf16.mxu0 0
    %1797 = vmatpush1.bf16.xpose.msra.mxu0 0
    %1798 = vmatprep.subr.bf16.mxu0 0
    %1799 = vmatpush1.bf16.xpose.msra.mxu0 0
    %1800 = vmatprep.subr.bf16.mxu0 0
    %1801 = vmatpush1.bf16.xpose.msra.mxu0 0
    %1802 = vmatprep.subr.bf16.mxu0 0
    %1803 = vmatpush1.bf16.xpose.msra.mxu0 0
    %1804 = vmatprep.subr.bf16.mxu0 0
    %1805 = vmatpush1.bf16.xpose.msra.mxu0 0
    %1806 = vmatprep.subr.bf16.mxu0 0
    %1807 = vmatpush1.bf16.xpose.msra.mxu0 0
    %1808 = vmatprep.subr.bf16.mxu0 0
    %1809 = vmatpush1.bf16.xpose.msra.mxu0 0
    %1810 = vmatprep.subr.bf16.mxu0 0
    %1811 = vmatpush1.bf16.xpose.msra.mxu0 0
    %1812 = vmatprep.subr.bf16.mxu0 0
    %1813 = vmatpush1.bf16.xpose.msra.mxu0 0
    %1814 = vmatprep.subr.bf16.mxu0 0
    %1815 = vmatpush1.bf16.xpose.msra.mxu0 0
    %1816 = vmatprep.subr.bf16.mxu0 0
    %1817 = vmatpush1.bf16.xpose.msra.mxu0 0
    %1818 = vmatprep.mubr.bf16.mxu0 0
    %1819 = vmatmul.mubr.bf16.gmra.mrb[0].mxu0 %v1781
    %v1820 = vpop.f32.mrb[0].mxu0
    %v1821 = vadd.f32 0.0, %v1820
    %v1822 = vpop.f32.mrb[0].mxu0
    %v1823 = vpop.f32.mrb[0].mxu0
    %v1824 = vadd.f32 0.0, %v1823
    %v1825 = vpop.f32.mrb[0].mxu0
    %1826 = vdwg.mxu0
    %1827 = vrot.lane.b32.xlu0 %v232, 72
    %v1828 = vpop.permute.xlu0 %1827
    %v1830 = vsel %vm184, %v1828, 0
    %1832 = vmatprep.subr.bf16.mxu0 0
    %1833 = vmatpush1.bf16.xpose.msra.mxu0 %v1830
    %1834 = vmatprep.subr.bf16.mxu0 0
    %1835 = vmatpush1.bf16.xpose.msra.mxu0 0
    %1836 = vmatprep.subr.bf16.mxu0 0
    %1837 = vmatpush1.bf16.xpose.msra.mxu0 0
    %1838 = vmatprep.subr.bf16.mxu0 0
    %1839 = vmatpush1.bf16.xpose.msra.mxu0 0
    %1840 = vmatprep.subr.bf16.mxu0 0
    %1841 = vmatpush1.bf16.xpose.msra.mxu0 0
    %1842 = vmatprep.subr.bf16.mxu0 0
    %1843 = vmatpush1.bf16.xpose.msra.mxu0 0
    %1844 = vmatprep.subr.bf16.mxu0 0
    %1845 = vmatpush1.bf16.xpose.msra.mxu0 0
    %1846 = vmatprep.subr.bf16.mxu0 0
    %1847 = vmatpush1.bf16.xpose.msra.mxu0 0
    %1848 = vmatprep.subr.bf16.mxu0 0
    %1849 = vmatpush1.bf16.xpose.msra.mxu0 0
    %1850 = vmatprep.subr.bf16.mxu0 0
    %1851 = vmatpush1.bf16.xpose.msra.mxu0 0
    %1852 = vmatprep.subr.bf16.mxu0 0
    %1853 = vmatpush1.bf16.xpose.msra.mxu0 0
    %1854 = vmatprep.subr.bf16.mxu0 0
    %1855 = vmatpush1.bf16.xpose.msra.mxu0 0
    %1856 = vmatprep.subr.bf16.mxu0 0
    %1857 = vmatpush1.bf16.xpose.msra.mxu0 0
    %1858 = vmatprep.subr.bf16.mxu0 0
    %1859 = vmatpush1.bf16.xpose.msra.mxu0 0
    %1860 = vmatprep.subr.bf16.mxu0 0
    %1861 = vmatpush1.bf16.xpose.msra.mxu0 0
    %1862 = vmatprep.subr.bf16.mxu0 0
    %1863 = vmatpush1.bf16.xpose.msra.mxu0 0
    %1864 = vmatprep.mubr.bf16.mxu0 0
    %1865 = vmatmul.mubr.bf16.gmra.mrb[0].mxu0 %v1781
    %v1866 = vpop.f32.mrb[0].mxu0
    %v1867 = vadd.f32 0.0, %v1866
    %v1868 = vpop.f32.mrb[0].mxu0
    %v1869 = vpop.f32.mrb[0].mxu0
    %v1870 = vadd.f32 0.0, %v1869
    %v1871 = vpop.f32.mrb[0].mxu0
    %1872 = vdwg.mxu0
    %v1873 = vsel %vm280, %v1821, -inf
    %1874 = vmax.xlane.f32.xlu0 %v1873
    %v1875 = vpop.xlane.xlu0 %1874
    %v1876 = vsel %vm284, %v1824, -inf
    %1877 = vmax.xlane.f32.xlu0 %v1876
    %v1878 = vpop.xlane.xlu0 %1877
    %v1879 = vsel %vm184, %v1867, -inf
    %1880 = vmax.xlane.f32.xlu0 %v1879
    %v1881 = vpop.xlane.xlu0 %1880
    %v1882 = vsel %vm291, %v1870, -inf
    %1883 = vmax.xlane.f32.xlu0 %v1882
    %v1884 = vpop.xlane.xlu0 %1883
    %v1885 = vmax.f32 %v1875, %v1881
    %v1886 = vmax.f32 %v1878, %v1884
    %v1887 = vsub.f32 %v1821, %v1885
    %v1888 = vsub.f32 %v1824, %v1886
    %v1889 = vmul.f32 %v1887, 1.442695
    %v1890 = vpow.pop %v1889
    %v1891 = vmul.f32 %v1888, 1.442695
    %v1892 = vpow.pop %v1891
    %v1893 = vsub.f32 %v1867, %v1885
    %v1894 = vsub.f32 %v1870, %v1886
    %v1895 = vmul.f32 %v1893, 1.442695
    %v1896 = vpow.pop %v1895
    %v1897 = vmul.f32 %v1894, 1.442695
    %v1898 = vpow.pop %v1897
    %v1899 = vsel %vm280, %v1890, 0.0
    %1900 = vadd.xlane.f32.xlu0 %v1899
    %v1901 = vpop.xlane.xlu0 %1900
    %v1902 = vsel %vm284, %v1892, 0.0
    %1903 = vadd.xlane.f32.xlu0 %v1902
    %v1904 = vpop.xlane.xlu0 %1903
    %v1905 = vsel %vm184, %v1896, 0.0
    %1906 = vadd.xlane.f32.xlu0 %v1905
    %v1907 = vpop.xlane.xlu0 %1906
    %v1908 = vsel %vm291, %v1898, 0.0
    %1909 = vadd.xlane.f32.xlu0 %v1908
    %v1910 = vpop.xlane.xlu0 %1909
    %v1911 = vadd.f32 %v1901, %v1907
    %v1912 = vadd.f32 %v1904, %v1910
    %v1913 = vrcp.pop %v1911
    %v1914 = vrcp.pop %v1912
    %v1915 = vpack.c.bf16 %v1892, %v1890
    %v1916 = vpack.c.bf16 %v1898, %v1896
    %1917 = vrot.lane.b32.xlu0 %v232, 40
    %v1918 = vpop.permute.xlu0 %1917
    %v1920 = vsel %vm184, %v1916, 0
    %v1923 = vsel %vm332, %v1918, 0
    %1925 = vmatprep.subr.bf16.mxu0 0
    %1926 = vmatpush1.bf16.msra.mxu0 %v1923
    %1927 = vmatprep.subr.bf16.mxu0 0
    %1928 = vmatpush1.bf16.msra.mxu0 0
    %1929 = vmatprep.subr.bf16.mxu0 0
    %1930 = vmatpush1.bf16.msra.mxu0 0
    %1931 = vmatprep.subr.bf16.mxu0 0
    %1932 = vmatpush1.bf16.msra.mxu0 0
    %1933 = vmatprep.subr.bf16.mxu0 0
    %1934 = vmatpush1.bf16.msra.mxu0 0
    %1935 = vmatprep.subr.bf16.mxu0 0
    %1936 = vmatpush1.bf16.msra.mxu0 0
    %1937 = vmatprep.subr.bf16.mxu0 0
    %1938 = vmatpush1.bf16.msra.mxu0 0
    %1939 = vmatprep.subr.bf16.mxu0 0
    %1940 = vmatpush1.bf16.msra.mxu0 0
    %1941 = vmatprep.subr.bf16.mxu0 0
    %1942 = vmatpush1.bf16.msra.mxu0 0
    %1943 = vmatprep.subr.bf16.mxu0 0
    %1944 = vmatpush1.bf16.msra.mxu0 0
    %1945 = vmatprep.subr.bf16.mxu0 0
    %1946 = vmatpush1.bf16.msra.mxu0 0
    %1947 = vmatprep.subr.bf16.mxu0 0
    %1948 = vmatpush1.bf16.msra.mxu0 0
    %1949 = vmatprep.subr.bf16.mxu0 0
    %1950 = vmatpush1.bf16.msra.mxu0 0
    %1951 = vmatprep.subr.bf16.mxu0 0
    %1952 = vmatpush1.bf16.msra.mxu0 0
    %1953 = vmatprep.subr.bf16.mxu0 0
    %1954 = vmatpush1.bf16.msra.mxu0 0
    %1955 = vmatprep.subr.bf16.mxu0 0
    %1956 = vmatpush1.bf16.msra.mxu0 0
    %1957 = vmatprep.mubr.bf16.mxu0 0
    %1958 = vmatmul.mubr.bf16.gmra.mrb[0].mxu0 %v1920
    %v1959 = vpop.f32.mrb[0].mxu0
    %v1960 = vadd.f32 0.0, %v1959
    %v1961 = vpop.f32.mrb[0].mxu0
    %v1962 = vpop.f32.mrb[0].mxu0
    %v1963 = vadd.f32 0.0, %v1962
    %v1964 = vpop.f32.mrb[0].mxu0
    %1965 = vdwg.mxu0
    %1966 = vrot.lane.b32.xlu0 %v180, 40
    %v1967 = vpop.permute.xlu0 %1966
    %v1969 = vsel %vm280, %v1915, 0
    %v1972 = vsel %vm382, %v1967, 0
    %1974 = vmatprep.subr.bf16.mxu0 0
    %1975 = vmatpush1.bf16.msra.mxu0 %v1972
    %1976 = vmatprep.subr.bf16.mxu0 0
    %1977 = vmatpush1.bf16.msra.mxu0 0
    %1978 = vmatprep.subr.bf16.mxu0 0
    %1979 = vmatpush1.bf16.msra.mxu0 0
    %1980 = vmatprep.subr.bf16.mxu0 0
    %1981 = vmatpush1.bf16.msra.mxu0 0
    %1982 = vmatprep.subr.bf16.mxu0 0
    %1983 = vmatpush1.bf16.msra.mxu0 0
    %1984 = vmatprep.subr.bf16.mxu0 0
    %1985 = vmatpush1.bf16.msra.mxu0 0
    %1986 = vmatprep.subr.bf16.mxu0 0
    %1987 = vmatpush1.bf16.msra.mxu0 0
    %1988 = vmatprep.subr.bf16.mxu0 0
    %1989 = vmatpush1.bf16.msra.mxu0 0
    %1990 = vmatprep.subr.bf16.mxu0 0
    %1991 = vmatpush1.bf16.msra.mxu0 0
    %1992 = vmatprep.subr.bf16.mxu0 0
    %1993 = vmatpush1.bf16.msra.mxu0 0
    %1994 = vmatprep.subr.bf16.mxu0 0
    %1995 = vmatpush1.bf16.msra.mxu0 0
    %1996 = vmatprep.subr.bf16.mxu0 0
    %1997 = vmatpush1.bf16.msra.mxu0 0
    %1998 = vmatprep.subr.bf16.mxu0 0
    %1999 = vmatpush1.bf16.msra.mxu0 0
    %2000 = vmatprep.subr.bf16.mxu0 0
    %2001 = vmatpush1.bf16.msra.mxu0 0
    %2002 = vmatprep.subr.bf16.mxu0 0
    %2003 = vmatpush1.bf16.msra.mxu0 0
    %2004 = vmatprep.subr.bf16.mxu0 0
    %2005 = vmatpush1.bf16.msra.mxu0 0
    %2006 = vmatprep.mubr.bf16.mxu0 0
    %2007 = vmatmul.mubr.bf16.gmra.mrb[0].mxu0 %v1969
    %v2008 = vpop.f32.mrb[0].mxu0
    %v2009 = vadd.f32 %v1960, %v2008
    %v2010 = vpop.f32.mrb[0].mxu0
    %v2011 = vpop.f32.mrb[0].mxu0
    %v2012 = vadd.f32 %v1963, %v2011
    %v2013 = vpop.f32.mrb[0].mxu0
    %2014 = vdwg.mxu0
    %v2015 = vmul.f32 %v2009, %v1913
    %v2016 = vmul.f32 %v2012, %v1914
    %v2017 = vpack.c.bf16 %v2016, %v2015
    %v2018 = vpack.c.bf16 %v179, %v179
    %v2020 = vsel %vm184, %v2017, 0
    %v2023 = vsel %vm332, %v2018, 0
    %2025 = vmatprep.subr.bf16.mxu0 0
    %2026 = vmatpush1.bf16.msra.mxu0 %v2023
    %2027 = vmatprep.subr.bf16.mxu0 0
    %2028 = vmatpush1.bf16.msra.mxu0 0
    %2029 = vmatprep.subr.bf16.mxu0 0
    %2030 = vmatpush1.bf16.msra.mxu0 0
    %2031 = vmatprep.subr.bf16.mxu0 0
    %2032 = vmatpush1.bf16.msra.mxu0 0
    %2033 = vmatprep.subr.bf16.mxu0 0
    %2034 = vmatpush1.bf16.msra.mxu0 0
    %2035 = vmatprep.subr.bf16.mxu0 0
    %2036 = vmatpush1.bf16.msra.mxu0 0
    %2037 = vmatprep.subr.bf16.mxu0 0
    %2038 = vmatpush1.bf16.msra.mxu0 0
    %2039 = vmatprep.subr.bf16.mxu0 0
    %2040 = vmatpush1.bf16.msra.mxu0 0
    %2041 = vmatprep.subr.bf16.mxu0 0
    %2042 = vmatpush1.bf16.msra.mxu0 0
    %2043 = vmatprep.subr.bf16.mxu0 0
    %2044 = vmatpush1.bf16.msra.mxu0 0
    %2045 = vmatprep.subr.bf16.mxu0 0
    %2046 = vmatpush1.bf16.msra.mxu0 0
    %2047 = vmatprep.subr.bf16.mxu0 0
    %2048 = vmatpush1.bf16.msra.mxu0 0
    %2049 = vmatprep.subr.bf16.mxu0 0
    %2050 = vmatpush1.bf16.msra.mxu0 0
    %2051 = vmatprep.subr.bf16.mxu0 0
    %2052 = vmatpush1.bf16.msra.mxu0 0
    %2053 = vmatprep.subr.bf16.mxu0 0
    %2054 = vmatpush1.bf16.msra.mxu0 0
    %2055 = vmatprep.subr.bf16.mxu0 0
    %2056 = vmatpush1.bf16.msra.mxu0 0
    %2057 = vmatprep.mubr.bf16.mxu0 0
    %2058 = vmatmul.mubr.bf16.gmra.mrb[0].mxu0 %v2020
    %v2059 = vpop.f32.mrb[0].mxu0
    %v2060 = vadd.f32 0.0, %v2059
    %v2061 = vpop.f32.mrb[0].mxu0
    %v2062 = vpop.f32.mrb[0].mxu0
    %v2063 = vadd.f32 0.0, %v2062
    %v2064 = vpop.f32.mrb[0].mxu0
    %2065 = vdwg.mxu0
    %v2066 = vadd.f32 %v1534, %v2060
    %v2067 = vadd.f32 %v1535, %v2063
    %2068 = vrot.lane.b32.xlu0 %v232, 104
    %v2069 = vpop.permute.xlu0 %2068
    %v2071 = vsel %vm184, %v2069, 0
    %2073 = vmatprep.subr.bf16.mxu0 0
    %2074 = vmatpush1.bf16.xpose.msra.mxu0 %v1784
    %2075 = vmatprep.subr.bf16.mxu0 0
    %2076 = vmatpush1.bf16.xpose.msra.mxu0 0
    %2077 = vmatprep.subr.bf16.mxu0 0
    %2078 = vmatpush1.bf16.xpose.msra.mxu0 0
    %2079 = vmatprep.subr.bf16.mxu0 0
    %2080 = vmatpush1.bf16.xpose.msra.mxu0 0
    %2081 = vmatprep.subr.bf16.mxu0 0
    %2082 = vmatpush1.bf16.xpose.msra.mxu0 0
    %2083 = vmatprep.subr.bf16.mxu0 0
    %2084 = vmatpush1.bf16.xpose.msra.mxu0 0
    %2085 = vmatprep.subr.bf16.mxu0 0
    %2086 = vmatpush1.bf16.xpose.msra.mxu0 0
    %2087 = vmatprep.subr.bf16.mxu0 0
    %2088 = vmatpush1.bf16.xpose.msra.mxu0 0
    %2089 = vmatprep.subr.bf16.mxu0 0
    %2090 = vmatpush1.bf16.xpose.msra.mxu0 0
    %2091 = vmatprep.subr.bf16.mxu0 0
    %2092 = vmatpush1.bf16.xpose.msra.mxu0 0
    %2093 = vmatprep.subr.bf16.mxu0 0
    %2094 = vmatpush1.bf16.xpose.msra.mxu0 0
    %2095 = vmatprep.subr.bf16.mxu0 0
    %2096 = vmatpush1.bf16.xpose.msra.mxu0 0
    %2097 = vmatprep.subr.bf16.mxu0 0
    %2098 = vmatpush1.bf16.xpose.msra.mxu0 0
    %2099 = vmatprep.subr.bf16.mxu0 0
    %2100 = vmatpush1.bf16.xpose.msra.mxu0 0
    %2101 = vmatprep.subr.bf16.mxu0 0
    %2102 = vmatpush1.bf16.xpose.msra.mxu0 0
    %2103 = vmatprep.subr.bf16.mxu0 0
    %2104 = vmatpush1.bf16.xpose.msra.mxu0 0
    %2105 = vmatprep.mubr.bf16.mxu0 0
    %2106 = vmatmul.mubr.bf16.gmra.mrb[0].mxu0 %v2071
    %v2107 = vpop.f32.mrb[0].mxu0
    %v2108 = vadd.f32 0.0, %v2107
    %v2109 = vpop.f32.mrb[0].mxu0
    %v2110 = vpop.f32.mrb[0].mxu0
    %v2111 = vpop.f32.mrb[0].mxu0
    %2112 = vdwg.mxu0
    %2113 = vmatprep.subr.bf16.mxu0 0
    %2114 = vmatpush1.bf16.xpose.msra.mxu0 %v1830
    %2115 = vmatprep.subr.bf16.mxu0 0
    %2116 = vmatpush1.bf16.xpose.msra.mxu0 0
    %2117 = vmatprep.subr.bf16.mxu0 0
    %2118 = vmatpush1.bf16.xpose.msra.mxu0 0
    %2119 = vmatprep.subr.bf16.mxu0 0
    %2120 = vmatpush1.bf16.xpose.msra.mxu0 0
    %2121 = vmatprep.subr.bf16.mxu0 0
    %2122 = vmatpush1.bf16.xpose.msra.mxu0 0
    %2123 = vmatprep.subr.bf16.mxu0 0
    %2124 = vmatpush1.bf16.xpose.msra.mxu0 0
    %2125 = vmatprep.subr.bf16.mxu0 0
    %2126 = vmatpush1.bf16.xpose.msra.mxu0 0
    %2127 = vmatprep.subr.bf16.mxu0 0
    %2128 = vmatpush1.bf16.xpose.msra.mxu0 0
    %2129 = vmatprep.subr.bf16.mxu0 0
    %2130 = vmatpush1.bf16.xpose.msra.mxu0 0
    %2131 = vmatprep.subr.bf16.mxu0 0
    %2132 = vmatpush1.bf16.xpose.msra.mxu0 0
    %2133 = vmatprep.subr.bf16.mxu0 0
    %2134 = vmatpush1.bf16.xpose.msra.mxu0 0
    %2135 = vmatprep.subr.bf16.mxu0 0
    %2136 = vmatpush1.bf16.xpose.msra.mxu0 0
    %2137 = vmatprep.subr.bf16.mxu0 0
    %2138 = vmatpush1.bf16.xpose.msra.mxu0 0
    %2139 = vmatprep.subr.bf16.mxu0 0
    %2140 = vmatpush1.bf16.xpose.msra.mxu0 0
    %2141 = vmatprep.subr.bf16.mxu0 0
    %2142 = vmatpush1.bf16.xpose.msra.mxu0 0
    %2143 = vmatprep.subr.bf16.mxu0 0
    %2144 = vmatpush1.bf16.xpose.msra.mxu0 0
    %2145 = vmatprep.mubr.bf16.mxu0 0
    %2146 = vmatmul.mubr.bf16.gmra.mrb[0].mxu0 %v2071
    %v2147 = vpop.f32.mrb[0].mxu0
    %v2148 = vadd.f32 0.0, %v2147
    %v2149 = vpop.f32.mrb[0].mxu0
    %v2150 = vpop.f32.mrb[0].mxu0
    %v2151 = vpop.f32.mrb[0].mxu0
    %2152 = vdwg.mxu0
    %v2153 = vsel %vm280, %v2108, -inf
    %2154 = vmax.xlane.f32.xlu0 %v2153
    %v2155 = vpop.xlane.xlu0 %2154
    %v2156 = vsel %vm184, %v2148, -inf
    %2157 = vmax.xlane.f32.xlu0 %v2156
    %v2158 = vpop.xlane.xlu0 %2157
    %v2159 = vmax.f32 %v2155, %v2158
    %v2160 = vsub.f32 %v2108, %v2159
    %v2161 = vmul.f32 %v2160, 1.442695
    %v2162 = vpow.pop %v2161
    %v2163 = vsub.f32 %v2148, %v2159
    %v2164 = vmul.f32 %v2163, 1.442695
    %v2165 = vpow.pop %v2164
    %v2166 = vsel %vm280, %v2162, 0.0
    %2167 = vadd.xlane.f32.xlu0 %v2166
    %v2168 = vpop.xlane.xlu0 %2167
    %v2169 = vsel %vm184, %v2165, 0.0
    %2170 = vadd.xlane.f32.xlu0 %v2169
    %v2171 = vpop.xlane.xlu0 %2170
    %v2172 = vadd.f32 %v2168, %v2171
    %v2173 = vrcp.pop %v2172
    %v2174 = vpack.c.bf16 %v2162, %v2162
    %v2175 = vpack.c.bf16 %v2165, %v2165
    %v2177 = vsel %vm184, %v2175, 0
    %2179 = vmatprep.subr.bf16.mxu0 0
    %2180 = vmatpush1.bf16.msra.mxu0 %v1923
    %2181 = vmatprep.subr.bf16.mxu0 0
    %2182 = vmatpush1.bf16.msra.mxu0 0
    %2183 = vmatprep.subr.bf16.mxu0 0
    %2184 = vmatpush1.bf16.msra.mxu0 0
    %2185 = vmatprep.subr.bf16.mxu0 0
    %2186 = vmatpush1.bf16.msra.mxu0 0
    %2187 = vmatprep.subr.bf16.mxu0 0
    %2188 = vmatpush1.bf16.msra.mxu0 0
    %2189 = vmatprep.subr.bf16.mxu0 0
    %2190 = vmatpush1.bf16.msra.mxu0 0
    %2191 = vmatprep.subr.bf16.mxu0 0
    %2192 = vmatpush1.bf16.msra.mxu0 0
    %2193 = vmatprep.subr.bf16.mxu0 0
    %2194 = vmatpush1.bf16.msra.mxu0 0
    %2195 = vmatprep.subr.bf16.mxu0 0
    %2196 = vmatpush1.bf16.msra.mxu0 0
    %2197 = vmatprep.subr.bf16.mxu0 0
    %2198 = vmatpush1.bf16.msra.mxu0 0
    %2199 = vmatprep.subr.bf16.mxu0 0
    %2200 = vmatpush1.bf16.msra.mxu0 0
    %2201 = vmatprep.subr.bf16.mxu0 0
    %2202 = vmatpush1.bf16.msra.mxu0 0
    %2203 = vmatprep.subr.bf16.mxu0 0
    %2204 = vmatpush1.bf16.msra.mxu0 0
    %2205 = vmatprep.subr.bf16.mxu0 0
    %2206 = vmatpush1.bf16.msra.mxu0 0
    %2207 = vmatprep.subr.bf16.mxu0 0
    %2208 = vmatpush1.bf16.msra.mxu0 0
    %2209 = vmatprep.subr.bf16.mxu0 0
    %2210 = vmatpush1.bf16.msra.mxu0 0
    %2211 = vmatprep.mubr.bf16.mxu0 0
    %2212 = vmatmul.mubr.bf16.gmra.mrb[0].mxu0 %v2177
    %v2213 = vpop.f32.mrb[0].mxu0
    %v2214 = vadd.f32 0.0, %v2213
    %v2215 = vpop.f32.mrb[0].mxu0
    %v2216 = vpop.f32.mrb[0].mxu0
    %v2217 = vpop.f32.mrb[0].mxu0
    %2218 = vdwg.mxu0
    %v2220 = vsel %vm280, %v2174, 0
    %2222 = vmatprep.subr.bf16.mxu0 0
    %2223 = vmatpush1.bf16.msra.mxu0 %v1972
    %2224 = vmatprep.subr.bf16.mxu0 0
    %2225 = vmatpush1.bf16.msra.mxu0 0
    %2226 = vmatprep.subr.bf16.mxu0 0
    %2227 = vmatpush1.bf16.msra.mxu0 0
    %2228 = vmatprep.subr.bf16.mxu0 0
    %2229 = vmatpush1.bf16.msra.mxu0 0
    %2230 = vmatprep.subr.bf16.mxu0 0
    %2231 = vmatpush1.bf16.msra.mxu0 0
    %2232 = vmatprep.subr.bf16.mxu0 0
    %2233 = vmatpush1.bf16.msra.mxu0 0
    %2234 = vmatprep.subr.bf16.mxu0 0
    %2235 = vmatpush1.bf16.msra.mxu0 0
    %2236 = vmatprep.subr.bf16.mxu0 0
    %2237 = vmatpush1.bf16.msra.mxu0 0
    %2238 = vmatprep.subr.bf16.mxu0 0
    %2239 = vmatpush1.bf16.msra.mxu0 0
    %2240 = vmatprep.subr.bf16.mxu0 0
    %2241 = vmatpush1.bf16.msra.mxu0 0
    %2242 = vmatprep.subr.bf16.mxu0 0
    %2243 = vmatpush1.bf16.msra.mxu0 0
    %2244 = vmatprep.subr.bf16.mxu0 0
    %2245 = vmatpush1.bf16.msra.mxu0 0
    %2246 = vmatprep.subr.bf16.mxu0 0
    %2247 = vmatpush1.bf16.msra.mxu0 0
    %2248 = vmatprep.subr.bf16.mxu0 0
    %2249 = vmatpush1.bf16.msra.mxu0 0
    %2250 = vmatprep.subr.bf16.mxu0 0
    %2251 = vmatpush1.bf16.msra.mxu0 0
    %2252 = vmatprep.subr.bf16.mxu0 0
    %2253 = vmatpush1.bf16.msra.mxu0 0
    %2254 = vmatprep.mubr.bf16.mxu0 0
    %2255 = vmatmul.mubr.bf16.gmra.mrb[0].mxu0 %v2220
    %v2256 = vpop.f32.mrb[0].mxu0
    %v2257 = vadd.f32 %v2214, %v2256
    %v2258 = vpop.f32.mrb[0].mxu0
    %v2259 = vpop.f32.mrb[0].mxu0
    %v2260 = vpop.f32.mrb[0].mxu0
    %2261 = vdwg.mxu0
    %v2262 = vmul.f32 %v2257, %v2173
    %v2263 = vpack.c.bf16 %v2262, %v2262
    %v2265 = vsel %vm184, %v2263, 0
    %2267 = vmatprep.subr.bf16.mxu0 0
    %2268 = vmatpush1.bf16.msra.mxu0 %v2023
    %2269 = vmatprep.subr.bf16.mxu0 0
    %2270 = vmatpush1.bf16.msra.mxu0 0
    %2271 = vmatprep.subr.bf16.mxu0 0
    %2272 = vmatpush1.bf16.msra.mxu0 0
    %2273 = vmatprep.subr.bf16.mxu0 0
    %2274 = vmatpush1.bf16.msra.mxu0 0
    %2275 = vmatprep.subr.bf16.mxu0 0
    %2276 = vmatpush1.bf16.msra.mxu0 0
    %2277 = vmatprep.subr.bf16.mxu0 0
    %2278 = vmatpush1.bf16.msra.mxu0 0
    %2279 = vmatprep.subr.bf16.mxu0 0
    %2280 = vmatpush1.bf16.msra.mxu0 0
    %2281 = vmatprep.subr.bf16.mxu0 0
    %2282 = vmatpush1.bf16.msra.mxu0 0
    %2283 = vmatprep.subr.bf16.mxu0 0
    %2284 = vmatpush1.bf16.msra.mxu0 0
    %2285 = vmatprep.subr.bf16.mxu0 0
    %2286 = vmatpush1.bf16.msra.mxu0 0
    %2287 = vmatprep.subr.bf16.mxu0 0
    %2288 = vmatpush1.bf16.msra.mxu0 0
    %2289 = vmatprep.subr.bf16.mxu0 0
    %2290 = vmatpush1.bf16.msra.mxu0 0
    %2291 = vmatprep.subr.bf16.mxu0 0
    %2292 = vmatpush1.bf16.msra.mxu0 0
    %2293 = vmatprep.subr.bf16.mxu0 0
    %2294 = vmatpush1.bf16.msra.mxu0 0
    %2295 = vmatprep.subr.bf16.mxu0 0
    %2296 = vmatpush1.bf16.msra.mxu0 0
    %2297 = vmatprep.subr.bf16.mxu0 0
    %2298 = vmatpush1.bf16.msra.mxu0 0
    %2299 = vmatprep.mubr.bf16.mxu0 0
    %2300 = vmatmul.mubr.bf16.gmra.mrb[0].mxu0 %v2265
    %v2301 = vpop.f32.mrb[0].mxu0
    %v2302 = vadd.f32 0.0, %v2301
    %v2303 = vpop.f32.mrb[0].mxu0
    %v2304 = vpop.f32.mrb[0].mxu0
    %v2305 = vpop.f32.mrb[0].mxu0
    %2306 = vdwg.mxu0
    %v2307 = vadd.f32 %v1775, %v2302
    %v2308 = vld [vmem:[%s5] sm:$0x1]
    %v2310 = vlaneseq
    %v2311 = vshrl.u32 %v2310, 7
    %v2312 = vsub.s32 0, %v2311
    %v2313 = vrot.slane %v2308, %v2312
    %v2315 = vadd.f32 %v2066, %v2313
    %v2316 = vadd.f32 %v2067, %v2313
    %v2317 = vadd.f32 %v2307, %v2313
    %v2318 = vld [vmem:[%s14] sm:$0x1]
    %v2319 = vld [vmem:[%s15] sm:$0x1]
    %v2320 = vld [vmem:[%s16] sm:$0x1]
    %v2321 = vld [vmem:[%s17] sm:$0x1]
    %v2322 = vsel %vm87, %v2315, 0.0
    %2323 = vadd.xlane.f32.xlu0 %v2322
    %v2324 = vpop.xlane.xlu0 %2323
    %vm2325 = vcmask 254976
    %v2326 = vsel %vm2325, %v2316, 0.0
    %2327 = vadd.xlane.f32.xlu0 %v2326
    %v2328 = vpop.xlane.xlu0 %2327
    %v2329 = vrcp.pop 32.0
    %v2330 = vmul.f32 %v2324, %v2329
    %v2331 = vmul.f32 %v2328, %v2329
    %v2332 = vsub.f32 %v2315, %v2330
    %v2333 = vsub.f32 %v2316, %v2331
    %v2334 = vmul.f32 %v2332, %v2332
    %v2335 = vmul.f32 %v2333, %v2333
    %v2336 = vsel %vm87, %v2334, 0.0
    %2337 = vadd.xlane.f32.xlu0 %v2336
    %v2338 = vpop.xlane.xlu0 %2337
    %v2339 = vsel %vm2325, %v2335, 0.0
    %2340 = vadd.xlane.f32.xlu0 %v2339
    %v2341 = vpop.xlane.xlu0 %2340
    %v2342 = vmul.f32 %v2338, %v2329
    %v2343 = vmul.f32 %v2341, %v2329
    %v2344 = vadd.f32 %v2342, 1e-05
    %v2345 = vadd.f32 %v2343, 1e-05
    %v2346 = vrsqrt.pop %v2344
    %v2347 = vrsqrt.pop %v2345
    %v2348 = vmul.f32 %v2332, %v2346
    %v2349 = vmul.f32 %v2333, %v2347
    %v2351 = vlaneseq
    %v2352 = vshrl.u32 %v2351, 7
    %v2353 = vsub.s32 0, %v2352
    %v2354 = vrot.slane %v2318, %v2353
    %v2356 = vmul.f32 %v2348, %v2354
    %v2357 = vmul.f32 %v2349, %v2354
    %v2359 = vlaneseq
    %v2360 = vshrl.u32 %v2359, 7
    %v2361 = vsub.s32 0, %v2360
    %v2362 = vrot.slane %v2319, %v2361
    %v2364 = vadd.f32 %v2356, %v2362
    %v2365 = vadd.f32 %v2357, %v2362
    %v2366 = vadd.f32 %v70, %v2364
    %v2367 = vadd.f32 %v71, %v2365
    %v2368 = vsel %vm87, %v2366, 0.0
    %2369 = vadd.xlane.f32.xlu0 %v2368
    %v2370 = vpop.xlane.xlu0 %2369
    %v2371 = vsel %vm2325, %v2367, 0.0
    %2372 = vadd.xlane.f32.xlu0 %v2371
    %v2373 = vpop.xlane.xlu0 %2372
    %v2374 = vmul.f32 %v2370, %v2329
    %v2375 = vmul.f32 %v2373, %v2329
    %v2376 = vsub.f32 %v2366, %v2374
    %v2377 = vsub.f32 %v2367, %v2375
    %v2378 = vmul.f32 %v2376, %v2376
    %v2379 = vmul.f32 %v2377, %v2377
    %v2380 = vsel %vm87, %v2378, 0.0
    %2381 = vadd.xlane.f32.xlu0 %v2380
    %v2382 = vpop.xlane.xlu0 %2381
    %v2383 = vsel %vm2325, %v2379, 0.0
    %2384 = vadd.xlane.f32.xlu0 %v2383
    %v2385 = vpop.xlane.xlu0 %2384
    %v2386 = vmul.f32 %v2382, %v2329
    %v2387 = vmul.f32 %v2385, %v2329
    %v2388 = vadd.f32 %v2386, 1e-05
    %v2389 = vadd.f32 %v2387, 1e-05
    %v2390 = vrsqrt.pop %v2388
    %v2391 = vrsqrt.pop %v2389
    %v2392 = vmul.f32 %v2376, %v2390
    %v2393 = vmul.f32 %v2377, %v2391
    %v2395 = vlaneseq
    %v2396 = vshrl.u32 %v2395, 7
    %v2397 = vsub.s32 0, %v2396
    %v2398 = vrot.slane %v2320, %v2397
    %v2400 = vmul.f32 %v2392, %v2398
    %v2401 = vmul.f32 %v2393, %v2398
    %v2403 = vlaneseq
    %v2404 = vshrl.u32 %v2403, 7
    %v2405 = vsub.s32 0, %v2404
    %v2406 = vrot.slane %v2321, %v2405
    %v2408 = vadd.f32 %v2400, %v2406
    %v2409 = vadd.f32 %v2401, %v2406
    %v2410 = vsel %vm87, %v2317, 0.0
    %2411 = vadd.xlane.f32.xlu0 %v2410
    %v2412 = vpop.xlane.xlu0 %2411
    %v2413 = vmul.f32 %v2412, %v2329
    %v2414 = vsub.f32 %v2317, %v2413
    %v2415 = vmul.f32 %v2414, %v2414
    %v2416 = vsel %vm87, %v2415, 0.0
    %2417 = vadd.xlane.f32.xlu0 %v2416
    %v2418 = vpop.xlane.xlu0 %2417
    %v2419 = vmul.f32 %v2418, %v2329
    %v2420 = vadd.f32 %v2419, 1e-05
    %v2421 = vrsqrt.pop %v2420
    %v2422 = vmul.f32 %v2414, %v2421
    %v2423 = vmul.f32 %v2422, %v2354
    %v2424 = vadd.f32 %v2423, %v2362
    %v2425 = vadd.f32 %v72, %v2424
    %v2426 = vsel %vm87, %v2425, 0.0
    %2427 = vadd.xlane.f32.xlu0 %v2426
    %v2428 = vpop.xlane.xlu0 %2427
    %v2429 = vmul.f32 %v2428, %v2329
    %v2430 = vsub.f32 %v2425, %v2429
    %v2431 = vmul.f32 %v2430, %v2430
    %v2432 = vsel %vm87, %v2431, 0.0
    %2433 = vadd.xlane.f32.xlu0 %v2432
    %v2434 = vpop.xlane.xlu0 %2433
    %v2435 = vmul.f32 %v2434, %v2329
    %v2436 = vadd.f32 %v2435, 1e-05
    %v2437 = vrsqrt.pop %v2436
    %v2438 = vmul.f32 %v2430, %v2437
    %v2439 = vmul.f32 %v2438, %v2398
    %v2440 = vadd.f32 %v2439, %v2406
    %2441 = vst.msk [vmem:[#allocation2] sm:$0xff] %vm87, %v2440
    %v2442 = vld [vmem:[%s6] sm:$0xff]
    %v2443 = vld [vmem:[%s6 + $0x8] sm:$0xff]
    %v2444 = vld [vmem:[%s6 + $0x10] sm:$0xff]
    %v2445 = vld [vmem:[%s6 + $0x18] sm:$0xff]
    %v2446 = vpack.c.bf16 %v2409, %v2408
    %v2447 = vpack.c.bf16 %v2443, %v2442
    %v2448 = vpack.c.bf16 %v2445, %v2444
    %v2449 = vld [vmem:[%s7] sm:$0x1]
    %v2451 = vlaneseq
    %v2452 = vshrl.u32 %v2451, 7
    %v2453 = vsub.s32 0, %v2452
    %v2454 = vrot.slane %v2449, %v2453
    %v2457 = vsel %vm87, %v2446, 0
    %2459 = vmatprep.subr.bf16.mxu0 0
    %2460 = vmatpush1.bf16.msra.mxu0 %v2447
    %2461 = vmatprep.subr.bf16.mxu0 0
    %2462 = vmatpush1.bf16.msra.mxu0 %v2448
    %2463 = vmatprep.subr.bf16.mxu0 0
    %2464 = vmatpush1.bf16.msra.mxu0 0
    %2465 = vmatprep.subr.bf16.mxu0 0
    %2466 = vmatpush1.bf16.msra.mxu0 0
    %2467 = vmatprep.subr.bf16.mxu0 0
    %2468 = vmatpush1.bf16.msra.mxu0 0
    %2469 = vmatprep.subr.bf16.mxu0 0
    %2470 = vmatpush1.bf16.msra.mxu0 0
    %2471 = vmatprep.subr.bf16.mxu0 0
    %2472 = vmatpush1.bf16.msra.mxu0 0
    %2473 = vmatprep.subr.bf16.mxu0 0
    %2474 = vmatpush1.bf16.msra.mxu0 0
    %2475 = vmatprep.subr.bf16.mxu0 0
    %2476 = vmatpush1.bf16.msra.mxu0 0
    %2477 = vmatprep.subr.bf16.mxu0 0
    %2478 = vmatpush1.bf16.msra.mxu0 0
    %2479 = vmatprep.subr.bf16.mxu0 0
    %2480 = vmatpush1.bf16.msra.mxu0 0
    %2481 = vmatprep.subr.bf16.mxu0 0
    %2482 = vmatpush1.bf16.msra.mxu0 0
    %2483 = vmatprep.subr.bf16.mxu0 0
    %2484 = vmatpush1.bf16.msra.mxu0 0
    %2485 = vmatprep.subr.bf16.mxu0 0
    %2486 = vmatpush1.bf16.msra.mxu0 0
    %2487 = vmatprep.subr.bf16.mxu0 0
    %2488 = vmatpush1.bf16.msra.mxu0 0
    %2489 = vmatprep.subr.bf16.mxu0 0
    %2490 = vmatpush1.bf16.msra.mxu0 0
    %2491 = vmatprep.mubr.bf16.mxu0 0
    %2492 = vmatmul.mubr.bf16.gmra.mrb[0].mxu0 %v2457
    %v2493 = vpop.f32.mrb[0].mxu0
    %v2494 = vadd.f32 %v2454, %v2493
    %v2495 = vpop.f32.mrb[0].mxu0
    %v2496 = vpop.f32.mrb[0].mxu0
    %v2497 = vadd.f32 %v2454, %v2496
    %v2498 = vpop.f32.mrb[0].mxu0
    %2499 = vdwg.mxu0
    %v2500 = vmax.f32 %v2494, 0.0
    %v2501 = vmax.f32 %v2497, 0.0
    %v2502 = vld [vmem:[%s8] sm:$0xff]
    %v2503 = vld [vmem:[%s8 + $0x8] sm:$0xff]
    %v2504 = vld [vmem:[%s8 + $0x10] sm:$0xff]
    %v2505 = vld [vmem:[%s8 + $0x18] sm:$0xff]
    %v2506 = vld [vmem:[%s8 + $0x20] sm:$0xff]
    %v2507 = vld [vmem:[%s8 + $0x28] sm:$0xff]
    %v2508 = vld [vmem:[%s8 + $0x30] sm:$0xff]
    %v2509 = vld [vmem:[%s8 + $0x38] sm:$0xff]
    %v2510 = vpack.c.bf16 %v2501, %v2500
    %v2511 = vpack.c.bf16 %v2503, %v2502
    %v2512 = vpack.c.bf16 %v2505, %v2504
    %v2513 = vpack.c.bf16 %v2507, %v2506
    %v2514 = vpack.c.bf16 %v2509, %v2508
    %vm2515 = vcmask 523264
    %v2517 = vsel %vm2515, %v2510, 0
    %2519 = vmatprep.subr.bf16.mxu0 0
    %2520 = vmatpush1.bf16.msra.mxu0 %v2511
    %2521 = vmatprep.subr.bf16.mxu0 0
    %2522 = vmatpush1.bf16.msra.mxu0 %v2512
    %2523 = vmatprep.subr.bf16.mxu0 0
    %2524 = vmatpush1.bf16.msra.mxu0 %v2513
    %2525 = vmatprep.subr.bf16.mxu0 0
    %2526 = vmatpush1.bf16.msra.mxu0 %v2514
    %2527 = vmatprep.subr.bf16.mxu0 0
    %2528 = vmatpush1.bf16.msra.mxu0 0
    %2529 = vmatprep.subr.bf16.mxu0 0
    %2530 = vmatpush1.bf16.msra.mxu0 0
    %2531 = vmatprep.subr.bf16.mxu0 0
    %2532 = vmatpush1.bf16.msra.mxu0 0
    %2533 = vmatprep.subr.bf16.mxu0 0
    %2534 = vmatpush1.bf16.msra.mxu0 0
    %2535 = vmatprep.subr.bf16.mxu0 0
    %2536 = vmatpush1.bf16.msra.mxu0 0
    %2537 = vmatprep.subr.bf16.mxu0 0
    %2538 = vmatpush1.bf16.msra.mxu0 0
    %2539 = vmatprep.subr.bf16.mxu0 0
    %2540 = vmatpush1.bf16.msra.mxu0 0
    %2541 = vmatprep.subr.bf16.mxu0 0
    %2542 = vmatpush1.bf16.msra.mxu0 0
    %2543 = vmatprep.subr.bf16.mxu0 0
    %2544 = vmatpush1.bf16.msra.mxu0 0
    %2545 = vmatprep.subr.bf16.mxu0 0
    %2546 = vmatpush1.bf16.msra.mxu0 0
    %2547 = vmatprep.subr.bf16.mxu0 0
    %2548 = vmatpush1.bf16.msra.mxu0 0
    %2549 = vmatprep.subr.bf16.mxu0 0
    %2550 = vmatpush1.bf16.msra.mxu0 0
    %2551 = vmatprep.mubr.bf16.mxu0 0
    %2552 = vmatmul.mubr.bf16.gmra.mrb[0].mxu0 %v2517
    %v2553 = vpop.f32.mrb[0].mxu0
    %v2554 = vadd.f32 0.0, %v2553
    %v2555 = vpop.f32.mrb[0].mxu0
    %v2556 = vpop.f32.mrb[0].mxu0
    %v2557 = vadd.f32 0.0, %v2556
    %v2558 = vpop.f32.mrb[0].mxu0
    %2559 = vdwg.mxu0
    %v2560 = vadd.f32 %v2408, %v2554
    %v2561 = vadd.f32 %v2409, %v2557
    %v2562 = vld [vmem:[%s9] sm:$0x1]
    %v2564 = vlaneseq
    %v2565 = vshrl.u32 %v2564, 7
    %v2566 = vsub.s32 0, %v2565
    %v2567 = vrot.slane %v2562, %v2566
    %v2569 = vadd.f32 %v2560, %v2567
    %v2570 = vadd.f32 %v2561, %v2567
    %v2571 = vld [vmem:[%s18] sm:$0x1]
    %v2572 = vld [vmem:[%s19] sm:$0x1]
    %v2573 = vsel %vm87, %v2569, 0.0
    %2574 = vadd.xlane.f32.xlu0 %v2573
    %v2575 = vpop.xlane.xlu0 %2574
    %v2576 = vsel %vm2325, %v2570, 0.0
    %2577 = vadd.xlane.f32.xlu0 %v2576
    %v2578 = vpop.xlane.xlu0 %2577
    %v2579 = vmul.f32 %v2575, %v2329
    %v2580 = vmul.f32 %v2578, %v2329
    %v2581 = vsub.f32 %v2569, %v2579
    %v2582 = vsub.f32 %v2570, %v2580
    %v2583 = vmul.f32 %v2581, %v2581
    %v2584 = vmul.f32 %v2582, %v2582
    %v2585 = vsel %vm87, %v2583, 0.0
    %2586 = vadd.xlane.f32.xlu0 %v2585
    %v2587 = vpop.xlane.xlu0 %2586
    %v2588 = vsel %vm2325, %v2584, 0.0
    %2589 = vadd.xlane.f32.xlu0 %v2588
    %v2590 = vpop.xlane.xlu0 %2589
    %v2591 = vmul.f32 %v2587, %v2329
    %v2592 = vmul.f32 %v2590, %v2329
    %v2593 = vadd.f32 %v2591, 1e-05
    %v2594 = vadd.f32 %v2592, 1e-05
    %v2595 = vrsqrt.pop %v2593
    %v2596 = vrsqrt.pop %v2594
    %v2597 = vmul.f32 %v2581, %v2595
    %v2598 = vmul.f32 %v2582, %v2596
    %v2600 = vlaneseq
    %v2601 = vshrl.u32 %v2600, 7
    %v2602 = vsub.s32 0, %v2601
    %v2603 = vrot.slane %v2571, %v2602
    %v2605 = vmul.f32 %v2597, %v2603
    %v2606 = vmul.f32 %v2598, %v2603
    %v2608 = vlaneseq
    %v2609 = vshrl.u32 %v2608, 7
    %v2610 = vsub.s32 0, %v2609
    %v2611 = vrot.slane %v2572, %v2610
    %v2613 = vadd.f32 %v2605, %v2611
    %v2614 = vadd.f32 %v2606, %v2611
    %v2615 = vld [vmem:[%s10] sm:$0xff]
    %v2616 = vld [vmem:[%s10 + $0x8] sm:$0xff]
    %v2617 = vld [vmem:[%s10 + $0x10] sm:$0xff]
    %v2618 = vld [vmem:[%s10 + $0x18] sm:$0xff]
    %v2619 = vpack.c.bf16 %v2614, %v2613
    %v2620 = vpack.c.bf16 %v2616, %v2615
    %v2621 = vpack.c.bf16 %v2618, %v2617
    %v2622 = vld [vmem:[%s11] sm:$0x1]
    %v2624 = vlaneseq
    %v2625 = vshrl.u32 %v2624, 7
    %v2626 = vsub.s32 0, %v2625
    %v2627 = vrot.slane %v2622, %v2626
    %v2630 = vsel %vm87, %v2619, 0
    %2632 = vmatprep.subr.bf16.mxu0 0
    %2633 = vmatpush1.bf16.msra.mxu0 %v2620
    %2634 = vmatprep.subr.bf16.mxu0 0
    %2635 = vmatpush1.bf16.msra.mxu0 %v2621
    %2636 = vmatprep.subr.bf16.mxu0 0
    %2637 = vmatpush1.bf16.msra.mxu0 0
    %2638 = vmatprep.subr.bf16.mxu0 0
    %2639 = vmatpush1.bf16.msra.mxu0 0
    %2640 = vmatprep.subr.bf16.mxu0 0
    %2641 = vmatpush1.bf16.msra.mxu0 0
    %2642 = vmatprep.subr.bf16.mxu0 0
    %2643 = vmatpush1.bf16.msra.mxu0 0
    %2644 = vmatprep.subr.bf16.mxu0 0
    %2645 = vmatpush1.bf16.msra.mxu0 0
    %2646 = vmatprep.subr.bf16.mxu0 0
    %2647 = vmatpush1.bf16.msra.mxu0 0
    %2648 = vmatprep.subr.bf16.mxu0 0
    %2649 = vmatpush1.bf16.msra.mxu0 0
    %2650 = vmatprep.subr.bf16.mxu0 0
    %2651 = vmatpush1.bf16.msra.mxu0 0
    %2652 = vmatprep.subr.bf16.mxu0 0
    %2653 = vmatpush1.bf16.msra.mxu0 0
    %2654 = vmatprep.subr.bf16.mxu0 0
    %2655 = vmatpush1.bf16.msra.mxu0 0
    %2656 = vmatprep.subr.bf16.mxu0 0
    %2657 = vmatpush1.bf16.msra.mxu0 0
    %2658 = vmatprep.subr.bf16.mxu0 0
    %2659 = vmatpush1.bf16.msra.mxu0 0
    %2660 = vmatprep.subr.bf16.mxu0 0
    %2661 = vmatpush1.bf16.msra.mxu0 0
    %2662 = vmatprep.subr.bf16.mxu0 0
    %2663 = vmatpush1.bf16.msra.mxu0 0
    %2664 = vmatprep.mubr.bf16.mxu0 0
    %2665 = vmatmul.mubr.bf16.gmra.mrb[0].mxu0 %v2630
    %v2666 = vpop.f32.mrb[0].mxu0
    %v2667 = vadd.f32 %v2627, %v2666
    %v2668 = vpop.f32.mrb[0].mxu0
    %v2669 = vpop.f32.mrb[0].mxu0
    %v2670 = vadd.f32 %v2627, %v2669
    %v2671 = vpop.f32.mrb[0].mxu0
    %2672 = vdwg.mxu0
    %v2673 = vld [vmem:[%s12] sm:$0xff]
    %v2674 = vld [vmem:[%s12 + $0x8] sm:$0xff]
    %v2675 = vld [vmem:[%s12 + $0x10] sm:$0xff]
    %v2676 = vld [vmem:[%s12 + $0x18] sm:$0xff]
    %v2677 = vld [vmem:[%s12 + $0x20] sm:$0xff]
    %v2678 = vld [vmem:[%s13] sm:$0xff]
    %v2679 = vld [vmem:[%s13 + $0x8] sm:$0xff]
    %v2680 = vld [vmem:[%s13 + $0x10] sm:$0xff]
    %v2681 = vld [vmem:[%s13 + $0x18] sm:$0xff]
    %v2682 = vld [vmem:[%s13 + $0x20] sm:$0xff]
    %v2683 = vpack.c.bf16 %v2674, %v2673
    %v2684 = vpack.c.bf16 %v2676, %v2675
    %v2685 = vpack.c.bf16 %v2677, %v2677
    %v2686 = vpack.c.bf16 %v2670, %v2667
    %v2688 = vsel %vm280, %v2683, 0
    %v2691 = vsel %vm280, %v2684, 0
    %v2694 = vsel %vm280, %v2685, 0
    %v2697 = vsel %vm382, %v2686, 0
    %2699 = vmatprep.subr.bf16.mxu0 0
    %2700 = vmatpush1.bf16.msra.mxu0 %v2697
    %2701 = vmatprep.subr.bf16.mxu0 0
    %2702 = vmatpush1.bf16.msra.mxu0 0
    %2703 = vmatprep.subr.bf16.mxu0 0
    %2704 = vmatpush1.bf16.msra.mxu0 0
    %2705 = vmatprep.subr.bf16.mxu0 0
    %2706 = vmatpush1.bf16.msra.mxu0 0
    %2707 = vmatprep.subr.bf16.mxu0 0
    %2708 = vmatpush1.bf16.msra.mxu0 0
    %2709 = vmatprep.subr.bf16.mxu0 0
    %2710 = vmatpush1.bf16.msra.mxu0 0
    %2711 = vmatprep.subr.bf16.mxu0 0
    %2712 = vmatpush1.bf16.msra.mxu0 0
    %2713 = vmatprep.subr.bf16.mxu0 0
    %2714 = vmatpush1.bf16.msra.mxu0 0
    %2715 = vmatprep.subr.bf16.mxu0 0
    %2716 = vmatpush1.bf16.msra.mxu0 0
    %2717 = vmatprep.subr.bf16.mxu0 0
    %2718 = vmatpush1.bf16.msra.mxu0 0
    %2719 = vmatprep.subr.bf16.mxu0 0
    %2720 = vmatpush1.bf16.msra.mxu0 0
    %2721 = vmatprep.subr.bf16.mxu0 0
    %2722 = vmatpush1.bf16.msra.mxu0 0
    %2723 = vmatprep.subr.bf16.mxu0 0
    %2724 = vmatpush1.bf16.msra.mxu0 0
    %2725 = vmatprep.subr.bf16.mxu0 0
    %2726 = vmatpush1.bf16.msra.mxu0 0
    %2727 = vmatprep.subr.bf16.mxu0 0
    %2728 = vmatpush1.bf16.msra.mxu0 0
    %2729 = vmatprep.subr.bf16.mxu0 0
    %2730 = vmatpush1.bf16.msra.mxu0 0
    %2731 = vmatprep.mubr.bf16.mxu0 0
    %2732 = vmatmul.mubr.bf16.gmra.mrb[0].mxu0 %v2688
    %v2733 = vpop.f32.mrb[0].mxu0
    %v2734 = vadd.f32 0.0, %v2733
    %v2735 = vpop.f32.mrb[0].mxu0
    %v2736 = vpop.f32.mrb[0].mxu0
    %v2737 = vadd.f32 0.0, %v2736
    %v2738 = vpop.f32.mrb[0].mxu0
    %2739 = vmatprep.mubr.bf16.mxu0 0
    %2740 = vmatmul.mubr.bf16.gmra.mrb[0].mxu0 %v2691
    %v2741 = vpop.f32.mrb[0].mxu0
    %v2742 = vadd.f32 0.0, %v2741
    %v2743 = vpop.f32.mrb[0].mxu0
    %v2744 = vpop.f32.mrb[0].mxu0
    %v2745 = vadd.f32 0.0, %v2744
    %v2746 = vpop.f32.mrb[0].mxu0
    %2747 = vmatprep.mubr.bf16.mxu0 0
    %2748 = vmatmul.mubr.bf16.gmra.mrb[0].mxu0 %v2694
    %v2749 = vpop.f32.mrb[0].mxu0
    %v2750 = vadd.f32 0.0, %v2749
    %v2751 = vpop.f32.mrb[0].mxu0
    %v2752 = vpop.f32.mrb[0].mxu0
    %v2753 = vpop.f32.mrb[0].mxu0
    %2754 = vdwg.mxu0
    %v2755 = vmul.f32 %v2734, %v2678
    %v2756 = vmul.f32 %v2737, %v2679
    %v2757 = vmul.f32 %v2742, %v2680
    %v2758 = vmul.f32 %v2745, %v2681
    %v2759 = vmul.f32 %v2750, %v2682
    %vm2760 = vcmask 130048
    %2761 = vst.msk [vmem:[%s21] sm:$0xff] %vm2760, %v2755
    %2762 = vst.msk [vmem:[%s21 + $0x8] sm:$0xff] %vm2760, %v2756
    %2763 = vst.msk [vmem:[%s21 + $0x10] sm:$0xff] %vm2760, %v2757
    %2764 = vst.msk [vmem:[%s21 + $0x18] sm:$0xff] %vm2760, %v2758
    %2765 = vst.msk [vmem:[%s21 + $0x20] sm:$0xff] %vm2760, %v2759
    %2767 = vrot.lane.b32.xlu0 %v2686, 112
    %v2768 = vpop.permute.xlu0 %2767
    %v2770 = vsel %vm382, %v2768, 0
    %2772 = vmatprep.subr.bf16.mxu0 0
    %2773 = vmatpush1.bf16.msra.mxu0 %v2770
    %2774 = vmatprep.subr.bf16.mxu0 0
    %2775 = vmatpush1.bf16.msra.mxu0 0
    %2776 = vmatprep.subr.bf16.mxu0 0
    %2777 = vmatpush1.bf16.msra.mxu0 0
    %2778 = vmatprep.subr.bf16.mxu0 0
    %2779 = vmatpush1.bf16.msra.mxu0 0
    %2780 = vmatprep.subr.bf16.mxu0 0
    %2781 = vmatpush1.bf16.msra.mxu0 0
    %2782 = vmatprep.subr.bf16.mxu0 0
    %2783 = vmatpush1.bf16.msra.mxu0 0
    %2784 = vmatprep.subr.bf16.mxu0 0
    %2785 = vmatpush1.bf16.msra.mxu0 0
    %2786 = vmatprep.subr.bf16.mxu0 0
    %2787 = vmatpush1.bf16.msra.mxu0 0
    %2788 = vmatprep.subr.bf16.mxu0 0
    %2789 = vmatpush1.bf16.msra.mxu0 0
    %2790 = vmatprep.subr.bf16.mxu0 0
    %2791 = vmatpush1.bf16.msra.mxu0 0
    %2792 = vmatprep.subr.bf16.mxu0 0
    %2793 = vmatpush1.bf16.msra.mxu0 0
    %2794 = vmatprep.subr.bf16.mxu0 0
    %2795 = vmatpush1.bf16.msra.mxu0 0
    %2796 = vmatprep.subr.bf16.mxu0 0
    %2797 = vmatpush1.bf16.msra.mxu0 0
    %2798 = vmatprep.subr.bf16.mxu0 0
    %2799 = vmatpush1.bf16.msra.mxu0 0
    %2800 = vmatprep.subr.bf16.mxu0 0
    %2801 = vmatpush1.bf16.msra.mxu0 0
    %2802 = vmatprep.subr.bf16.mxu0 0
    %2803 = vmatpush1.bf16.msra.mxu0 0
    %2804 = vmatprep.mubr.bf16.mxu0 0
    %2805 = vmatmul.mubr.bf16.gmra.mrb[0].mxu0 %v2688
    %v2806 = vpop.f32.mrb[0].mxu0
    %v2807 = vadd.f32 0.0, %v2806
    %v2808 = vpop.f32.mrb[0].mxu0
    %v2809 = vpop.f32.mrb[0].mxu0
    %v2810 = vadd.f32 0.0, %v2809
    %v2811 = vpop.f32.mrb[0].mxu0
    %2812 = vmatprep.mubr.bf16.mxu0 0
    %2813 = vmatmul.mubr.bf16.gmra.mrb[0].mxu0 %v2691
    %v2814 = vpop.f32.mrb[0].mxu0
    %v2815 = vadd.f32 0.0, %v2814
    %v2816 = vpop.f32.mrb[0].mxu0
    %v2817 = vpop.f32.mrb[0].mxu0
    %v2818 = vadd.f32 0.0, %v2817
    %v2819 = vpop.f32.mrb[0].mxu0
    %2820 = vmatprep.mubr.bf16.mxu0 0
    %2821 = vmatmul.mubr.bf16.gmra.mrb[0].mxu0 %v2694
    %v2822 = vpop.f32.mrb[0].mxu0
    %v2823 = vadd.f32 0.0, %v2822
    %v2824 = vpop.f32.mrb[0].mxu0
    %v2825 = vpop.f32.mrb[0].mxu0
    %v2826 = vpop.f32.mrb[0].mxu0
    %2827 = vdwg.mxu0
    %v2828 = vmul.f32 %v2807, %v2678
    %v2829 = vmul.f32 %v2810, %v2679
    %v2830 = vmul.f32 %v2815, %v2680
    %v2831 = vmul.f32 %v2818, %v2681
    %v2832 = vmul.f32 %v2823, %v2682
    %2833 = vst.msk [vmem:[%s22] sm:$0xff] %vm2760, %v2828
    %2834 = vst.msk [vmem:[%s22 + $0x8] sm:$0xff] %vm2760, %v2829
    %2835 = vst.msk [vmem:[%s22 + $0x10] sm:$0xff] %vm2760, %v2830
    %2836 = vst.msk [vmem:[%s22 + $0x18] sm:$0xff] %vm2760, %v2831
    %2837 = vst.msk [vmem:[%s22 + $0x20] sm:$0xff] %vm2760, %v2832
    // Predicated region
    $region82: #{tpu_custom_call.1} parent=1 // pred_check
      _
    $region83: #{tpu_custom_call.1} parent=1 // pred_check_branch
      %2839 = sbr.rel (0) target = $region85
    $region84: #{tpu_custom_call.1} parent=1 // pred_region
      %s2841 = ssub.s32 128, 128
      %2842 = vsyncadd [#allocation3], %s2841
      %s2844 = sshll.u32 [#allocation2], 4
      %s2845 = int_to_ptr.vmem [resolvable:$true] %s2844
      %2847 = dma.vmem_to_hbm [thread:$0]  %s2845, 128, %s20, [#allocation3]
    $region85: #{tpu_custom_call.1} parent=1 // pred_fallthru
      _
    // Predicated region
    $region86: #{tpu_custom_call.1} parent=1 // pred_check
      _
    $region87: #{tpu_custom_call.1} parent=1 // pred_check_branch
      %2849 = sbr.rel (0) target = $region89
    $region88: #{tpu_custom_call.1} parent=1 // pred_region
      _
    $region89: #{tpu_custom_call.1} parent=1 // pred_fallthru
      _
    // Predicated region
    $region90: #{tpu_custom_call.1} parent=1 // pred_check
      _
    $region91: #{tpu_custom_call.1} parent=1 // pred_check_branch
      %2851 = sbr.rel (0) target = $region93
    $region92: #{tpu_custom_call.1} parent=1 // pred_region
      _
    $region93: #{tpu_custom_call.1} parent=1 // pred_fallthru
      _
    // Predicated region
    $region94: #{tpu_custom_call.1} parent=1 // pred_check
      _
    $region95: #{tpu_custom_call.1} parent=1 // pred_check_branch
      %2853 = sbr.rel (0) target = $region97
    $region96: #{tpu_custom_call.1} parent=1 // pred_region
      %2854 = dma.done [#allocation3], 128
    $region97: #{tpu_custom_call.1} parent=1 // pred_fallthru
      _
    // Predicated region
    $region98: #{tpu_custom_call.1} parent=1 // pred_check
      _
    $region99: #{tpu_custom_call.1} parent=1 // pred_check_branch
      %2856 = sbr.rel (0) target = $region101
    $region100: #{tpu_custom_call.1} parent=1 // pred_region
      _
    $region101: #{tpu_custom_call.1} parent=1 // pred_fallthru
      _
    // Predicated region
    $region102: #{tpu_custom_call.1} parent=1 // pred_check
      _
    $region103: #{tpu_custom_call.1} parent=1 // pred_check_branch
      %2858 = sbr.rel (0) target = $region105
    $region104: #{tpu_custom_call.1} parent=1 // pred_region
      _
    $region105: #{tpu_custom_call.1} parent=1 // pred_fallthru
      _
    %2859 = vsyncpa [#allocation3], 1

</llo_original>
